<compile_context>
chip_gen: v5e
topology: v5e:2x2
jax: 0.10.0
libtpu: 0.0.40
codegen_flags: <defaults>
</compile_context>

<pallas_src>
import math
import functools

import jax
import jax.numpy as jnp
from jax.experimental import pallas as pl
from jax.experimental.pallas import tpu as pltpu


LANE = 128
BM = 8          # batch rows per grid step


def _round_up(x, m):
    return (x + m - 1) // m * m


def _pick_chunk(hw):
    for c in (64, 32, 16, 8):
        if hw % c == 0:
            return c
    return hw


# ---------------------------------------------------------------------------
# Fused forward kernel (one grid step = BM batch rows):
#   conv3x3 (im2col K-packed matmul, HW-chunked) + bias + ReLU + GAP
#   + fc5 + ArcFace margin + scale
# ---------------------------------------------------------------------------
def _fused_forward_kernel(lbl_ref,                    # (BM, 1)       i32
                          x_ref,                      # (BM, HW, KP)  bf16 (im2col)
                          wc_ref,                     # (KP, CMP)     bf16
                          bc_ref,                     # (1, CMP)      f32
                          wf_ref,                     # (CMP, DP)     bf16
                          bf_ref,                     # (1, DP)       f32
                          wn_ref,                     # (DP, NP)      bf16 (row-normalized W^T)
                          o_ref,                      # (BM, NP)      f32
                          pooled_ref,                 # scratch (BM, CMP) f32
                          *, HW, CH, cos_m, sin_m, th, mm, s):
    bm = x_ref.shape[0]
    inv_hw = 1.0 / HW
    bc = bc_ref[...]                                                  # (1, CMP) f32

    # --- conv3x3 (single K-packed matmul per chunk) + bias + ReLU + GAP ------
    for b in range(bm):
        acc = jnp.zeros((1, bc.shape[1]), jnp.float32)
        for c in range(HW // CH):
            xc = x_ref[b, pl.ds(c * CH, CH), :]                       # (CH, KP) bf16
            conv = jnp.dot(xc, wc_ref[...],
                           preferred_element_type=jnp.float32)        # (CH, CMP) f32
            feat = jnp.maximum(conv + bc, 0.0)                        # bias + ReLU
            acc = acc + jnp.sum(feat, axis=0, keepdims=True)          # chunk partial sum
        pooled_ref[pl.ds(b, 1), :] = acc * inv_hw                     # GAP row b

    pooled = pooled_ref[...]                                          # (BM, CMP) f32

    # --- fc5 embedding (batched matmul, not M=1) ----------------------------
    emb = jnp.dot(pooled.astype(jnp.bfloat16), wf_ref[...],
                  preferred_element_type=jnp.float32) + bf_ref[...]   # (BM, DP) f32

    # --- ArcFace: cosine = normalize(emb) @ normalized(W)^T, margin, scale ---
    inv_n = jax.lax.rsqrt(jnp.maximum(jnp.sum(emb * emb, axis=-1, keepdims=True), 1e-24))
    xn = (emb * inv_n).astype(jnp.bfloat16)
    cosine = jnp.dot(xn, wn_ref[...], preferred_element_type=jnp.float32)   # (BM, NP)

    sine = jnp.sqrt(jnp.clip(1.0 - cosine * cosine, 0.0, 1.0))
    phi = cosine * cos_m - sine * sin_m
    phi = jnp.where(cosine > th, phi, cosine - mm)                    # easy_margin=False

    lbl = lbl_ref[...]                                                # (BM, 1) i32
    col = jax.lax.broadcasted_iota(jnp.int32, cosine.shape, 1)
    one_hot = (col == lbl).astype(jnp.float32)                        # per-row one-hot

    o_ref[...] = (one_hot * phi + (1.0 - one_hot) * cosine) * s


# ---------------------------------------------------------------------------
# Full ClassificationNetwork forward (train=True path)
# ---------------------------------------------------------------------------
def classification_network_forward(params, x_nchw, label, *, s=30.0, m=0.5):
    w_conv = params["w_conv"]            # (Cmid, Cin, 3, 3)
    b_conv = params["b_conv"]            # (Cmid,)
    w_fc5 = params["w_fc5"]              # (D, Cmid)
    b_fc5 = params["b_fc5"]              # (D,)
    w_arc = params["w_arc"]              # (num_cats, D)

    B, C, H, W = x_nchw.shape
    Cmid = w_conv.shape[0]
    D = w_fc5.shape[0]
    num_cats = w_arc.shape[0]

    HW = H * W
    K = 9 * C                            # taps packed into the contraction dim
    KP = _round_up(K, LANE)
    CMP = _round_up(Cmid, LANE)
    DP = _round_up(D, LANE)
    NP = _round_up(num_cats, LANE)
    B_pad = _round_up(max(B, BM), BM)
    CH = _pick_chunk(HW)

    # ---- im2col slab (XLA glue): (B_pad, HW, KP) bf16, tap order (di, dj, c) ----
    x_nhwc = jnp.transpose(x_nchw, (0, 2, 3, 1)).astype(jnp.float32)
    xpad = jnp.pad(x_nhwc, ((0, 0), (1, 1), (1, 1), (0, 0)))              # (B,H+2,W+2,C)
    taps = jnp.stack([xpad[:, di:di + H, dj:dj + W, :]
                      for di in range(3) for dj in range(3)], axis=3)     # (B,H,W,9,C)
    x_im = taps.reshape(B, HW, K)
    x_im = jnp.pad(x_im, ((0, B_pad - B), (0, 0), (0, KP - K))).astype(jnp.bfloat16)

    # ---- weights: K-packed conv taps, fc5, ArcFace (row-normalized, transposed) ----
    w_taps = jnp.transpose(w_conv, (2, 3, 1, 0)).reshape(K, Cmid)         # (9*C, Cmid)
    wc = jnp.zeros((KP, CMP), jnp.float32).at[:K, :Cmid].set(w_taps).astype(jnp.bfloat16)
    bc = jnp.zeros((1, CMP), jnp.float32).at[0, :Cmid].set(b_conv)
    wf = jnp.zeros((CMP, DP), jnp.float32).at[:Cmid, :D].set(w_fc5.T).astype(jnp.bfloat16)
    bf = jnp.zeros((1, DP), jnp.float32).at[0, :D].set(b_fc5)
    w_arc_n = w_arc * jax.lax.rsqrt(
        jnp.maximum(jnp.sum(w_arc * w_arc, axis=1, keepdims=True), 1e-24))
    wn = jnp.zeros((DP, NP), jnp.float32).at[:D, :num_cats].set(w_arc_n.T).astype(jnp.bfloat16)

    lbl = jnp.zeros((B_pad, 1), jnp.int32).at[:B, 0].set(label.astype(jnp.int32))

    kern = functools.partial(
        _fused_forward_kernel, HW=HW, CH=CH,
        cos_m=math.cos(m), sin_m=math.sin(m),
        th=math.cos(math.pi - m), mm=math.sin(math.pi - m) * m, s=float(s))

    out = pl.pallas_call(
        kern,
        out_shape=jax.ShapeDtypeStruct((B_pad, NP), jnp.float32),
        grid=(B_pad // BM,),
        in_specs=[
            pl.BlockSpec((BM, 1), lambda b: (b, 0)),           # labels
            pl.BlockSpec((BM, HW, KP), lambda b: (b, 0, 0)),   # im2col input
            pl.BlockSpec((KP, CMP), lambda b: (0, 0)),         # conv weights (resident)
            pl.BlockSpec((1, CMP), lambda b: (0, 0)),          # conv bias
            pl.BlockSpec((CMP, DP), lambda b: (0, 0)),         # fc5 weights
            pl.BlockSpec((1, DP), lambda b: (0, 0)),           # fc5 bias
            pl.BlockSpec((DP, NP), lambda b: (0, 0)),          # normalized ArcFace W^T
        ],
        out_specs=pl.BlockSpec((BM, NP), lambda b: (b, 0)),
        scratch_shapes=[pltpu.VMEM((BM, CMP), jnp.float32)],   # pooled features
        compiler_params=pltpu.CompilerParams(
            dimension_semantics=("parallel",)),
    )(lbl, x_im, wc, bc, wf, bf, wn)

    # strip batch + class padding (padded classes carry cosine=0 logits)
    return out[:B, :num_cats]


def init_params(key, *, c_in=4, c_mid=8, emb_dim=32, num_cats=10):
    k1, k2, k3, k4, k5 = jax.random.split(key, 5)
    return {
        "w_conv": jax.random.normal(k1, (c_mid, c_in, 3, 3), jnp.float32) * 0.1,
        "b_conv": jax.random.normal(k2, (c_mid,), jnp.float32) * 0.01,
        "w_fc5": jax.random.normal(k3, (emb_dim, c_mid), jnp.float32) * 0.1,
        "b_fc5": jax.random.normal(k4, (emb_dim,), jnp.float32) * 0.01,
        "w_arc": jax.random.normal(k5, (num_cats, emb_dim), jnp.float32) * 0.1,  # xavier-ish
    }


if __name__ == "__main__":
    key = jax.random.PRNGKey(0)
    kx, kl, kp = jax.random.split(key, 3)

    B, C, H, W = 2, 4, 16, 16
    num_cats = 10

    x = jax.random.normal(kx, (B, C, H, W), jnp.float32)          # NCHW, as PyTorch
    label = jax.random.randint(kl, (B,), 0, num_cats)
    params = init_params(kp, c_in=C, c_mid=8, emb_dim=32, num_cats=num_cats)

    out = classification_network_forward(params, x, label, s=30.0, m=0.5)
    out = jax.block_until_ready(out)
    assert out.shape == (B, num_cats) and out.dtype == jnp.float32
    assert bool(jnp.all(jnp.isfinite(out)))
    print("KERNEL_OK")
</pallas_src>

<mosaic_0001>
module attributes {stable_mosaic.version = 11 : i64} {
  func.func @_fused_forward_kernel(%arg0: i32, %arg1: memref<8x1xi32, #tpu.memory_space<vmem>>, %arg2: memref<8x256x128xbf16, #tpu.memory_space<vmem>>, %arg3: memref<128x128xbf16, #tpu.memory_space<vmem>>, %arg4: memref<1x128xf32, #tpu.memory_space<vmem>>, %arg5: memref<128x128xbf16, #tpu.memory_space<vmem>>, %arg6: memref<1x128xf32, #tpu.memory_space<vmem>>, %arg7: memref<128x128xbf16, #tpu.memory_space<vmem>>, %arg8: memref<8x128xf32, #tpu.memory_space<vmem>>, %arg9: memref<8x128xf32, #tpu.memory_space<vmem>>) attributes {dimension_semantics = [#tpu.dimension_semantics<parallel>], iteration_bounds = array<i64: 1>, scalar_prefetch = 0 : i64, scratch_operands = 1 : i64, tpu.core_type = #tpu.core_type<tc>, window_params = [{transform_indices = @transform_0, window_bounds = array<i64: 8, 1>}, {transform_indices = @transform_1, window_bounds = array<i64: 8, 256, 128>}, {pipeline_mode = #tpu.pipeline_mode<synchronous>, transform_indices = @transform_2, window_bounds = array<i64: 128, 128>}, {pipeline_mode = #tpu.pipeline_mode<synchronous>, transform_indices = @transform_3, window_bounds = array<i64: 1, 128>}, {pipeline_mode = #tpu.pipeline_mode<synchronous>, transform_indices = @transform_4, window_bounds = array<i64: 128, 128>}, {pipeline_mode = #tpu.pipeline_mode<synchronous>, transform_indices = @transform_5, window_bounds = array<i64: 1, 128>}, {pipeline_mode = #tpu.pipeline_mode<synchronous>, transform_indices = @transform_6, window_bounds = array<i64: 128, 128>}, {transform_indices = @transform_7, window_bounds = array<i64: 8, 128>}]} {
    %c0 = arith.constant 0 : index
    %c0_0 = arith.constant 0 : index
    %0 = vector.load %arg4[%c0, %c0_0] : memref<1x128xf32, #tpu.memory_space<vmem>>, vector<1x128xf32>
    %cst = arith.constant 0.000000e+00 : f32
    %1 = vector.broadcast %cst : f32 to vector<1x128xf32>
    %c0_1 = arith.constant 0 : index
    %c0_2 = arith.constant 0 : index
    %c0_3 = arith.constant 0 : index
    %2 = vector.load %arg2[%c0_1, %c0_2, %c0_3] : memref<8x256x128xbf16, #tpu.memory_space<vmem>>, vector<1x64x128xbf16>
    %3 = vector.shape_cast %2 : vector<1x64x128xbf16> to vector<64x128xbf16>
    %c0_4 = arith.constant 0 : index
    %c0_5 = arith.constant 0 : index
    %4 = vector.load %arg3[%c0_4, %c0_5] : memref<128x128xbf16, #tpu.memory_space<vmem>>, vector<128x128xbf16>
    %cst_6 = arith.constant dense<0.000000e+00> : vector<64x128xf32>
    %5 = tpu.matmul %3, %4, %cst_6 {dimension_numbers = #tpu.dot_dimension_numbers<[1], [0], [0], [1], [0, 0, 1, 1], [], []>} : vector<64x128xbf16>, vector<128x128xbf16>, vector<64x128xf32> -> vector<64x128xf32>
    %6 = vector.broadcast %0 : vector<1x128xf32> to vector<64x128xf32>
    %7 = arith.addf %5, %6 : vector<64x128xf32>
    %cst_7 = arith.constant 0.000000e+00 : f32
    %8 = vector.broadcast %cst_7 : f32 to vector<64x128xf32>
    %9 = arith.maximumf %7, %8 : vector<64x128xf32>
    %cst_8 = arith.constant dense<0.000000e+00> : vector<128xf32>
    %10 = vector.multi_reduction <add>, %9, %cst_8 [0] : vector<64x128xf32> to vector<128xf32>
    %11 = vector.shape_cast %10 : vector<128xf32> to vector<1x128xf32>
    %12 = arith.addf %1, %11 : vector<1x128xf32>
    %c0_9 = arith.constant 0 : index
    %c64 = arith.constant 64 : index
    %c0_10 = arith.constant 0 : index
    %13 = vector.load %arg2[%c0_9, %c64, %c0_10] : memref<8x256x128xbf16, #tpu.memory_space<vmem>>, vector<1x64x128xbf16>
    %14 = vector.shape_cast %13 : vector<1x64x128xbf16> to vector<64x128xbf16>
    %c0_11 = arith.constant 0 : index
    %c0_12 = arith.constant 0 : index
    %15 = vector.load %arg3[%c0_11, %c0_12] : memref<128x128xbf16, #tpu.memory_space<vmem>>, vector<128x128xbf16>
    %cst_13 = arith.constant dense<0.000000e+00> : vector<64x128xf32>
    %16 = tpu.matmul %14, %15, %cst_13 {dimension_numbers = #tpu.dot_dimension_numbers<[1], [0], [0], [1], [0, 0, 1, 1], [], []>} : vector<64x128xbf16>, vector<128x128xbf16>, vector<64x128xf32> -> vector<64x128xf32>
    %17 = vector.broadcast %0 : vector<1x128xf32> to vector<64x128xf32>
    %18 = arith.addf %16, %17 : vector<64x128xf32>
    %cst_14 = arith.constant 0.000000e+00 : f32
    %19 = vector.broadcast %cst_14 : f32 to vector<64x128xf32>
    %20 = arith.maximumf %18, %19 : vector<64x128xf32>
    %cst_15 = arith.constant dense<0.000000e+00> : vector<128xf32>
    %21 = vector.multi_reduction <add>, %20, %cst_15 [0] : vector<64x128xf32> to vector<128xf32>
    %22 = vector.shape_cast %21 : vector<128xf32> to vector<1x128xf32>
    %23 = arith.addf %12, %22 : vector<1x128xf32>
    %c0_16 = arith.constant 0 : index
    %c128 = arith.constant 128 : index
    %c0_17 = arith.constant 0 : index
    %24 = vector.load %arg2[%c0_16, %c128, %c0_17] : memref<8x256x128xbf16, #tpu.memory_space<vmem>>, vector<1x64x128xbf16>
    %25 = vector.shape_cast %24 : vector<1x64x128xbf16> to vector<64x128xbf16>
    %c0_18 = arith.constant 0 : index
    %c0_19 = arith.constant 0 : index
    %26 = vector.load %arg3[%c0_18, %c0_19] : memref<128x128xbf16, #tpu.memory_space<vmem>>, vector<128x128xbf16>
    %cst_20 = arith.constant dense<0.000000e+00> : vector<64x128xf32>
    %27 = tpu.matmul %25, %26, %cst_20 {dimension_numbers = #tpu.dot_dimension_numbers<[1], [0], [0], [1], [0, 0, 1, 1], [], []>} : vector<64x128xbf16>, vector<128x128xbf16>, vector<64x128xf32> -> vector<64x128xf32>
    %28 = vector.broadcast %0 : vector<1x128xf32> to vector<64x128xf32>
    %29 = arith.addf %27, %28 : vector<64x128xf32>
    %cst_21 = arith.constant 0.000000e+00 : f32
    %30 = vector.broadcast %cst_21 : f32 to vector<64x128xf32>
    %31 = arith.maximumf %29, %30 : vector<64x128xf32>
    %cst_22 = arith.constant dense<0.000000e+00> : vector<128xf32>
    %32 = vector.multi_reduction <add>, %31, %cst_22 [0] : vector<64x128xf32> to vector<128xf32>
    %33 = vector.shape_cast %32 : vector<128xf32> to vector<1x128xf32>
    %34 = arith.addf %23, %33 : vector<1x128xf32>
    %c0_23 = arith.constant 0 : index
    %c192 = arith.constant 192 : index
    %c0_24 = arith.constant 0 : index
    %35 = vector.load %arg2[%c0_23, %c192, %c0_24] : memref<8x256x128xbf16, #tpu.memory_space<vmem>>, vector<1x64x128xbf16>
    %36 = vector.shape_cast %35 : vector<1x64x128xbf16> to vector<64x128xbf16>
    %c0_25 = arith.constant 0 : index
    %c0_26 = arith.constant 0 : index
    %37 = vector.load %arg3[%c0_25, %c0_26] : memref<128x128xbf16, #tpu.memory_space<vmem>>, vector<128x128xbf16>
    %cst_27 = arith.constant dense<0.000000e+00> : vector<64x128xf32>
    %38 = tpu.matmul %36, %37, %cst_27 {dimension_numbers = #tpu.dot_dimension_numbers<[1], [0], [0], [1], [0, 0, 1, 1], [], []>} : vector<64x128xbf16>, vector<128x128xbf16>, vector<64x128xf32> -> vector<64x128xf32>
    %39 = vector.broadcast %0 : vector<1x128xf32> to vector<64x128xf32>
    %40 = arith.addf %38, %39 : vector<64x128xf32>
    %cst_28 = arith.constant 0.000000e+00 : f32
    %41 = vector.broadcast %cst_28 : f32 to vector<64x128xf32>
    %42 = arith.maximumf %40, %41 : vector<64x128xf32>
    %cst_29 = arith.constant dense<0.000000e+00> : vector<128xf32>
    %43 = vector.multi_reduction <add>, %42, %cst_29 [0] : vector<64x128xf32> to vector<128xf32>
    %44 = vector.shape_cast %43 : vector<128xf32> to vector<1x128xf32>
    %45 = arith.addf %34, %44 : vector<1x128xf32>
    %cst_30 = arith.constant 3.906250e-03 : f32
    %46 = vector.broadcast %cst_30 : f32 to vector<1x128xf32>
    %47 = arith.mulf %45, %46 : vector<1x128xf32>
    %c0_31 = arith.constant 0 : index
    %c0_32 = arith.constant 0 : index
    %48 = vector.load %arg9[%c0_31, %c0_32] : memref<8x128xf32, #tpu.memory_space<vmem>>, vector<1x128xf32>
    tpu.vector_store %arg9[%c0_31, %c0_32], %47 {strides = array<i32>} : memref<8x128xf32, #tpu.memory_space<vmem>>, vector<1x128xf32>,
    %cst_33 = arith.constant 0.000000e+00 : f32
    %49 = vector.broadcast %cst_33 : f32 to vector<1x128xf32>
    %c1 = arith.constant 1 : index
    %c0_34 = arith.constant 0 : index
    %c0_35 = arith.constant 0 : index
    %50 = vector.load %arg2[%c1, %c0_34, %c0_35] : memref<8x256x128xbf16, #tpu.memory_space<vmem>>, vector<1x64x128xbf16>
    %51 = vector.shape_cast %50 : vector<1x64x128xbf16> to vector<64x128xbf16>
    %c0_36 = arith.constant 0 : index
    %c0_37 = arith.constant 0 : index
    %52 = vector.load %arg3[%c0_36, %c0_37] : memref<128x128xbf16, #tpu.memory_space<vmem>>, vector<128x128xbf16>
    %cst_38 = arith.constant dense<0.000000e+00> : vector<64x128xf32>
    %53 = tpu.matmul %51, %52, %cst_38 {dimension_numbers = #tpu.dot_dimension_numbers<[1], [0], [0], [1], [0, 0, 1, 1], [], []>} : vector<64x128xbf16>, vector<128x128xbf16>, vector<64x128xf32> -> vector<64x128xf32>
    %54 = vector.broadcast %0 : vector<1x128xf32> to vector<64x128xf32>
    %55 = arith.addf %53, %54 : vector<64x128xf32>
    %cst_39 = arith.constant 0.000000e+00 : f32
    %56 = vector.broadcast %cst_39 : f32 to vector<64x128xf32>
    %57 = arith.maximumf %55, %56 : vector<64x128xf32>
    %cst_40 = arith.constant dense<0.000000e+00> : vector<128xf32>
    %58 = vector.multi_reduction <add>, %57, %cst_40 [0] : vector<64x128xf32> to vector<128xf32>
    %59 = vector.shape_cast %58 : vector<128xf32> to vector<1x128xf32>
    %60 = arith.addf %49, %59 : vector<1x128xf32>
    %c1_41 = arith.constant 1 : index
    %c64_42 = arith.constant 64 : index
    %c0_43 = arith.constant 0 : index
    %61 = vector.load %arg2[%c1_41, %c64_42, %c0_43] : memref<8x256x128xbf16, #tpu.memory_space<vmem>>, vector<1x64x128xbf16>
    %62 = vector.shape_cast %61 : vector<1x64x128xbf16> to vector<64x128xbf16>
    %c0_44 = arith.constant 0 : index
    %c0_45 = arith.constant 0 : index
    %63 = vector.load %arg3[%c0_44, %c0_45] : memref<128x128xbf16, #tpu.memory_space<vmem>>, vector<128x128xbf16>
    %cst_46 = arith.constant dense<0.000000e+00> : vector<64x128xf32>
    %64 = tpu.matmul %62, %63, %cst_46 {dimension_numbers = #tpu.dot_dimension_numbers<[1], [0], [0], [1], [0, 0, 1, 1], [], []>} : vector<64x128xbf16>, vector<128x128xbf16>, vector<64x128xf32> -> vector<64x128xf32>
    %65 = vector.broadcast %0 : vector<1x128xf32> to vector<64x128xf32>
    %66 = arith.addf %64, %65 : vector<64x128xf32>
    %cst_47 = arith.constant 0.000000e+00 : f32
    %67 = vector.broadcast %cst_47 : f32 to vector<64x128xf32>
    %68 = arith.maximumf %66, %67 : vector<64x128xf32>
    %cst_48 = arith.constant dense<0.000000e+00> : vector<128xf32>
    %69 = vector.multi_reduction <add>, %68, %cst_48 [0] : vector<64x128xf32> to vector<128xf32>
    %70 = vector.shape_cast %69 : vector<128xf32> to vector<1x128xf32>
    %71 = arith.addf %60, %70 : vector<1x128xf32>
    %c1_49 = arith.constant 1 : index
    %c128_50 = arith.constant 128 : index
    %c0_51 = arith.constant 0 : index
    %72 = vector.load %arg2[%c1_49, %c128_50, %c0_51] : memref<8x256x128xbf16, #tpu.memory_space<vmem>>, vector<1x64x128xbf16>
    %73 = vector.shape_cast %72 : vector<1x64x128xbf16> to vector<64x128xbf16>
    %c0_52 = arith.constant 0 : index
    %c0_53 = arith.constant 0 : index
    %74 = vector.load %arg3[%c0_52, %c0_53] : memref<128x128xbf16, #tpu.memory_space<vmem>>, vector<128x128xbf16>
    %cst_54 = arith.constant dense<0.000000e+00> : vector<64x128xf32>
    %75 = tpu.matmul %73, %74, %cst_54 {dimension_numbers = #tpu.dot_dimension_numbers<[1], [0], [0], [1], [0, 0, 1, 1], [], []>} : vector<64x128xbf16>, vector<128x128xbf16>, vector<64x128xf32> -> vector<64x128xf32>
    %76 = vector.broadcast %0 : vector<1x128xf32> to vector<64x128xf32>
    %77 = arith.addf %75, %76 : vector<64x128xf32>
    %cst_55 = arith.constant 0.000000e+00 : f32
    %78 = vector.broadcast %cst_55 : f32 to vector<64x128xf32>
    %79 = arith.maximumf %77, %78 : vector<64x128xf32>
    %cst_56 = arith.constant dense<0.000000e+00> : vector<128xf32>
    %80 = vector.multi_reduction <add>, %79, %cst_56 [0] : vector<64x128xf32> to vector<128xf32>
    %81 = vector.shape_cast %80 : vector<128xf32> to vector<1x128xf32>
    %82 = arith.addf %71, %81 : vector<1x128xf32>
    %c1_57 = arith.constant 1 : index
    %c192_58 = arith.constant 192 : index
    %c0_59 = arith.constant 0 : index
    %83 = vector.load %arg2[%c1_57, %c192_58, %c0_59] : memref<8x256x128xbf16, #tpu.memory_space<vmem>>, vector<1x64x128xbf16>
    %84 = vector.shape_cast %83 : vector<1x64x128xbf16> to vector<64x128xbf16>
    %c0_60 = arith.constant 0 : index
    %c0_61 = arith.constant 0 : index
    %85 = vector.load %arg3[%c0_60, %c0_61] : memref<128x128xbf16, #tpu.memory_space<vmem>>, vector<128x128xbf16>
    %cst_62 = arith.constant dense<0.000000e+00> : vector<64x128xf32>
    %86 = tpu.matmul %84, %85, %cst_62 {dimension_numbers = #tpu.dot_dimension_numbers<[1], [0], [0], [1], [0, 0, 1, 1], [], []>} : vector<64x128xbf16>, vector<128x128xbf16>, vector<64x128xf32> -> vector<64x128xf32>
    %87 = vector.broadcast %0 : vector<1x128xf32> to vector<64x128xf32>
    %88 = arith.addf %86, %87 : vector<64x128xf32>
    %cst_63 = arith.constant 0.000000e+00 : f32
    %89 = vector.broadcast %cst_63 : f32 to vector<64x128xf32>
    %90 = arith.maximumf %88, %89 : vector<64x128xf32>
    %cst_64 = arith.constant dense<0.000000e+00> : vector<128xf32>
    %91 = vector.multi_reduction <add>, %90, %cst_64 [0] : vector<64x128xf32> to vector<128xf32>
    %92 = vector.shape_cast %91 : vector<128xf32> to vector<1x128xf32>
    %93 = arith.addf %82, %92 : vector<1x128xf32>
    %cst_65 = arith.constant 3.906250e-03 : f32
    %94 = vector.broadcast %cst_65 : f32 to vector<1x128xf32>
    %95 = arith.mulf %93, %94 : vector<1x128xf32>
    %c1_66 = arith.constant 1 : index
    %c0_67 = arith.constant 0 : index
    %96 = vector.load %arg9[%c1_66, %c0_67] : memref<8x128xf32, #tpu.memory_space<vmem>>, vector<1x128xf32>
    tpu.vector_store %arg9[%c1_66, %c0_67], %95 {strides = array<i32>} : memref<8x128xf32, #tpu.memory_space<vmem>>, vector<1x128xf32>,
    %cst_68 = arith.constant 0.000000e+00 : f32
    %97 = vector.broadcast %cst_68 : f32 to vector<1x128xf32>
    %c2 = arith.constant 2 : index
    %c0_69 = arith.constant 0 : index
    %c0_70 = arith.constant 0 : index
    %98 = vector.load %arg2[%c2, %c0_69, %c0_70] : memref<8x256x128xbf16, #tpu.memory_space<vmem>>, vector<1x64x128xbf16>
    %99 = vector.shape_cast %98 : vector<1x64x128xbf16> to vector<64x128xbf16>
    %c0_71 = arith.constant 0 : index
    %c0_72 = arith.constant 0 : index
    %100 = vector.load %arg3[%c0_71, %c0_72] : memref<128x128xbf16, #tpu.memory_space<vmem>>, vector<128x128xbf16>
    %cst_73 = arith.constant dense<0.000000e+00> : vector<64x128xf32>
    %101 = tpu.matmul %99, %100, %cst_73 {dimension_numbers = #tpu.dot_dimension_numbers<[1], [0], [0], [1], [0, 0, 1, 1], [], []>} : vector<64x128xbf16>, vector<128x128xbf16>, vector<64x128xf32> -> vector<64x128xf32>
    %102 = vector.broadcast %0 : vector<1x128xf32> to vector<64x128xf32>
    %103 = arith.addf %101, %102 : vector<64x128xf32>
    %cst_74 = arith.constant 0.000000e+00 : f32
    %104 = vector.broadcast %cst_74 : f32 to vector<64x128xf32>
    %105 = arith.maximumf %103, %104 : vector<64x128xf32>
    %cst_75 = arith.constant dense<0.000000e+00> : vector<128xf32>
    %106 = vector.multi_reduction <add>, %105, %cst_75 [0] : vector<64x128xf32> to vector<128xf32>
    %107 = vector.shape_cast %106 : vector<128xf32> to vector<1x128xf32>
    %108 = arith.addf %97, %107 : vector<1x128xf32>
    %c2_76 = arith.constant 2 : index
    %c64_77 = arith.constant 64 : index
    %c0_78 = arith.constant 0 : index
    %109 = vector.load %arg2[%c2_76, %c64_77, %c0_78] : memref<8x256x128xbf16, #tpu.memory_space<vmem>>, vector<1x64x128xbf16>
    %110 = vector.shape_cast %109 : vector<1x64x128xbf16> to vector<64x128xbf16>
    %c0_79 = arith.constant 0 : index
    %c0_80 = arith.constant 0 : index
    %111 = vector.load %arg3[%c0_79, %c0_80] : memref<128x128xbf16, #tpu.memory_space<vmem>>, vector<128x128xbf16>
    %cst_81 = arith.constant dense<0.000000e+00> : vector<64x128xf32>
    %112 = tpu.matmul %110, %111, %cst_81 {dimension_numbers = #tpu.dot_dimension_numbers<[1], [0], [0], [1], [0, 0, 1, 1], [], []>} : vector<64x128xbf16>, vector<128x128xbf16>, vector<64x128xf32> -> vector<64x128xf32>
    %113 = vector.broadcast %0 : vector<1x128xf32> to vector<64x128xf32>
    %114 = arith.addf %112, %113 : vector<64x128xf32>
    %cst_82 = arith.constant 0.000000e+00 : f32
    %115 = vector.broadcast %cst_82 : f32 to vector<64x128xf32>
    %116 = arith.maximumf %114, %115 : vector<64x128xf32>
    %cst_83 = arith.constant dense<0.000000e+00> : vector<128xf32>
    %117 = vector.multi_reduction <add>, %116, %cst_83 [0] : vector<64x128xf32> to vector<128xf32>
    %118 = vector.shape_cast %117 : vector<128xf32> to vector<1x128xf32>
    %119 = arith.addf %108, %118 : vector<1x128xf32>
    %c2_84 = arith.constant 2 : index
    %c128_85 = arith.constant 128 : index
    %c0_86 = arith.constant 0 : index
    %120 = vector.load %arg2[%c2_84, %c128_85, %c0_86] : memref<8x256x128xbf16, #tpu.memory_space<vmem>>, vector<1x64x128xbf16>
    %121 = vector.shape_cast %120 : vector<1x64x128xbf16> to vector<64x128xbf16>
    %c0_87 = arith.constant 0 : index
    %c0_88 = arith.constant 0 : index
    %122 = vector.load %arg3[%c0_87, %c0_88] : memref<128x128xbf16, #tpu.memory_space<vmem>>, vector<128x128xbf16>
    %cst_89 = arith.constant dense<0.000000e+00> : vector<64x128xf32>
    %123 = tpu.matmul %121, %122, %cst_89 {dimension_numbers = #tpu.dot_dimension_numbers<[1], [0], [0], [1], [0, 0, 1, 1], [], []>} : vector<64x128xbf16>, vector<128x128xbf16>, vector<64x128xf32> -> vector<64x128xf32>
    %124 = vector.broadcast %0 : vector<1x128xf32> to vector<64x128xf32>
    %125 = arith.addf %123, %124 : vector<64x128xf32>
    %cst_90 = arith.constant 0.000000e+00 : f32
    %126 = vector.broadcast %cst_90 : f32 to vector<64x128xf32>
    %127 = arith.maximumf %125, %126 : vector<64x128xf32>
    %cst_91 = arith.constant dense<0.000000e+00> : vector<128xf32>
    %128 = vector.multi_reduction <add>, %127, %cst_91 [0] : vector<64x128xf32> to vector<128xf32>
    %129 = vector.shape_cast %128 : vector<128xf32> to vector<1x128xf32>
    %130 = arith.addf %119, %129 : vector<1x128xf32>
    %c2_92 = arith.constant 2 : index
    %c192_93 = arith.constant 192 : index
    %c0_94 = arith.constant 0 : index
    %131 = vector.load %arg2[%c2_92, %c192_93, %c0_94] : memref<8x256x128xbf16, #tpu.memory_space<vmem>>, vector<1x64x128xbf16>
    %132 = vector.shape_cast %131 : vector<1x64x128xbf16> to vector<64x128xbf16>
    %c0_95 = arith.constant 0 : index
    %c0_96 = arith.constant 0 : index
    %133 = vector.load %arg3[%c0_95, %c0_96] : memref<128x128xbf16, #tpu.memory_space<vmem>>, vector<128x128xbf16>
    %cst_97 = arith.constant dense<0.000000e+00> : vector<64x128xf32>
    %134 = tpu.matmul %132, %133, %cst_97 {dimension_numbers = #tpu.dot_dimension_numbers<[1], [0], [0], [1], [0, 0, 1, 1], [], []>} : vector<64x128xbf16>, vector<128x128xbf16>, vector<64x128xf32> -> vector<64x128xf32>
    %135 = vector.broadcast %0 : vector<1x128xf32> to vector<64x128xf32>
    %136 = arith.addf %134, %135 : vector<64x128xf32>
    %cst_98 = arith.constant 0.000000e+00 : f32
    %137 = vector.broadcast %cst_98 : f32 to vector<64x128xf32>
    %138 = arith.maximumf %136, %137 : vector<64x128xf32>
    %cst_99 = arith.constant dense<0.000000e+00> : vector<128xf32>
    %139 = vector.multi_reduction <add>, %138, %cst_99 [0] : vector<64x128xf32> to vector<128xf32>
    %140 = vector.shape_cast %139 : vector<128xf32> to vector<1x128xf32>
    %141 = arith.addf %130, %140 : vector<1x128xf32>
    %cst_100 = arith.constant 3.906250e-03 : f32
    %142 = vector.broadcast %cst_100 : f32 to vector<1x128xf32>
    %143 = arith.mulf %141, %142 : vector<1x128xf32>
    %c2_101 = arith.constant 2 : index
    %c0_102 = arith.constant 0 : index
    %144 = vector.load %arg9[%c2_101, %c0_102] : memref<8x128xf32, #tpu.memory_space<vmem>>, vector<1x128xf32>
    tpu.vector_store %arg9[%c2_101, %c0_102], %143 {strides = array<i32>} : memref<8x128xf32, #tpu.memory_space<vmem>>, vector<1x128xf32>,
    %cst_103 = arith.constant 0.000000e+00 : f32
    %145 = vector.broadcast %cst_103 : f32 to vector<1x128xf32>
    %c3 = arith.constant 3 : index
    %c0_104 = arith.constant 0 : index
    %c0_105 = arith.constant 0 : index
    %146 = vector.load %arg2[%c3, %c0_104, %c0_105] : memref<8x256x128xbf16, #tpu.memory_space<vmem>>, vector<1x64x128xbf16>
    %147 = vector.shape_cast %146 : vector<1x64x128xbf16> to vector<64x128xbf16>
    %c0_106 = arith.constant 0 : index
    %c0_107 = arith.constant 0 : index
    %148 = vector.load %arg3[%c0_106, %c0_107] : memref<128x128xbf16, #tpu.memory_space<vmem>>, vector<128x128xbf16>
    %cst_108 = arith.constant dense<0.000000e+00> : vector<64x128xf32>
    %149 = tpu.matmul %147, %148, %cst_108 {dimension_numbers = #tpu.dot_dimension_numbers<[1], [0], [0], [1], [0, 0, 1, 1], [], []>} : vector<64x128xbf16>, vector<128x128xbf16>, vector<64x128xf32> -> vector<64x128xf32>
    %150 = vector.broadcast %0 : vector<1x128xf32> to vector<64x128xf32>
    %151 = arith.addf %149, %150 : vector<64x128xf32>
    %cst_109 = arith.constant 0.000000e+00 : f32
    %152 = vector.broadcast %cst_109 : f32 to vector<64x128xf32>
    %153 = arith.maximumf %151, %152 : vector<64x128xf32>
    %cst_110 = arith.constant dense<0.000000e+00> : vector<128xf32>
    %154 = vector.multi_reduction <add>, %153, %cst_110 [0] : vector<64x128xf32> to vector<128xf32>
    %155 = vector.shape_cast %154 : vector<128xf32> to vector<1x128xf32>
    %156 = arith.addf %145, %155 : vector<1x128xf32>
    %c3_111 = arith.constant 3 : index
    %c64_112 = arith.constant 64 : index
    %c0_113 = arith.constant 0 : index
    %157 = vector.load %arg2[%c3_111, %c64_112, %c0_113] : memref<8x256x128xbf16, #tpu.memory_space<vmem>>, vector<1x64x128xbf16>
    %158 = vector.shape_cast %157 : vector<1x64x128xbf16> to vector<64x128xbf16>
    %c0_114 = arith.constant 0 : index
    %c0_115 = arith.constant 0 : index
    %159 = vector.load %arg3[%c0_114, %c0_115] : memref<128x128xbf16, #tpu.memory_space<vmem>>, vector<128x128xbf16>
    %cst_116 = arith.constant dense<0.000000e+00> : vector<64x128xf32>
    %160 = tpu.matmul %158, %159, %cst_116 {dimension_numbers = #tpu.dot_dimension_numbers<[1], [0], [0], [1], [0, 0, 1, 1], [], []>} : vector<64x128xbf16>, vector<128x128xbf16>, vector<64x128xf32> -> vector<64x128xf32>
    %161 = vector.broadcast %0 : vector<1x128xf32> to vector<64x128xf32>
    %162 = arith.addf %160, %161 : vector<64x128xf32>
    %cst_117 = arith.constant 0.000000e+00 : f32
    %163 = vector.broadcast %cst_117 : f32 to vector<64x128xf32>
    %164 = arith.maximumf %162, %163 : vector<64x128xf32>
    %cst_118 = arith.constant dense<0.000000e+00> : vector<128xf32>
    %165 = vector.multi_reduction <add>, %164, %cst_118 [0] : vector<64x128xf32> to vector<128xf32>
    %166 = vector.shape_cast %165 : vector<128xf32> to vector<1x128xf32>
    %167 = arith.addf %156, %166 : vector<1x128xf32>
    %c3_119 = arith.constant 3 : index
    %c128_120 = arith.constant 128 : index
    %c0_121 = arith.constant 0 : index
    %168 = vector.load %arg2[%c3_119, %c128_120, %c0_121] : memref<8x256x128xbf16, #tpu.memory_space<vmem>>, vector<1x64x128xbf16>
    %169 = vector.shape_cast %168 : vector<1x64x128xbf16> to vector<64x128xbf16>
    %c0_122 = arith.constant 0 : index
    %c0_123 = arith.constant 0 : index
    %170 = vector.load %arg3[%c0_122, %c0_123] : memref<128x128xbf16, #tpu.memory_space<vmem>>, vector<128x128xbf16>
    %cst_124 = arith.constant dense<0.000000e+00> : vector<64x128xf32>
    %171 = tpu.matmul %169, %170, %cst_124 {dimension_numbers = #tpu.dot_dimension_numbers<[1], [0], [0], [1], [0, 0, 1, 1], [], []>} : vector<64x128xbf16>, vector<128x128xbf16>, vector<64x128xf32> -> vector<64x128xf32>
    %172 = vector.broadcast %0 : vector<1x128xf32> to vector<64x128xf32>
    %173 = arith.addf %171, %172 : vector<64x128xf32>
    %cst_125 = arith.constant 0.000000e+00 : f32
    %174 = vector.broadcast %cst_125 : f32 to vector<64x128xf32>
    %175 = arith.maximumf %173, %174 : vector<64x128xf32>
    %cst_126 = arith.constant dense<0.000000e+00> : vector<128xf32>
    %176 = vector.multi_reduction <add>, %175, %cst_126 [0] : vector<64x128xf32> to vector<128xf32>
    %177 = vector.shape_cast %176 : vector<128xf32> to vector<1x128xf32>
    %178 = arith.addf %167, %177 : vector<1x128xf32>
    %c3_127 = arith.constant 3 : index
    %c192_128 = arith.constant 192 : index
    %c0_129 = arith.constant 0 : index
    %179 = vector.load %arg2[%c3_127, %c192_128, %c0_129] : memref<8x256x128xbf16, #tpu.memory_space<vmem>>, vector<1x64x128xbf16>
    %180 = vector.shape_cast %179 : vector<1x64x128xbf16> to vector<64x128xbf16>
    %c0_130 = arith.constant 0 : index
    %c0_131 = arith.constant 0 : index
    %181 = vector.load %arg3[%c0_130, %c0_131] : memref<128x128xbf16, #tpu.memory_space<vmem>>, vector<128x128xbf16>
    %cst_132 = arith.constant dense<0.000000e+00> : vector<64x128xf32>
    %182 = tpu.matmul %180, %181, %cst_132 {dimension_numbers = #tpu.dot_dimension_numbers<[1], [0], [0], [1], [0, 0, 1, 1], [], []>} : vector<64x128xbf16>, vector<128x128xbf16>, vector<64x128xf32> -> vector<64x128xf32>
    %183 = vector.broadcast %0 : vector<1x128xf32> to vector<64x128xf32>
    %184 = arith.addf %182, %183 : vector<64x128xf32>
    %cst_133 = arith.constant 0.000000e+00 : f32
    %185 = vector.broadcast %cst_133 : f32 to vector<64x128xf32>
    %186 = arith.maximumf %184, %185 : vector<64x128xf32>
    %cst_134 = arith.constant dense<0.000000e+00> : vector<128xf32>
    %187 = vector.multi_reduction <add>, %186, %cst_134 [0] : vector<64x128xf32> to vector<128xf32>
    %188 = vector.shape_cast %187 : vector<128xf32> to vector<1x128xf32>
    %189 = arith.addf %178, %188 : vector<1x128xf32>
    %cst_135 = arith.constant 3.906250e-03 : f32
    %190 = vector.broadcast %cst_135 : f32 to vector<1x128xf32>
    %191 = arith.mulf %189, %190 : vector<1x128xf32>
    %c3_136 = arith.constant 3 : index
    %c0_137 = arith.constant 0 : index
    %192 = vector.load %arg9[%c3_136, %c0_137] : memref<8x128xf32, #tpu.memory_space<vmem>>, vector<1x128xf32>
    tpu.vector_store %arg9[%c3_136, %c0_137], %191 {strides = array<i32>} : memref<8x128xf32, #tpu.memory_space<vmem>>, vector<1x128xf32>,
    %cst_138 = arith.constant 0.000000e+00 : f32
    %193 = vector.broadcast %cst_138 : f32 to vector<1x128xf32>
    %c4 = arith.constant 4 : index
    %c0_139 = arith.constant 0 : index
    %c0_140 = arith.constant 0 : index
    %194 = vector.load %arg2[%c4, %c0_139, %c0_140] : memref<8x256x128xbf16, #tpu.memory_space<vmem>>, vector<1x64x128xbf16>
    %195 = vector.shape_cast %194 : vector<1x64x128xbf16> to vector<64x128xbf16>
    %c0_141 = arith.constant 0 : index
    %c0_142 = arith.constant 0 : index
    %196 = vector.load %arg3[%c0_141, %c0_142] : memref<128x128xbf16, #tpu.memory_space<vmem>>, vector<128x128xbf16>
    %cst_143 = arith.constant dense<0.000000e+00> : vector<64x128xf32>
    %197 = tpu.matmul %195, %196, %cst_143 {dimension_numbers = #tpu.dot_dimension_numbers<[1], [0], [0], [1], [0, 0, 1, 1], [], []>} : vector<64x128xbf16>, vector<128x128xbf16>, vector<64x128xf32> -> vector<64x128xf32>
    %198 = vector.broadcast %0 : vector<1x128xf32> to vector<64x128xf32>
    %199 = arith.addf %197, %198 : vector<64x128xf32>
    %cst_144 = arith.constant 0.000000e+00 : f32
    %200 = vector.broadcast %cst_144 : f32 to vector<64x128xf32>
    %201 = arith.maximumf %199, %200 : vector<64x128xf32>
    %cst_145 = arith.constant dense<0.000000e+00> : vector<128xf32>
    %202 = vector.multi_reduction <add>, %201, %cst_145 [0] : vector<64x128xf32> to vector<128xf32>
    %203 = vector.shape_cast %202 : vector<128xf32> to vector<1x128xf32>
    %204 = arith.addf %193, %203 : vector<1x128xf32>
    %c4_146 = arith.constant 4 : index
    %c64_147 = arith.constant 64 : index
    %c0_148 = arith.constant 0 : index
    %205 = vector.load %arg2[%c4_146, %c64_147, %c0_148] : memref<8x256x128xbf16, #tpu.memory_space<vmem>>, vector<1x64x128xbf16>
    %206 = vector.shape_cast %205 : vector<1x64x128xbf16> to vector<64x128xbf16>
    %c0_149 = arith.constant 0 : index
    %c0_150 = arith.constant 0 : index
    %207 = vector.load %arg3[%c0_149, %c0_150] : memref<128x128xbf16, #tpu.memory_space<vmem>>, vector<128x128xbf16>
    %cst_151 = arith.constant dense<0.000000e+00> : vector<64x128xf32>
    %208 = tpu.matmul %206, %207, %cst_151 {dimension_numbers = #tpu.dot_dimension_numbers<[1], [0], [0], [1], [0, 0, 1, 1], [], []>} : vector<64x128xbf16>, vector<128x128xbf16>, vector<64x128xf32> -> vector<64x128xf32>
    %209 = vector.broadcast %0 : vector<1x128xf32> to vector<64x128xf32>
    %210 = arith.addf %208, %209 : vector<64x128xf32>
    %cst_152 = arith.constant 0.000000e+00 : f32
    %211 = vector.broadcast %cst_152 : f32 to vector<64x128xf32>
    %212 = arith.maximumf %210, %211 : vector<64x128xf32>
    %cst_153 = arith.constant dense<0.000000e+00> : vector<128xf32>
    %213 = vector.multi_reduction <add>, %212, %cst_153 [0] : vector<64x128xf32> to vector<128xf32>
    %214 = vector.shape_cast %213 : vector<128xf32> to vector<1x128xf32>
    %215 = arith.addf %204, %214 : vector<1x128xf32>
    %c4_154 = arith.constant 4 : index
    %c128_155 = arith.constant 128 : index
    %c0_156 = arith.constant 0 : index
    %216 = vector.load %arg2[%c4_154, %c128_155, %c0_156] : memref<8x256x128xbf16, #tpu.memory_space<vmem>>, vector<1x64x128xbf16>
    %217 = vector.shape_cast %216 : vector<1x64x128xbf16> to vector<64x128xbf16>
    %c0_157 = arith.constant 0 : index
    %c0_158 = arith.constant 0 : index
    %218 = vector.load %arg3[%c0_157, %c0_158] : memref<128x128xbf16, #tpu.memory_space<vmem>>, vector<128x128xbf16>
    %cst_159 = arith.constant dense<0.000000e+00> : vector<64x128xf32>
    %219 = tpu.matmul %217, %218, %cst_159 {dimension_numbers = #tpu.dot_dimension_numbers<[1], [0], [0], [1], [0, 0, 1, 1], [], []>} : vector<64x128xbf16>, vector<128x128xbf16>, vector<64x128xf32> -> vector<64x128xf32>
    %220 = vector.broadcast %0 : vector<1x128xf32> to vector<64x128xf32>
    %221 = arith.addf %219, %220 : vector<64x128xf32>
    %cst_160 = arith.constant 0.000000e+00 : f32
    %222 = vector.broadcast %cst_160 : f32 to vector<64x128xf32>
    %223 = arith.maximumf %221, %222 : vector<64x128xf32>
    %cst_161 = arith.constant dense<0.000000e+00> : vector<128xf32>
    %224 = vector.multi_reduction <add>, %223, %cst_161 [0] : vector<64x128xf32> to vector<128xf32>
    %225 = vector.shape_cast %224 : vector<128xf32> to vector<1x128xf32>
    %226 = arith.addf %215, %225 : vector<1x128xf32>
    %c4_162 = arith.constant 4 : index
    %c192_163 = arith.constant 192 : index
    %c0_164 = arith.constant 0 : index
    %227 = vector.load %arg2[%c4_162, %c192_163, %c0_164] : memref<8x256x128xbf16, #tpu.memory_space<vmem>>, vector<1x64x128xbf16>
    %228 = vector.shape_cast %227 : vector<1x64x128xbf16> to vector<64x128xbf16>
    %c0_165 = arith.constant 0 : index
    %c0_166 = arith.constant 0 : index
    %229 = vector.load %arg3[%c0_165, %c0_166] : memref<128x128xbf16, #tpu.memory_space<vmem>>, vector<128x128xbf16>
    %cst_167 = arith.constant dense<0.000000e+00> : vector<64x128xf32>
    %230 = tpu.matmul %228, %229, %cst_167 {dimension_numbers = #tpu.dot_dimension_numbers<[1], [0], [0], [1], [0, 0, 1, 1], [], []>} : vector<64x128xbf16>, vector<128x128xbf16>, vector<64x128xf32> -> vector<64x128xf32>
    %231 = vector.broadcast %0 : vector<1x128xf32> to vector<64x128xf32>
    %232 = arith.addf %230, %231 : vector<64x128xf32>
    %cst_168 = arith.constant 0.000000e+00 : f32
    %233 = vector.broadcast %cst_168 : f32 to vector<64x128xf32>
    %234 = arith.maximumf %232, %233 : vector<64x128xf32>
    %cst_169 = arith.constant dense<0.000000e+00> : vector<128xf32>
    %235 = vector.multi_reduction <add>, %234, %cst_169 [0] : vector<64x128xf32> to vector<128xf32>
    %236 = vector.shape_cast %235 : vector<128xf32> to vector<1x128xf32>
    %237 = arith.addf %226, %236 : vector<1x128xf32>
    %cst_170 = arith.constant 3.906250e-03 : f32
    %238 = vector.broadcast %cst_170 : f32 to vector<1x128xf32>
    %239 = arith.mulf %237, %238 : vector<1x128xf32>
    %c4_171 = arith.constant 4 : index
    %c0_172 = arith.constant 0 : index
    %240 = vector.load %arg9[%c4_171, %c0_172] : memref<8x128xf32, #tpu.memory_space<vmem>>, vector<1x128xf32>
    tpu.vector_store %arg9[%c4_171, %c0_172], %239 {strides = array<i32>} : memref<8x128xf32, #tpu.memory_space<vmem>>, vector<1x128xf32>,
    %cst_173 = arith.constant 0.000000e+00 : f32
    %241 = vector.broadcast %cst_173 : f32 to vector<1x128xf32>
    %c5 = arith.constant 5 : index
    %c0_174 = arith.constant 0 : index
    %c0_175 = arith.constant 0 : index
    %242 = vector.load %arg2[%c5, %c0_174, %c0_175] : memref<8x256x128xbf16, #tpu.memory_space<vmem>>, vector<1x64x128xbf16>
    %243 = vector.shape_cast %242 : vector<1x64x128xbf16> to vector<64x128xbf16>
    %c0_176 = arith.constant 0 : index
    %c0_177 = arith.constant 0 : index
    %244 = vector.load %arg3[%c0_176, %c0_177] : memref<128x128xbf16, #tpu.memory_space<vmem>>, vector<128x128xbf16>
    %cst_178 = arith.constant dense<0.000000e+00> : vector<64x128xf32>
    %245 = tpu.matmul %243, %244, %cst_178 {dimension_numbers = #tpu.dot_dimension_numbers<[1], [0], [0], [1], [0, 0, 1, 1], [], []>} : vector<64x128xbf16>, vector<128x128xbf16>, vector<64x128xf32> -> vector<64x128xf32>
    %246 = vector.broadcast %0 : vector<1x128xf32> to vector<64x128xf32>
    %247 = arith.addf %245, %246 : vector<64x128xf32>
    %cst_179 = arith.constant 0.000000e+00 : f32
    %248 = vector.broadcast %cst_179 : f32 to vector<64x128xf32>
    %249 = arith.maximumf %247, %248 : vector<64x128xf32>
    %cst_180 = arith.constant dense<0.000000e+00> : vector<128xf32>
    %250 = vector.multi_reduction <add>, %249, %cst_180 [0] : vector<64x128xf32> to vector<128xf32>
    %251 = vector.shape_cast %250 : vector<128xf32> to vector<1x128xf32>
    %252 = arith.addf %241, %251 : vector<1x128xf32>
    %c5_181 = arith.constant 5 : index
    %c64_182 = arith.constant 64 : index
    %c0_183 = arith.constant 0 : index
    %253 = vector.load %arg2[%c5_181, %c64_182, %c0_183] : memref<8x256x128xbf16, #tpu.memory_space<vmem>>, vector<1x64x128xbf16>
    %254 = vector.shape_cast %253 : vector<1x64x128xbf16> to vector<64x128xbf16>
    %c0_184 = arith.constant 0 : index
    %c0_185 = arith.constant 0 : index
    %255 = vector.load %arg3[%c0_184, %c0_185] : memref<128x128xbf16, #tpu.memory_space<vmem>>, vector<128x128xbf16>
    %cst_186 = arith.constant dense<0.000000e+00> : vector<64x128xf32>
    %256 = tpu.matmul %254, %255, %cst_186 {dimension_numbers = #tpu.dot_dimension_numbers<[1], [0], [0], [1], [0, 0, 1, 1], [], []>} : vector<64x128xbf16>, vector<128x128xbf16>, vector<64x128xf32> -> vector<64x128xf32>
    %257 = vector.broadcast %0 : vector<1x128xf32> to vector<64x128xf32>
    %258 = arith.addf %256, %257 : vector<64x128xf32>
    %cst_187 = arith.constant 0.000000e+00 : f32
    %259 = vector.broadcast %cst_187 : f32 to vector<64x128xf32>
    %260 = arith.maximumf %258, %259 : vector<64x128xf32>
    %cst_188 = arith.constant dense<0.000000e+00> : vector<128xf32>
    %261 = vector.multi_reduction <add>, %260, %cst_188 [0] : vector<64x128xf32> to vector<128xf32>
    %262 = vector.shape_cast %261 : vector<128xf32> to vector<1x128xf32>
    %263 = arith.addf %252, %262 : vector<1x128xf32>
    %c5_189 = arith.constant 5 : index
    %c128_190 = arith.constant 128 : index
    %c0_191 = arith.constant 0 : index
    %264 = vector.load %arg2[%c5_189, %c128_190, %c0_191] : memref<8x256x128xbf16, #tpu.memory_space<vmem>>, vector<1x64x128xbf16>
    %265 = vector.shape_cast %264 : vector<1x64x128xbf16> to vector<64x128xbf16>
    %c0_192 = arith.constant 0 : index
    %c0_193 = arith.constant 0 : index
    %266 = vector.load %arg3[%c0_192, %c0_193] : memref<128x128xbf16, #tpu.memory_space<vmem>>, vector<128x128xbf16>
    %cst_194 = arith.constant dense<0.000000e+00> : vector<64x128xf32>
    %267 = tpu.matmul %265, %266, %cst_194 {dimension_numbers = #tpu.dot_dimension_numbers<[1], [0], [0], [1], [0, 0, 1, 1], [], []>} : vector<64x128xbf16>, vector<128x128xbf16>, vector<64x128xf32> -> vector<64x128xf32>
    %268 = vector.broadcast %0 : vector<1x128xf32> to vector<64x128xf32>
    %269 = arith.addf %267, %268 : vector<64x128xf32>
    %cst_195 = arith.constant 0.000000e+00 : f32
    %270 = vector.broadcast %cst_195 : f32 to vector<64x128xf32>
    %271 = arith.maximumf %269, %270 : vector<64x128xf32>
    %cst_196 = arith.constant dense<0.000000e+00> : vector<128xf32>
    %272 = vector.multi_reduction <add>, %271, %cst_196 [0] : vector<64x128xf32> to vector<128xf32>
    %273 = vector.shape_cast %272 : vector<128xf32> to vector<1x128xf32>
    %274 = arith.addf %263, %273 : vector<1x128xf32>
    %c5_197 = arith.constant 5 : index
    %c192_198 = arith.constant 192 : index
    %c0_199 = arith.constant 0 : index
    %275 = vector.load %arg2[%c5_197, %c192_198, %c0_199] : memref<8x256x128xbf16, #tpu.memory_space<vmem>>, vector<1x64x128xbf16>
    %276 = vector.shape_cast %275 : vector<1x64x128xbf16> to vector<64x128xbf16>
    %c0_200 = arith.constant 0 : index
    %c0_201 = arith.constant 0 : index
    %277 = vector.load %arg3[%c0_200, %c0_201] : memref<128x128xbf16, #tpu.memory_space<vmem>>, vector<128x128xbf16>
    %cst_202 = arith.constant dense<0.000000e+00> : vector<64x128xf32>
    %278 = tpu.matmul %276, %277, %cst_202 {dimension_numbers = #tpu.dot_dimension_numbers<[1], [0], [0], [1], [0, 0, 1, 1], [], []>} : vector<64x128xbf16>, vector<128x128xbf16>, vector<64x128xf32> -> vector<64x128xf32>
    %279 = vector.broadcast %0 : vector<1x128xf32> to vector<64x128xf32>
    %280 = arith.addf %278, %279 : vector<64x128xf32>
    %cst_203 = arith.constant 0.000000e+00 : f32
    %281 = vector.broadcast %cst_203 : f32 to vector<64x128xf32>
    %282 = arith.maximumf %280, %281 : vector<64x128xf32>
    %cst_204 = arith.constant dense<0.000000e+00> : vector<128xf32>
    %283 = vector.multi_reduction <add>, %282, %cst_204 [0] : vector<64x128xf32> to vector<128xf32>
    %284 = vector.shape_cast %283 : vector<128xf32> to vector<1x128xf32>
    %285 = arith.addf %274, %284 : vector<1x128xf32>
    %cst_205 = arith.constant 3.906250e-03 : f32
    %286 = vector.broadcast %cst_205 : f32 to vector<1x128xf32>
    %287 = arith.mulf %285, %286 : vector<1x128xf32>
    %c5_206 = arith.constant 5 : index
    %c0_207 = arith.constant 0 : index
    %288 = vector.load %arg9[%c5_206, %c0_207] : memref<8x128xf32, #tpu.memory_space<vmem>>, vector<1x128xf32>
    tpu.vector_store %arg9[%c5_206, %c0_207], %287 {strides = array<i32>} : memref<8x128xf32, #tpu.memory_space<vmem>>, vector<1x128xf32>,
    %cst_208 = arith.constant 0.000000e+00 : f32
    %289 = vector.broadcast %cst_208 : f32 to vector<1x128xf32>
    %c6 = arith.constant 6 : index
    %c0_209 = arith.constant 0 : index
    %c0_210 = arith.constant 0 : index
    %290 = vector.load %arg2[%c6, %c0_209, %c0_210] : memref<8x256x128xbf16, #tpu.memory_space<vmem>>, vector<1x64x128xbf16>
    %291 = vector.shape_cast %290 : vector<1x64x128xbf16> to vector<64x128xbf16>
    %c0_211 = arith.constant 0 : index
    %c0_212 = arith.constant 0 : index
    %292 = vector.load %arg3[%c0_211, %c0_212] : memref<128x128xbf16, #tpu.memory_space<vmem>>, vector<128x128xbf16>
    %cst_213 = arith.constant dense<0.000000e+00> : vector<64x128xf32>
    %293 = tpu.matmul %291, %292, %cst_213 {dimension_numbers = #tpu.dot_dimension_numbers<[1], [0], [0], [1], [0, 0, 1, 1], [], []>} : vector<64x128xbf16>, vector<128x128xbf16>, vector<64x128xf32> -> vector<64x128xf32>
    %294 = vector.broadcast %0 : vector<1x128xf32> to vector<64x128xf32>
    %295 = arith.addf %293, %294 : vector<64x128xf32>
    %cst_214 = arith.constant 0.000000e+00 : f32
    %296 = vector.broadcast %cst_214 : f32 to vector<64x128xf32>
    %297 = arith.maximumf %295, %296 : vector<64x128xf32>
    %cst_215 = arith.constant dense<0.000000e+00> : vector<128xf32>
    %298 = vector.multi_reduction <add>, %297, %cst_215 [0] : vector<64x128xf32> to vector<128xf32>
    %299 = vector.shape_cast %298 : vector<128xf32> to vector<1x128xf32>
    %300 = arith.addf %289, %299 : vector<1x128xf32>
    %c6_216 = arith.constant 6 : index
    %c64_217 = arith.constant 64 : index
    %c0_218 = arith.constant 0 : index
    %301 = vector.load %arg2[%c6_216, %c64_217, %c0_218] : memref<8x256x128xbf16, #tpu.memory_space<vmem>>, vector<1x64x128xbf16>
    %302 = vector.shape_cast %301 : vector<1x64x128xbf16> to vector<64x128xbf16>
    %c0_219 = arith.constant 0 : index
    %c0_220 = arith.constant 0 : index
    %303 = vector.load %arg3[%c0_219, %c0_220] : memref<128x128xbf16, #tpu.memory_space<vmem>>, vector<128x128xbf16>
    %cst_221 = arith.constant dense<0.000000e+00> : vector<64x128xf32>
    %304 = tpu.matmul %302, %303, %cst_221 {dimension_numbers = #tpu.dot_dimension_numbers<[1], [0], [0], [1], [0, 0, 1, 1], [], []>} : vector<64x128xbf16>, vector<128x128xbf16>, vector<64x128xf32> -> vector<64x128xf32>
    %305 = vector.broadcast %0 : vector<1x128xf32> to vector<64x128xf32>
    %306 = arith.addf %304, %305 : vector<64x128xf32>
    %cst_222 = arith.constant 0.000000e+00 : f32
    %307 = vector.broadcast %cst_222 : f32 to vector<64x128xf32>
    %308 = arith.maximumf %306, %307 : vector<64x128xf32>
    %cst_223 = arith.constant dense<0.000000e+00> : vector<128xf32>
    %309 = vector.multi_reduction <add>, %308, %cst_223 [0] : vector<64x128xf32> to vector<128xf32>
    %310 = vector.shape_cast %309 : vector<128xf32> to vector<1x128xf32>
    %311 = arith.addf %300, %310 : vector<1x128xf32>
    %c6_224 = arith.constant 6 : index
    %c128_225 = arith.constant 128 : index
    %c0_226 = arith.constant 0 : index
    %312 = vector.load %arg2[%c6_224, %c128_225, %c0_226] : memref<8x256x128xbf16, #tpu.memory_space<vmem>>, vector<1x64x128xbf16>
    %313 = vector.shape_cast %312 : vector<1x64x128xbf16> to vector<64x128xbf16>
    %c0_227 = arith.constant 0 : index
    %c0_228 = arith.constant 0 : index
    %314 = vector.load %arg3[%c0_227, %c0_228] : memref<128x128xbf16, #tpu.memory_space<vmem>>, vector<128x128xbf16>
    %cst_229 = arith.constant dense<0.000000e+00> : vector<64x128xf32>
    %315 = tpu.matmul %313, %314, %cst_229 {dimension_numbers = #tpu.dot_dimension_numbers<[1], [0], [0], [1], [0, 0, 1, 1], [], []>} : vector<64x128xbf16>, vector<128x128xbf16>, vector<64x128xf32> -> vector<64x128xf32>
    %316 = vector.broadcast %0 : vector<1x128xf32> to vector<64x128xf32>
    %317 = arith.addf %315, %316 : vector<64x128xf32>
    %cst_230 = arith.constant 0.000000e+00 : f32
    %318 = vector.broadcast %cst_230 : f32 to vector<64x128xf32>
    %319 = arith.maximumf %317, %318 : vector<64x128xf32>
    %cst_231 = arith.constant dense<0.000000e+00> : vector<128xf32>
    %320 = vector.multi_reduction <add>, %319, %cst_231 [0] : vector<64x128xf32> to vector<128xf32>
    %321 = vector.shape_cast %320 : vector<128xf32> to vector<1x128xf32>
    %322 = arith.addf %311, %321 : vector<1x128xf32>
    %c6_232 = arith.constant 6 : index
    %c192_233 = arith.constant 192 : index
    %c0_234 = arith.constant 0 : index
    %323 = vector.load %arg2[%c6_232, %c192_233, %c0_234] : memref<8x256x128xbf16, #tpu.memory_space<vmem>>, vector<1x64x128xbf16>
    %324 = vector.shape_cast %323 : vector<1x64x128xbf16> to vector<64x128xbf16>
    %c0_235 = arith.constant 0 : index
    %c0_236 = arith.constant 0 : index
    %325 = vector.load %arg3[%c0_235, %c0_236] : memref<128x128xbf16, #tpu.memory_space<vmem>>, vector<128x128xbf16>
    %cst_237 = arith.constant dense<0.000000e+00> : vector<64x128xf32>
    %326 = tpu.matmul %324, %325, %cst_237 {dimension_numbers = #tpu.dot_dimension_numbers<[1], [0], [0], [1], [0, 0, 1, 1], [], []>} : vector<64x128xbf16>, vector<128x128xbf16>, vector<64x128xf32> -> vector<64x128xf32>
    %327 = vector.broadcast %0 : vector<1x128xf32> to vector<64x128xf32>
    %328 = arith.addf %326, %327 : vector<64x128xf32>
    %cst_238 = arith.constant 0.000000e+00 : f32
    %329 = vector.broadcast %cst_238 : f32 to vector<64x128xf32>
    %330 = arith.maximumf %328, %329 : vector<64x128xf32>
    %cst_239 = arith.constant dense<0.000000e+00> : vector<128xf32>
    %331 = vector.multi_reduction <add>, %330, %cst_239 [0] : vector<64x128xf32> to vector<128xf32>
    %332 = vector.shape_cast %331 : vector<128xf32> to vector<1x128xf32>
    %333 = arith.addf %322, %332 : vector<1x128xf32>
    %cst_240 = arith.constant 3.906250e-03 : f32
    %334 = vector.broadcast %cst_240 : f32 to vector<1x128xf32>
    %335 = arith.mulf %333, %334 : vector<1x128xf32>
    %c6_241 = arith.constant 6 : index
    %c0_242 = arith.constant 0 : index
    %336 = vector.load %arg9[%c6_241, %c0_242] : memref<8x128xf32, #tpu.memory_space<vmem>>, vector<1x128xf32>
    tpu.vector_store %arg9[%c6_241, %c0_242], %335 {strides = array<i32>} : memref<8x128xf32, #tpu.memory_space<vmem>>, vector<1x128xf32>,
    %cst_243 = arith.constant 0.000000e+00 : f32
    %337 = vector.broadcast %cst_243 : f32 to vector<1x128xf32>
    %c7 = arith.constant 7 : index
    %c0_244 = arith.constant 0 : index
    %c0_245 = arith.constant 0 : index
    %338 = vector.load %arg2[%c7, %c0_244, %c0_245] : memref<8x256x128xbf16, #tpu.memory_space<vmem>>, vector<1x64x128xbf16>
    %339 = vector.shape_cast %338 : vector<1x64x128xbf16> to vector<64x128xbf16>
    %c0_246 = arith.constant 0 : index
    %c0_247 = arith.constant 0 : index
    %340 = vector.load %arg3[%c0_246, %c0_247] : memref<128x128xbf16, #tpu.memory_space<vmem>>, vector<128x128xbf16>
    %cst_248 = arith.constant dense<0.000000e+00> : vector<64x128xf32>
    %341 = tpu.matmul %339, %340, %cst_248 {dimension_numbers = #tpu.dot_dimension_numbers<[1], [0], [0], [1], [0, 0, 1, 1], [], []>} : vector<64x128xbf16>, vector<128x128xbf16>, vector<64x128xf32> -> vector<64x128xf32>
    %342 = vector.broadcast %0 : vector<1x128xf32> to vector<64x128xf32>
    %343 = arith.addf %341, %342 : vector<64x128xf32>
    %cst_249 = arith.constant 0.000000e+00 : f32
    %344 = vector.broadcast %cst_249 : f32 to vector<64x128xf32>
    %345 = arith.maximumf %343, %344 : vector<64x128xf32>
    %cst_250 = arith.constant dense<0.000000e+00> : vector<128xf32>
    %346 = vector.multi_reduction <add>, %345, %cst_250 [0] : vector<64x128xf32> to vector<128xf32>
    %347 = vector.shape_cast %346 : vector<128xf32> to vector<1x128xf32>
    %348 = arith.addf %337, %347 : vector<1x128xf32>
    %c7_251 = arith.constant 7 : index
    %c64_252 = arith.constant 64 : index
    %c0_253 = arith.constant 0 : index
    %349 = vector.load %arg2[%c7_251, %c64_252, %c0_253] : memref<8x256x128xbf16, #tpu.memory_space<vmem>>, vector<1x64x128xbf16>
    %350 = vector.shape_cast %349 : vector<1x64x128xbf16> to vector<64x128xbf16>
    %c0_254 = arith.constant 0 : index
    %c0_255 = arith.constant 0 : index
    %351 = vector.load %arg3[%c0_254, %c0_255] : memref<128x128xbf16, #tpu.memory_space<vmem>>, vector<128x128xbf16>
    %cst_256 = arith.constant dense<0.000000e+00> : vector<64x128xf32>
    %352 = tpu.matmul %350, %351, %cst_256 {dimension_numbers = #tpu.dot_dimension_numbers<[1], [0], [0], [1], [0, 0, 1, 1], [], []>} : vector<64x128xbf16>, vector<128x128xbf16>, vector<64x128xf32> -> vector<64x128xf32>
    %353 = vector.broadcast %0 : vector<1x128xf32> to vector<64x128xf32>
    %354 = arith.addf %352, %353 : vector<64x128xf32>
    %cst_257 = arith.constant 0.000000e+00 : f32
    %355 = vector.broadcast %cst_257 : f32 to vector<64x128xf32>
    %356 = arith.maximumf %354, %355 : vector<64x128xf32>
    %cst_258 = arith.constant dense<0.000000e+00> : vector<128xf32>
    %357 = vector.multi_reduction <add>, %356, %cst_258 [0] : vector<64x128xf32> to vector<128xf32>
    %358 = vector.shape_cast %357 : vector<128xf32> to vector<1x128xf32>
    %359 = arith.addf %348, %358 : vector<1x128xf32>
    %c7_259 = arith.constant 7 : index
    %c128_260 = arith.constant 128 : index
    %c0_261 = arith.constant 0 : index
    %360 = vector.load %arg2[%c7_259, %c128_260, %c0_261] : memref<8x256x128xbf16, #tpu.memory_space<vmem>>, vector<1x64x128xbf16>
    %361 = vector.shape_cast %360 : vector<1x64x128xbf16> to vector<64x128xbf16>
    %c0_262 = arith.constant 0 : index
    %c0_263 = arith.constant 0 : index
    %362 = vector.load %arg3[%c0_262, %c0_263] : memref<128x128xbf16, #tpu.memory_space<vmem>>, vector<128x128xbf16>
    %cst_264 = arith.constant dense<0.000000e+00> : vector<64x128xf32>
    %363 = tpu.matmul %361, %362, %cst_264 {dimension_numbers = #tpu.dot_dimension_numbers<[1], [0], [0], [1], [0, 0, 1, 1], [], []>} : vector<64x128xbf16>, vector<128x128xbf16>, vector<64x128xf32> -> vector<64x128xf32>
    %364 = vector.broadcast %0 : vector<1x128xf32> to vector<64x128xf32>
    %365 = arith.addf %363, %364 : vector<64x128xf32>
    %cst_265 = arith.constant 0.000000e+00 : f32
    %366 = vector.broadcast %cst_265 : f32 to vector<64x128xf32>
    %367 = arith.maximumf %365, %366 : vector<64x128xf32>
    %cst_266 = arith.constant dense<0.000000e+00> : vector<128xf32>
    %368 = vector.multi_reduction <add>, %367, %cst_266 [0] : vector<64x128xf32> to vector<128xf32>
    %369 = vector.shape_cast %368 : vector<128xf32> to vector<1x128xf32>
    %370 = arith.addf %359, %369 : vector<1x128xf32>
    %c7_267 = arith.constant 7 : index
    %c192_268 = arith.constant 192 : index
    %c0_269 = arith.constant 0 : index
    %371 = vector.load %arg2[%c7_267, %c192_268, %c0_269] : memref<8x256x128xbf16, #tpu.memory_space<vmem>>, vector<1x64x128xbf16>
    %372 = vector.shape_cast %371 : vector<1x64x128xbf16> to vector<64x128xbf16>
    %c0_270 = arith.constant 0 : index
    %c0_271 = arith.constant 0 : index
    %373 = vector.load %arg3[%c0_270, %c0_271] : memref<128x128xbf16, #tpu.memory_space<vmem>>, vector<128x128xbf16>
    %cst_272 = arith.constant dense<0.000000e+00> : vector<64x128xf32>
    %374 = tpu.matmul %372, %373, %cst_272 {dimension_numbers = #tpu.dot_dimension_numbers<[1], [0], [0], [1], [0, 0, 1, 1], [], []>} : vector<64x128xbf16>, vector<128x128xbf16>, vector<64x128xf32> -> vector<64x128xf32>
    %375 = vector.broadcast %0 : vector<1x128xf32> to vector<64x128xf32>
    %376 = arith.addf %374, %375 : vector<64x128xf32>
    %cst_273 = arith.constant 0.000000e+00 : f32
    %377 = vector.broadcast %cst_273 : f32 to vector<64x128xf32>
    %378 = arith.maximumf %376, %377 : vector<64x128xf32>
    %cst_274 = arith.constant dense<0.000000e+00> : vector<128xf32>
    %379 = vector.multi_reduction <add>, %378, %cst_274 [0] : vector<64x128xf32> to vector<128xf32>
    %380 = vector.shape_cast %379 : vector<128xf32> to vector<1x128xf32>
    %381 = arith.addf %370, %380 : vector<1x128xf32>
    %cst_275 = arith.constant 3.906250e-03 : f32
    %382 = vector.broadcast %cst_275 : f32 to vector<1x128xf32>
    %383 = arith.mulf %381, %382 : vector<1x128xf32>
    %c7_276 = arith.constant 7 : index
    %c0_277 = arith.constant 0 : index
    %384 = vector.load %arg9[%c7_276, %c0_277] : memref<8x128xf32, #tpu.memory_space<vmem>>, vector<1x128xf32>
    tpu.vector_store %arg9[%c7_276, %c0_277], %383 {strides = array<i32>} : memref<8x128xf32, #tpu.memory_space<vmem>>, vector<1x128xf32>,
    %c0_278 = arith.constant 0 : index
    %c0_279 = arith.constant 0 : index
    %385 = vector.load %arg9[%c0_278, %c0_279] : memref<8x128xf32, #tpu.memory_space<vmem>>, vector<8x128xf32>
    %386 = arith.truncf %385 : vector<8x128xf32> to vector<8x128xbf16>
    %c0_280 = arith.constant 0 : index
    %c0_281 = arith.constant 0 : index
    %387 = vector.load %arg5[%c0_280, %c0_281] : memref<128x128xbf16, #tpu.memory_space<vmem>>, vector<128x128xbf16>
    %cst_282 = arith.constant dense<0.000000e+00> : vector<8x128xf32>
    %388 = tpu.matmul %386, %387, %cst_282 {dimension_numbers = #tpu.dot_dimension_numbers<[1], [0], [0], [1], [0, 0, 1, 1], [], []>} : vector<8x128xbf16>, vector<128x128xbf16>, vector<8x128xf32> -> vector<8x128xf32>
    %c0_283 = arith.constant 0 : index
    %c0_284 = arith.constant 0 : index
    %389 = vector.load %arg6[%c0_283, %c0_284] : memref<1x128xf32, #tpu.memory_space<vmem>>, vector<1x128xf32>
    %390 = vector.broadcast %389 : vector<1x128xf32> to vector<8x128xf32>
    %391 = arith.addf %388, %390 : vector<8x128xf32>
    %392 = arith.mulf %391, %391 : vector<8x128xf32>
    %cst_285 = arith.constant dense<0.000000e+00> : vector<8xf32>
    %393 = vector.multi_reduction <add>, %392, %cst_285 [1] : vector<8x128xf32> to vector<8xf32>
    %394 = vector.shape_cast %393 : vector<8xf32> to vector<8x1xf32>
    %cst_286 = arith.constant 1.000000e-24 : f32
    %395 = vector.broadcast %cst_286 : f32 to vector<8x1xf32>
    %396 = arith.maximumf %394, %395 : vector<8x1xf32>
    %397 = math.rsqrt %396 : vector<8x1xf32>
    %398 = vector.broadcast %397 : vector<8x1xf32> to vector<8x128xf32>
    %399 = arith.mulf %391, %398 : vector<8x128xf32>
    %400 = arith.truncf %399 : vector<8x128xf32> to vector<8x128xbf16>
    %c0_287 = arith.constant 0 : index
    %c0_288 = arith.constant 0 : index
    %401 = vector.load %arg7[%c0_287, %c0_288] : memref<128x128xbf16, #tpu.memory_space<vmem>>, vector<128x128xbf16>
    %cst_289 = arith.constant dense<0.000000e+00> : vector<8x128xf32>
    %402 = tpu.matmul %400, %401, %cst_289 {dimension_numbers = #tpu.dot_dimension_numbers<[1], [0], [0], [1], [0, 0, 1, 1], [], []>} : vector<8x128xbf16>, vector<128x128xbf16>, vector<8x128xf32> -> vector<8x128xf32>
    %403 = arith.mulf %402, %402 : vector<8x128xf32>
    %cst_290 = arith.constant 1.000000e+00 : f32
    %404 = vector.broadcast %cst_290 : f32 to vector<8x128xf32>
    %405 = arith.subf %404, %403 : vector<8x128xf32>
    %cst_291 = arith.constant 0.000000e+00 : f32
    %cst_292 = arith.constant 1.000000e+00 : f32
    %406 = vector.broadcast %cst_291 : f32 to vector<8x128xf32>
    %407 = arith.maximumf %406, %405 : vector<8x128xf32>
    %408 = vector.broadcast %cst_292 : f32 to vector<8x128xf32>
    %409 = arith.minimumf %408, %407 : vector<8x128xf32>
    %410 = math.sqrt %409 : vector<8x128xf32>
    %cst_293 = arith.constant 0.87758255 : f32
    %411 = vector.broadcast %cst_293 : f32 to vector<8x128xf32>
    %412 = arith.mulf %402, %411 : vector<8x128xf32>
    %cst_294 = arith.constant 0.47942555 : f32
    %413 = vector.broadcast %cst_294 : f32 to vector<8x128xf32>
    %414 = arith.mulf %410, %413 : vector<8x128xf32>
    %415 = arith.subf %412, %414 : vector<8x128xf32>
    %cst_295 = arith.constant -0.87758255 : f32
    %416 = vector.broadcast %cst_295 : f32 to vector<8x128xf32>
    %417 = arith.cmpf ogt, %402, %416 : vector<8x128xf32>
    %cst_296 = arith.constant 0.239712775 : f32
    %418 = vector.broadcast %cst_296 : f32 to vector<8x128xf32>
    %419 = arith.subf %402, %418 : vector<8x128xf32>
    %420 = arith.select %417, %415, %419 : vector<8x128xi1>, vector<8x128xf32>
    %c0_297 = arith.constant 0 : index
    %c0_298 = arith.constant 0 : index
    %421 = vector.load %arg1[%c0_297, %c0_298] : memref<8x1xi32, #tpu.memory_space<vmem>>, vector<8x1xi32>
    %422 = tpu.iota {dimensions = array<i32: 1>} : vector<8x128xi32>
    %423 = vector.broadcast %421 : vector<8x1xi32> to vector<8x128xi32>
    %424 = arith.cmpi eq, %422, %423 : vector<8x128xi32>
    %425 = arith.extui %424 : vector<8x128xi1> to vector<8x128xi32>
    %426 = arith.sitofp %425 : vector<8x128xi32> to vector<8x128xf32>
    %427 = arith.mulf %426, %420 : vector<8x128xf32>
    %cst_299 = arith.constant 1.000000e+00 : f32
    %428 = vector.broadcast %cst_299 : f32 to vector<8x128xf32>
    %429 = arith.subf %428, %426 : vector<8x128xf32>
    %430 = arith.mulf %429, %402 : vector<8x128xf32>
    %431 = arith.addf %427, %430 : vector<8x128xf32>
    %cst_300 = arith.constant 3.000000e+01 : f32
    %432 = vector.broadcast %cst_300 : f32 to vector<8x128xf32>
    %433 = arith.mulf %431, %432 : vector<8x128xf32>
    %c0_301 = arith.constant 0 : index
    %c0_302 = arith.constant 0 : index
    %434 = vector.load %arg8[%c0_301, %c0_302] : memref<8x128xf32, #tpu.memory_space<vmem>>, vector<8x128xf32>
    tpu.vector_store %arg8[%c0_301, %c0_302], %433 {strides = array<i32>} : memref<8x128xf32, #tpu.memory_space<vmem>>, vector<8x128xf32>,
    return
  }
  func.func @transform_0(%arg0: i32) -> (i32, i32) {
    %c0_i32 = arith.constant 0 : i32
    %c0_i32_0 = arith.constant 0 : i32
    return %arg0, %c0_i32 : i32, i32
  }
  func.func @transform_1(%arg0: i32) -> (i32, i32, i32) {
    %c0_i32 = arith.constant 0 : i32
    %c0_i32_0 = arith.constant 0 : i32
    %c0_i32_1 = arith.constant 0 : i32
    return %arg0, %c0_i32, %c0_i32_0 : i32, i32, i32
  }
  func.func @transform_2(%arg0: i32) -> (i32, i32) {
    %c0_i32 = arith.constant 0 : i32
    %c0_i32_0 = arith.constant 0 : i32
    %c0_i32_1 = arith.constant 0 : i32
    return %c0_i32, %c0_i32_0 : i32, i32
  }
  func.func @transform_3(%arg0: i32) -> (i32, i32) {
    %c0_i32 = arith.constant 0 : i32
    %c0_i32_0 = arith.constant 0 : i32
    %c0_i32_1 = arith.constant 0 : i32
    return %c0_i32, %c0_i32_0 : i32, i32
  }
  func.func @transform_4(%arg0: i32) -> (i32, i32) {
    %c0_i32 = arith.constant 0 : i32
    %c0_i32_0 = arith.constant 0 : i32
    %c0_i32_1 = arith.constant 0 : i32
    return %c0_i32, %c0_i32_0 : i32, i32
  }
  func.func @transform_5(%arg0: i32) -> (i32, i32) {
    %c0_i32 = arith.constant 0 : i32
    %c0_i32_0 = arith.constant 0 : i32
    %c0_i32_1 = arith.constant 0 : i32
    return %c0_i32, %c0_i32_0 : i32, i32
  }
  func.func @transform_6(%arg0: i32) -> (i32, i32) {
    %c0_i32 = arith.constant 0 : i32
    %c0_i32_0 = arith.constant 0 : i32
    %c0_i32_1 = arith.constant 0 : i32
    return %c0_i32, %c0_i32_0 : i32, i32
  }
  func.func @transform_7(%arg0: i32) -> (i32, i32) {
    %c0_i32 = arith.constant 0 : i32
    %c0_i32_0 = arith.constant 0 : i32
    return %arg0, %c0_i32 : i32, i32
  }
}

</mosaic_0001>

<llo_original>
// kernel: tpu_custom_call.1
$region0: #{tpu_custom_call.1}
  #allocation0 [shape = 'u32[]', space=smem, size = 0x4, offset = 0x4, fixed_abs, tag = 'smem constant byte address 0x4 - core index']
  #allocation1 [shape = 'u32[72,128]{1,0:T(1,128)}', space=vmem, size = 0x9000, scoped, tag = 'internal scratch']
  #allocation2 [shape = 'f32[8,128]{1,0:T(8,128)}', space=vmem, size = 0x1000, scoped, tag = 'scratch operand']
  %s0 = inlined_call_operand.vmem [shape: s32[8,1], index: 0, kind: input, shape index: {}]
  %s1 = inlined_call_operand.hbm [shape: bf16[8,256,128], index: 1, kind: input, shape index: {}]
  %s2 = inlined_call_operand.hbm [shape: bf16[128,128], index: 2, kind: input, shape index: {}]
  %s3 = inlined_call_operand.vmem [shape: f32[1,128], index: 3, kind: input, shape index: {}]
  %s4 = inlined_call_operand.hbm [shape: bf16[128,128], index: 4, kind: input, shape index: {}]
  %s5 = inlined_call_operand.vmem [shape: f32[1,128], index: 5, kind: input, shape index: {}]
  %s6 = inlined_call_operand.hbm [shape: bf16[128,128], index: 6, kind: input, shape index: {}]
  %s7 = inlined_call_operand.hbm [shape: f32[8,128], index: 7, kind: output, shape index: {}]
  %s8 = sld [smem:[#allocation0]]
  $region54: #{tpu_custom_call.1} parent=0
    _
  %s10 = ssub.s32 1, %s8
  %s11 = scalar_select 0, %s10, %s8
  $region1: #{tpu_custom_call.1} parent=0
    #allocation3 [shape = 'u8[524288]{0}', space=vmem, size = 0x80000, scoped, tag = 'input window, operand 1, single buffered']
    #allocation4 [shape = 's32[1]{0}', space=sflag, size = 0x4, scoped, tag = 'scoped memory for tpu_custom_call.1']
    #allocation5 [shape = 's32[1]{0}', space=sflag, size = 0x4, scoped, tag = 'scoped memory for tpu_custom_call.1']
    #allocation6 [shape = 'u8[32768]{0}', space=vmem, size = 0x8000, scoped, tag = 'input window, operand 2, single buffered']
    #allocation7 [shape = 's32[1]{0}', space=sflag, size = 0x4, scoped, tag = 'scoped memory for tpu_custom_call.1']
    #allocation8 [shape = 'u8[32768]{0}', space=vmem, size = 0x8000, scoped, tag = 'input window, operand 4, single buffered']
    #allocation9 [shape = 'u8[32768]{0}', space=vmem, size = 0x8000, scoped, tag = 'input window, operand 6, single buffered']
    #allocation10 [shape = 's32[1]{0}', space=sflag, size = 0x4, scoped, tag = 'scoped memory for tpu_custom_call.1']
    #allocation11 [shape = 'u8[4096]{0}', space=vmem, size = 0x1000, scoped, tag = 'output window, operand 0, single buffered']
    %12 = vsyncpa [#allocation4], 0
    %13 = vsyncpa [#allocation7], 0
    %14 = vsyncpa [#allocation10], 0
    %15 = vsyncpa [#allocation5], 0
    // Predicated region
    $region2: #{tpu_custom_call.1} parent=1 // pred_check
      _
    $region3: #{tpu_custom_call.1} parent=1 // pred_check_branch
      %17 = sbr.rel (0) target = $region5
    $region4: #{tpu_custom_call.1} parent=1 // pred_region
      _
    $region5: #{tpu_custom_call.1} parent=1 // pred_fallthru
      _
    // Predicated region
    $region6: #{tpu_custom_call.1} parent=1 // pred_check
      _
    $region7: #{tpu_custom_call.1} parent=1 // pred_check_branch
      %19 = sbr.rel (0) target = $region9
    $region8: #{tpu_custom_call.1} parent=1 // pred_region
      %21 = vsyncadd [#allocation4], 0
      %s22 = sshll.u32 %s1, 4
      %s23 = int_to_ptr.hbm [resolvable:$true] %s22
      %s24 = sshll.u32 [#allocation3], 4
      %s25 = int_to_ptr.vmem [resolvable:$true] %s24
      %30 = dma.hbm_to_vmem [thread:$0]  %s23, 16384, %s25, [#allocation4], 64, 64, 4
    $region9: #{tpu_custom_call.1} parent=1 // pred_fallthru
      _
    // Predicated region
    $region10: #{tpu_custom_call.1} parent=1 // pred_check
      _
    $region11: #{tpu_custom_call.1} parent=1 // pred_check_branch
      %32 = sbr.rel (0) target = $region13
    $region12: #{tpu_custom_call.1} parent=1 // pred_region
      %34 = vsyncadd [#allocation7], 0
      %s35 = sshll.u32 %s2, 4
      %s36 = int_to_ptr.hbm [resolvable:$true] %s35
      %s37 = sshll.u32 [#allocation6], 4
      %s38 = int_to_ptr.vmem [resolvable:$true] %s37
      %43 = dma.hbm_to_vmem [thread:$0]  %s36, 1024, %s38, [#allocation7], 64, 64, 4
    $region13: #{tpu_custom_call.1} parent=1 // pred_fallthru
      _
    // Predicated region
    $region14: #{tpu_custom_call.1} parent=1 // pred_check
      _
    $region15: #{tpu_custom_call.1} parent=1 // pred_check_branch
      %45 = sbr.rel (0) target = $region17
    $region16: #{tpu_custom_call.1} parent=1 // pred_region
      _
    $region17: #{tpu_custom_call.1} parent=1 // pred_fallthru
      _
    // Predicated region
    $region18: #{tpu_custom_call.1} parent=1 // pred_check
      _
    $region19: #{tpu_custom_call.1} parent=1 // pred_check_branch
      %47 = sbr.rel (0) target = $region21
    $region20: #{tpu_custom_call.1} parent=1 // pred_region
      %49 = vsyncadd [#allocation7], 0
      %s50 = sshll.u32 %s4, 4
      %s51 = int_to_ptr.hbm [resolvable:$true] %s50
      %s52 = sshll.u32 [#allocation8], 4
      %s53 = int_to_ptr.vmem [resolvable:$true] %s52
      %58 = dma.hbm_to_vmem [thread:$0]  %s51, 1024, %s53, [#allocation7], 64, 64, 4
    $region21: #{tpu_custom_call.1} parent=1 // pred_fallthru
      _
    // Predicated region
    $region22: #{tpu_custom_call.1} parent=1 // pred_check
      _
    $region23: #{tpu_custom_call.1} parent=1 // pred_check_branch
      %60 = sbr.rel (0) target = $region25
    $region24: #{tpu_custom_call.1} parent=1 // pred_region
      _
    $region25: #{tpu_custom_call.1} parent=1 // pred_fallthru
      _
    // Predicated region
    $region26: #{tpu_custom_call.1} parent=1 // pred_check
      _
    $region27: #{tpu_custom_call.1} parent=1 // pred_check_branch
      %62 = sbr.rel (0) target = $region29
    $region28: #{tpu_custom_call.1} parent=1 // pred_region
      %64 = vsyncadd [#allocation10], 0
      %s65 = sshll.u32 %s6, 4
      %s66 = int_to_ptr.hbm [resolvable:$true] %s65
      %s67 = sshll.u32 [#allocation9], 4
      %s68 = int_to_ptr.vmem [resolvable:$true] %s67
      %73 = dma.hbm_to_vmem [thread:$0]  %s66, 1024, %s68, [#allocation10], 64, 64, 4
    $region29: #{tpu_custom_call.1} parent=1 // pred_fallthru
      _
    // Predicated region
    $region30: #{tpu_custom_call.1} parent=1 // pred_check
      _
    $region31: #{tpu_custom_call.1} parent=1 // pred_check_branch
      %75 = sbr.rel (0) target = $region33
    $region32: #{tpu_custom_call.1} parent=1 // pred_region
      %77 = dma.done [#allocation4], 16384
    $region33: #{tpu_custom_call.1} parent=1 // pred_fallthru
      _
    // Predicated region
    $region34: #{tpu_custom_call.1} parent=1 // pred_check
      _
    $region35: #{tpu_custom_call.1} parent=1 // pred_check_branch
      %79 = sbr.rel (0) target = $region37
    $region36: #{tpu_custom_call.1} parent=1 // pred_region
      %81 = dma.done [#allocation7], 1024
    $region37: #{tpu_custom_call.1} parent=1 // pred_fallthru
      _
    // Predicated region
    $region38: #{tpu_custom_call.1} parent=1 // pred_check
      _
    $region39: #{tpu_custom_call.1} parent=1 // pred_check_branch
      %83 = sbr.rel (0) target = $region41
    $region40: #{tpu_custom_call.1} parent=1 // pred_region
      %85 = dma.done [#allocation7], 1024
    $region41: #{tpu_custom_call.1} parent=1 // pred_fallthru
      _
    // Predicated region
    $region42: #{tpu_custom_call.1} parent=1 // pred_check
      _
    $region43: #{tpu_custom_call.1} parent=1 // pred_check_branch
      %87 = sbr.rel (0) target = $region45
    $region44: #{tpu_custom_call.1} parent=1 // pred_region
      %89 = dma.done [#allocation10], 1024
    $region45: #{tpu_custom_call.1} parent=1 // pred_fallthru
      _
    %v90 = vld [vmem:[%s3] sm:$0x1]
    %v91 = vld [vmem:[#allocation3] sm:$0xf]
    %v92 = vld [vmem:[#allocation3 + $0x4] sm:$0xf]
    %v93 = vld [vmem:[#allocation3 + $0x8] sm:$0xf]
    %v94 = vld [vmem:[#allocation3 + $0xc] sm:$0xf]
    %v95 = vld [vmem:[#allocation3 + $0x10] sm:$0xf]
    %v96 = vld [vmem:[#allocation3 + $0x14] sm:$0xf]
    %v97 = vld [vmem:[#allocation3 + $0x18] sm:$0xf]
    %v98 = vld [vmem:[#allocation3 + $0x1c] sm:$0xf]
    %v99 = vld [vmem:[#allocation6] sm:$0xf]
    %v100 = vld [vmem:[#allocation6 + $0x4] sm:$0xf]
    %v101 = vld [vmem:[#allocation6 + $0x8] sm:$0xf]
    %v102 = vld [vmem:[#allocation6 + $0xc] sm:$0xf]
    %v103 = vld [vmem:[#allocation6 + $0x10] sm:$0xf]
    %v104 = vld [vmem:[#allocation6 + $0x14] sm:$0xf]
    %v105 = vld [vmem:[#allocation6 + $0x18] sm:$0xf]
    %v106 = vld [vmem:[#allocation6 + $0x1c] sm:$0xf]
    %v107 = vld [vmem:[#allocation6 + $0x20] sm:$0xf]
    %v108 = vld [vmem:[#allocation6 + $0x24] sm:$0xf]
    %v109 = vld [vmem:[#allocation6 + $0x28] sm:$0xf]
    %v110 = vld [vmem:[#allocation6 + $0x2c] sm:$0xf]
    %v111 = vld [vmem:[#allocation6 + $0x30] sm:$0xf]
    %v112 = vld [vmem:[#allocation6 + $0x34] sm:$0xf]
    %v113 = vld [vmem:[#allocation6 + $0x38] sm:$0xf]
    %v114 = vld [vmem:[#allocation6 + $0x3c] sm:$0xf]
    %v116 = vperm.slane %v90, 0
    %v126 = vunpack.c.l.b16 %v91
    %v127 = vunpack.c.l.b16 %v92
    %v128 = vunpack.c.l.b16 %v93
    %v129 = vunpack.c.l.b16 %v94
    %v130 = vunpack.c.l.b16 %v95
    %v131 = vunpack.c.l.b16 %v96
    %v132 = vunpack.c.l.b16 %v97
    %v133 = vunpack.c.l.b16 %v98
    %v134 = vpack.c.b16 %v127, %v126
    %v135 = vpack.c.b16 %v129, %v128
    %v136 = vpack.c.b16 %v131, %v130
    %v137 = vpack.c.b16 %v133, %v132
    %v158 = vunpack.c.l.b16 %v99
    %v159 = vunpack.c.l.b16 %v100
    %v160 = vunpack.c.l.b16 %v101
    %v161 = vunpack.c.l.b16 %v102
    %v162 = vunpack.c.l.b16 %v103
    %v163 = vunpack.c.l.b16 %v104
    %v164 = vunpack.c.l.b16 %v105
    %v165 = vunpack.c.l.b16 %v106
    %v166 = vunpack.c.l.b16 %v107
    %v167 = vunpack.c.l.b16 %v108
    %v168 = vunpack.c.l.b16 %v109
    %v169 = vunpack.c.l.b16 %v110
    %v170 = vunpack.c.l.b16 %v111
    %v171 = vunpack.c.l.b16 %v112
    %v172 = vunpack.c.l.b16 %v113
    %v173 = vunpack.c.l.b16 %v114
    %v174 = vpack.c.b16 %v159, %v158
    %v175 = vpack.c.b16 %v161, %v160
    %v176 = vpack.c.b16 %v163, %v162
    %v177 = vpack.c.b16 %v165, %v164
    %v178 = vpack.c.b16 %v167, %v166
    %v179 = vpack.c.b16 %v169, %v168
    %v180 = vpack.c.b16 %v171, %v170
    %v181 = vpack.c.b16 %v173, %v172
    %190 = vmatpush.bf16.msra.mxu0 %v181
    %191 = vmatpush.bf16.msra.mxu0 %v180
    %192 = vmatpush.bf16.msra.mxu0 %v179
    %193 = vmatpush.bf16.msra.mxu0 %v178
    %194 = vmatpush.bf16.msra.mxu0 %v177
    %195 = vmatpush.bf16.msra.mxu0 %v176
    %196 = vmatpush.bf16.msra.mxu0 %v175
    %197 = vmatpush.bf16.msra.mxu0 %v174
    %198 = vmatmul.bf16.gmra.mxu0 %v134
    %v199 = vpop.f32.mrf.mxu0
    %v200 = vadd.f32 %v116, %v199
    %v201 = vpop.f32.mrf.mxu0
    %v202 = vadd.f32 %v116, %v201
    %203 = vmatmul.bf16.gmra.mxu0 %v135
    %v204 = vpop.f32.mrf.mxu0
    %v205 = vadd.f32 %v116, %v204
    %v206 = vpop.f32.mrf.mxu0
    %v207 = vadd.f32 %v116, %v206
    %208 = vmatmul.bf16.gmra.mxu0 %v136
    %v209 = vpop.f32.mrf.mxu0
    %v210 = vadd.f32 %v116, %v209
    %v211 = vpop.f32.mrf.mxu0
    %v212 = vadd.f32 %v116, %v211
    %213 = vmatmul.bf16.gmra.mxu0 %v137
    %v214 = vpop.f32.mrf.mxu0
    %v215 = vadd.f32 %v116, %v214
    %v216 = vpop.f32.mrf.mxu0
    %v217 = vadd.f32 %v116, %v216
    %218 = vdwg.mxu0
    %v219 = vmax.f32 %v200, 0.0
    %v220 = vmax.f32 %v202, 0.0
    %v221 = vmax.f32 %v205, 0.0
    %v222 = vmax.f32 %v207, 0.0
    %v223 = vmax.f32 %v210, 0.0
    %v224 = vmax.f32 %v212, 0.0
    %v225 = vmax.f32 %v215, 0.0
    %v226 = vmax.f32 %v217, 0.0
    %v227 = vadd.f32 %v219, %v220
    %v228 = vadd.f32 %v227, %v221
    %v229 = vadd.f32 %v228, %v222
    %v230 = vadd.f32 %v229, %v223
    %v231 = vadd.f32 %v230, %v224
    %v232 = vadd.f32 %v231, %v225
    %v233 = vadd.f32 %v232, %v226
    %v234 = vrot.slane %v233, 4
    %v235 = vadd.f32 %v233, %v234
    %v236 = vrot.slane %v235, 2
    %v237 = vadd.f32 %v235, %v236
    %v238 = vrot.slane %v237, 1
    %v239 = vadd.f32 %v237, %v238
    %v240 = vadd.f32 %v239, 0.0
    %v241 = vld [vmem:[#allocation3 + $0x20] sm:$0xf]
    %v242 = vld [vmem:[#allocation3 + $0x24] sm:$0xf]
    %v243 = vld [vmem:[#allocation3 + $0x28] sm:$0xf]
    %v244 = vld [vmem:[#allocation3 + $0x2c] sm:$0xf]
    %v245 = vld [vmem:[#allocation3 + $0x30] sm:$0xf]
    %v246 = vld [vmem:[#allocation3 + $0x34] sm:$0xf]
    %v247 = vld [vmem:[#allocation3 + $0x38] sm:$0xf]
    %v248 = vld [vmem:[#allocation3 + $0x3c] sm:$0xf]
    %v257 = vunpack.c.l.b16 %v241
    %v258 = vunpack.c.l.b16 %v242
    %v259 = vunpack.c.l.b16 %v243
    %v260 = vunpack.c.l.b16 %v244
    %v261 = vunpack.c.l.b16 %v245
    %v262 = vunpack.c.l.b16 %v246
    %v263 = vunpack.c.l.b16 %v247
    %v264 = vunpack.c.l.b16 %v248
    %v265 = vpack.c.b16 %v258, %v257
    %v266 = vpack.c.b16 %v260, %v259
    %v267 = vpack.c.b16 %v262, %v261
    %v268 = vpack.c.b16 %v264, %v263
    %273 = vmatpush.bf16.msra.mxu0 %v181
    %274 = vmatpush.bf16.msra.mxu0 %v180
    %275 = vmatpush.bf16.msra.mxu0 %v179
    %276 = vmatpush.bf16.msra.mxu0 %v178
    %277 = vmatpush.bf16.msra.mxu0 %v177
    %278 = vmatpush.bf16.msra.mxu0 %v176
    %279 = vmatpush.bf16.msra.mxu0 %v175
    %280 = vmatpush.bf16.msra.mxu0 %v174
    %281 = vmatmul.bf16.gmra.mxu0 %v265
    %v282 = vpop.f32.mrf.mxu0
    %v283 = vadd.f32 %v116, %v282
    %v284 = vpop.f32.mrf.mxu0
    %v285 = vadd.f32 %v116, %v284
    %286 = vmatmul.bf16.gmra.mxu0 %v266
    %v287 = vpop.f32.mrf.mxu0
    %v288 = vadd.f32 %v116, %v287
    %v289 = vpop.f32.mrf.mxu0
    %v290 = vadd.f32 %v116, %v289
    %291 = vmatmul.bf16.gmra.mxu0 %v267
    %v292 = vpop.f32.mrf.mxu0
    %v293 = vadd.f32 %v116, %v292
    %v294 = vpop.f32.mrf.mxu0
    %v295 = vadd.f32 %v116, %v294
    %296 = vmatmul.bf16.gmra.mxu0 %v268
    %v297 = vpop.f32.mrf.mxu0
    %v298 = vadd.f32 %v116, %v297
    %v299 = vpop.f32.mrf.mxu0
    %v300 = vadd.f32 %v116, %v299
    %301 = vdwg.mxu0
    %v302 = vmax.f32 %v283, 0.0
    %v303 = vmax.f32 %v285, 0.0
    %v304 = vmax.f32 %v288, 0.0
    %v305 = vmax.f32 %v290, 0.0
    %v306 = vmax.f32 %v293, 0.0
    %v307 = vmax.f32 %v295, 0.0
    %v308 = vmax.f32 %v298, 0.0
    %v309 = vmax.f32 %v300, 0.0
    %v310 = vadd.f32 %v302, %v303
    %v311 = vadd.f32 %v310, %v304
    %v312 = vadd.f32 %v311, %v305
    %v313 = vadd.f32 %v312, %v306
    %v314 = vadd.f32 %v313, %v307
    %v315 = vadd.f32 %v314, %v308
    %v316 = vadd.f32 %v315, %v309
    %v317 = vrot.slane %v316, 4
    %v318 = vadd.f32 %v316, %v317
    %v319 = vrot.slane %v318, 2
    %v320 = vadd.f32 %v318, %v319
    %v321 = vrot.slane %v320, 1
    %v322 = vadd.f32 %v320, %v321
    %v323 = vadd.f32 %v240, %v322
    %v324 = vld [vmem:[#allocation3 + $0x40] sm:$0xf]
    %v325 = vld [vmem:[#allocation3 + $0x44] sm:$0xf]
    %v326 = vld [vmem:[#allocation3 + $0x48] sm:$0xf]
    %v327 = vld [vmem:[#allocation3 + $0x4c] sm:$0xf]
    %v328 = vld [vmem:[#allocation3 + $0x50] sm:$0xf]
    %v329 = vld [vmem:[#allocation3 + $0x54] sm:$0xf]
    %v330 = vld [vmem:[#allocation3 + $0x58] sm:$0xf]
    %v331 = vld [vmem:[#allocation3 + $0x5c] sm:$0xf]
    %v340 = vunpack.c.l.b16 %v324
    %v341 = vunpack.c.l.b16 %v325
    %v342 = vunpack.c.l.b16 %v326
    %v343 = vunpack.c.l.b16 %v327
    %v344 = vunpack.c.l.b16 %v328
    %v345 = vunpack.c.l.b16 %v329
    %v346 = vunpack.c.l.b16 %v330
    %v347 = vunpack.c.l.b16 %v331
    %v348 = vpack.c.b16 %v341, %v340
    %v349 = vpack.c.b16 %v343, %v342
    %v350 = vpack.c.b16 %v345, %v344
    %v351 = vpack.c.b16 %v347, %v346
    %356 = vmatpush.bf16.msra.mxu0 %v181
    %357 = vmatpush.bf16.msra.mxu0 %v180
    %358 = vmatpush.bf16.msra.mxu0 %v179
    %359 = vmatpush.bf16.msra.mxu0 %v178
    %360 = vmatpush.bf16.msra.mxu0 %v177
    %361 = vmatpush.bf16.msra.mxu0 %v176
    %362 = vmatpush.bf16.msra.mxu0 %v175
    %363 = vmatpush.bf16.msra.mxu0 %v174
    %364 = vmatmul.bf16.gmra.mxu0 %v348
    %v365 = vpop.f32.mrf.mxu0
    %v366 = vadd.f32 %v116, %v365
    %v367 = vpop.f32.mrf.mxu0
    %v368 = vadd.f32 %v116, %v367
    %369 = vmatmul.bf16.gmra.mxu0 %v349
    %v370 = vpop.f32.mrf.mxu0
    %v371 = vadd.f32 %v116, %v370
    %v372 = vpop.f32.mrf.mxu0
    %v373 = vadd.f32 %v116, %v372
    %374 = vmatmul.bf16.gmra.mxu0 %v350
    %v375 = vpop.f32.mrf.mxu0
    %v376 = vadd.f32 %v116, %v375
    %v377 = vpop.f32.mrf.mxu0
    %v378 = vadd.f32 %v116, %v377
    %379 = vmatmul.bf16.gmra.mxu0 %v351
    %v380 = vpop.f32.mrf.mxu0
    %v381 = vadd.f32 %v116, %v380
    %v382 = vpop.f32.mrf.mxu0
    %v383 = vadd.f32 %v116, %v382
    %384 = vdwg.mxu0
    %v385 = vmax.f32 %v366, 0.0
    %v386 = vmax.f32 %v368, 0.0
    %v387 = vmax.f32 %v371, 0.0
    %v388 = vmax.f32 %v373, 0.0
    %v389 = vmax.f32 %v376, 0.0
    %v390 = vmax.f32 %v378, 0.0
    %v391 = vmax.f32 %v381, 0.0
    %v392 = vmax.f32 %v383, 0.0
    %v393 = vadd.f32 %v385, %v386
    %v394 = vadd.f32 %v393, %v387
    %v395 = vadd.f32 %v394, %v388
    %v396 = vadd.f32 %v395, %v389
    %v397 = vadd.f32 %v396, %v390
    %v398 = vadd.f32 %v397, %v391
    %v399 = vadd.f32 %v398, %v392
    %v400 = vrot.slane %v399, 4
    %v401 = vadd.f32 %v399, %v400
    %v402 = vrot.slane %v401, 2
    %v403 = vadd.f32 %v401, %v402
    %v404 = vrot.slane %v403, 1
    %v405 = vadd.f32 %v403, %v404
    %v406 = vadd.f32 %v323, %v405
    %v407 = vld [vmem:[#allocation3 + $0x60] sm:$0xf]
    %v408 = vld [vmem:[#allocation3 + $0x64] sm:$0xf]
    %v409 = vld [vmem:[#allocation3 + $0x68] sm:$0xf]
    %v410 = vld [vmem:[#allocation3 + $0x6c] sm:$0xf]
    %v411 = vld [vmem:[#allocation3 + $0x70] sm:$0xf]
    %v412 = vld [vmem:[#allocation3 + $0x74] sm:$0xf]
    %v413 = vld [vmem:[#allocation3 + $0x78] sm:$0xf]
    %v414 = vld [vmem:[#allocation3 + $0x7c] sm:$0xf]
    %v423 = vunpack.c.l.b16 %v407
    %v424 = vunpack.c.l.b16 %v408
    %v425 = vunpack.c.l.b16 %v409
    %v426 = vunpack.c.l.b16 %v410
    %v427 = vunpack.c.l.b16 %v411
    %v428 = vunpack.c.l.b16 %v412
    %v429 = vunpack.c.l.b16 %v413
    %v430 = vunpack.c.l.b16 %v414
    %v431 = vpack.c.b16 %v424, %v423
    %v432 = vpack.c.b16 %v426, %v425
    %v433 = vpack.c.b16 %v428, %v427
    %v434 = vpack.c.b16 %v430, %v429
    %439 = vmatpush.bf16.msra.mxu0 %v181
    %440 = vmatpush.bf16.msra.mxu0 %v180
    %441 = vmatpush.bf16.msra.mxu0 %v179
    %442 = vmatpush.bf16.msra.mxu0 %v178
    %443 = vmatpush.bf16.msra.mxu0 %v177
    %444 = vmatpush.bf16.msra.mxu0 %v176
    %445 = vmatpush.bf16.msra.mxu0 %v175
    %446 = vmatpush.bf16.msra.mxu0 %v174
    %447 = vmatmul.bf16.gmra.mxu0 %v431
    %v448 = vpop.f32.mrf.mxu0
    %v449 = vadd.f32 %v116, %v448
    %v450 = vpop.f32.mrf.mxu0
    %v451 = vadd.f32 %v116, %v450
    %452 = vmatmul.bf16.gmra.mxu0 %v432
    %v453 = vpop.f32.mrf.mxu0
    %v454 = vadd.f32 %v116, %v453
    %v455 = vpop.f32.mrf.mxu0
    %v456 = vadd.f32 %v116, %v455
    %457 = vmatmul.bf16.gmra.mxu0 %v433
    %v458 = vpop.f32.mrf.mxu0
    %v459 = vadd.f32 %v116, %v458
    %v460 = vpop.f32.mrf.mxu0
    %v461 = vadd.f32 %v116, %v460
    %462 = vmatmul.bf16.gmra.mxu0 %v434
    %v463 = vpop.f32.mrf.mxu0
    %v464 = vadd.f32 %v116, %v463
    %v465 = vpop.f32.mrf.mxu0
    %v466 = vadd.f32 %v116, %v465
    %467 = vdwg.mxu0
    %v468 = vmax.f32 %v449, 0.0
    %v469 = vmax.f32 %v451, 0.0
    %v470 = vmax.f32 %v454, 0.0
    %v471 = vmax.f32 %v456, 0.0
    %v472 = vmax.f32 %v459, 0.0
    %v473 = vmax.f32 %v461, 0.0
    %v474 = vmax.f32 %v464, 0.0
    %v475 = vmax.f32 %v466, 0.0
    %v476 = vadd.f32 %v468, %v469
    %v477 = vadd.f32 %v476, %v470
    %v478 = vadd.f32 %v477, %v471
    %v479 = vadd.f32 %v478, %v472
    %v480 = vadd.f32 %v479, %v473
    %v481 = vadd.f32 %v480, %v474
    %v482 = vadd.f32 %v481, %v475
    %v483 = vrot.slane %v482, 4
    %v484 = vadd.f32 %v482, %v483
    %v485 = vrot.slane %v484, 2
    %v486 = vadd.f32 %v484, %v485
    %v487 = vrot.slane %v486, 1
    %v488 = vadd.f32 %v486, %v487
    %v489 = vadd.f32 %v406, %v488
    %v490 = vmul.f32 %v489, 0.00390625
    %491 = vst [vmem:[#allocation2] sm:$0x1] %v490
    %s492 = scalar_lea.vmem [#allocation3], 128
    %v493 = vld [vmem:[%s492] sm:$0xf]
    %v494 = vld [vmem:[%s492 + $0x4] sm:$0xf]
    %v495 = vld [vmem:[%s492 + $0x8] sm:$0xf]
    %v496 = vld [vmem:[%s492 + $0xc] sm:$0xf]
    %v497 = vld [vmem:[%s492 + $0x10] sm:$0xf]
    %v498 = vld [vmem:[%s492 + $0x14] sm:$0xf]
    %v499 = vld [vmem:[%s492 + $0x18] sm:$0xf]
    %v500 = vld [vmem:[%s492 + $0x1c] sm:$0xf]
    %v501 = vld [vmem:[#allocation6] sm:$0xf]
    %v502 = vld [vmem:[#allocation6 + $0x4] sm:$0xf]
    %v503 = vld [vmem:[#allocation6 + $0x8] sm:$0xf]
    %v504 = vld [vmem:[#allocation6 + $0xc] sm:$0xf]
    %v505 = vld [vmem:[#allocation6 + $0x10] sm:$0xf]
    %v506 = vld [vmem:[#allocation6 + $0x14] sm:$0xf]
    %v507 = vld [vmem:[#allocation6 + $0x18] sm:$0xf]
    %v508 = vld [vmem:[#allocation6 + $0x1c] sm:$0xf]
    %v509 = vld [vmem:[#allocation6 + $0x20] sm:$0xf]
    %v510 = vld [vmem:[#allocation6 + $0x24] sm:$0xf]
    %v511 = vld [vmem:[#allocation6 + $0x28] sm:$0xf]
    %v512 = vld [vmem:[#allocation6 + $0x2c] sm:$0xf]
    %v513 = vld [vmem:[#allocation6 + $0x30] sm:$0xf]
    %v514 = vld [vmem:[#allocation6 + $0x34] sm:$0xf]
    %v515 = vld [vmem:[#allocation6 + $0x38] sm:$0xf]
    %v516 = vld [vmem:[#allocation6 + $0x3c] sm:$0xf]
    %v525 = vunpack.c.l.b16 %v493
    %v526 = vunpack.c.l.b16 %v494
    %v527 = vunpack.c.l.b16 %v495
    %v528 = vunpack.c.l.b16 %v496
    %v529 = vunpack.c.l.b16 %v497
    %v530 = vunpack.c.l.b16 %v498
    %v531 = vunpack.c.l.b16 %v499
    %v532 = vunpack.c.l.b16 %v500
    %v533 = vpack.c.b16 %v526, %v525
    %v534 = vpack.c.b16 %v528, %v527
    %v535 = vpack.c.b16 %v530, %v529
    %v536 = vpack.c.b16 %v532, %v531
    %v557 = vunpack.c.l.b16 %v501
    %v558 = vunpack.c.l.b16 %v502
    %v559 = vunpack.c.l.b16 %v503
    %v560 = vunpack.c.l.b16 %v504
    %v561 = vunpack.c.l.b16 %v505
    %v562 = vunpack.c.l.b16 %v506
    %v563 = vunpack.c.l.b16 %v507
    %v564 = vunpack.c.l.b16 %v508
    %v565 = vunpack.c.l.b16 %v509
    %v566 = vunpack.c.l.b16 %v510
    %v567 = vunpack.c.l.b16 %v511
    %v568 = vunpack.c.l.b16 %v512
    %v569 = vunpack.c.l.b16 %v513
    %v570 = vunpack.c.l.b16 %v514
    %v571 = vunpack.c.l.b16 %v515
    %v572 = vunpack.c.l.b16 %v516
    %v573 = vpack.c.b16 %v558, %v557
    %v574 = vpack.c.b16 %v560, %v559
    %v575 = vpack.c.b16 %v562, %v561
    %v576 = vpack.c.b16 %v564, %v563
    %v577 = vpack.c.b16 %v566, %v565
    %v578 = vpack.c.b16 %v568, %v567
    %v579 = vpack.c.b16 %v570, %v569
    %v580 = vpack.c.b16 %v572, %v571
    %589 = vmatpush.bf16.msra.mxu0 %v580
    %590 = vmatpush.bf16.msra.mxu0 %v579
    %591 = vmatpush.bf16.msra.mxu0 %v578
    %592 = vmatpush.bf16.msra.mxu0 %v577
    %593 = vmatpush.bf16.msra.mxu0 %v576
    %594 = vmatpush.bf16.msra.mxu0 %v575
    %595 = vmatpush.bf16.msra.mxu0 %v574
    %596 = vmatpush.bf16.msra.mxu0 %v573
    %597 = vmatmul.bf16.gmra.mxu0 %v533
    %v598 = vpop.f32.mrf.mxu0
    %v599 = vadd.f32 %v116, %v598
    %v600 = vpop.f32.mrf.mxu0
    %v601 = vadd.f32 %v116, %v600
    %602 = vmatmul.bf16.gmra.mxu0 %v534
    %v603 = vpop.f32.mrf.mxu0
    %v604 = vadd.f32 %v116, %v603
    %v605 = vpop.f32.mrf.mxu0
    %v606 = vadd.f32 %v116, %v605
    %607 = vmatmul.bf16.gmra.mxu0 %v535
    %v608 = vpop.f32.mrf.mxu0
    %v609 = vadd.f32 %v116, %v608
    %v610 = vpop.f32.mrf.mxu0
    %v611 = vadd.f32 %v116, %v610
    %612 = vmatmul.bf16.gmra.mxu0 %v536
    %v613 = vpop.f32.mrf.mxu0
    %v614 = vadd.f32 %v116, %v613
    %v615 = vpop.f32.mrf.mxu0
    %v616 = vadd.f32 %v116, %v615
    %617 = vdwg.mxu0
    %v618 = vmax.f32 %v599, 0.0
    %v619 = vmax.f32 %v601, 0.0
    %v620 = vmax.f32 %v604, 0.0
    %v621 = vmax.f32 %v606, 0.0
    %v622 = vmax.f32 %v609, 0.0
    %v623 = vmax.f32 %v611, 0.0
    %v624 = vmax.f32 %v614, 0.0
    %v625 = vmax.f32 %v616, 0.0
    %v626 = vadd.f32 %v618, %v619
    %v627 = vadd.f32 %v626, %v620
    %v628 = vadd.f32 %v627, %v621
    %v629 = vadd.f32 %v628, %v622
    %v630 = vadd.f32 %v629, %v623
    %v631 = vadd.f32 %v630, %v624
    %v632 = vadd.f32 %v631, %v625
    %v633 = vrot.slane %v632, 4
    %v634 = vadd.f32 %v632, %v633
    %v635 = vrot.slane %v634, 2
    %v636 = vadd.f32 %v634, %v635
    %v637 = vrot.slane %v636, 1
    %v638 = vadd.f32 %v636, %v637
    %v639 = vadd.f32 %v638, 0.0
    %v640 = vld [vmem:[%s492 + $0x20] sm:$0xf]
    %v641 = vld [vmem:[%s492 + $0x24] sm:$0xf]
    %v642 = vld [vmem:[%s492 + $0x28] sm:$0xf]
    %v643 = vld [vmem:[%s492 + $0x2c] sm:$0xf]
    %v644 = vld [vmem:[%s492 + $0x30] sm:$0xf]
    %v645 = vld [vmem:[%s492 + $0x34] sm:$0xf]
    %v646 = vld [vmem:[%s492 + $0x38] sm:$0xf]
    %v647 = vld [vmem:[%s492 + $0x3c] sm:$0xf]
    %v656 = vunpack.c.l.b16 %v640
    %v657 = vunpack.c.l.b16 %v641
    %v658 = vunpack.c.l.b16 %v642
    %v659 = vunpack.c.l.b16 %v643
    %v660 = vunpack.c.l.b16 %v644
    %v661 = vunpack.c.l.b16 %v645
    %v662 = vunpack.c.l.b16 %v646
    %v663 = vunpack.c.l.b16 %v647
    %v664 = vpack.c.b16 %v657, %v656
    %v665 = vpack.c.b16 %v659, %v658
    %v666 = vpack.c.b16 %v661, %v660
    %v667 = vpack.c.b16 %v663, %v662
    %672 = vmatpush.bf16.msra.mxu0 %v580
    %673 = vmatpush.bf16.msra.mxu0 %v579
    %674 = vmatpush.bf16.msra.mxu0 %v578
    %675 = vmatpush.bf16.msra.mxu0 %v577
    %676 = vmatpush.bf16.msra.mxu0 %v576
    %677 = vmatpush.bf16.msra.mxu0 %v575
    %678 = vmatpush.bf16.msra.mxu0 %v574
    %679 = vmatpush.bf16.msra.mxu0 %v573
    %680 = vmatmul.bf16.gmra.mxu0 %v664
    %v681 = vpop.f32.mrf.mxu0
    %v682 = vadd.f32 %v116, %v681
    %v683 = vpop.f32.mrf.mxu0
    %v684 = vadd.f32 %v116, %v683
    %685 = vmatmul.bf16.gmra.mxu0 %v665
    %v686 = vpop.f32.mrf.mxu0
    %v687 = vadd.f32 %v116, %v686
    %v688 = vpop.f32.mrf.mxu0
    %v689 = vadd.f32 %v116, %v688
    %690 = vmatmul.bf16.gmra.mxu0 %v666
    %v691 = vpop.f32.mrf.mxu0
    %v692 = vadd.f32 %v116, %v691
    %v693 = vpop.f32.mrf.mxu0
    %v694 = vadd.f32 %v116, %v693
    %695 = vmatmul.bf16.gmra.mxu0 %v667
    %v696 = vpop.f32.mrf.mxu0
    %v697 = vadd.f32 %v116, %v696
    %v698 = vpop.f32.mrf.mxu0
    %v699 = vadd.f32 %v116, %v698
    %700 = vdwg.mxu0
    %v701 = vmax.f32 %v682, 0.0
    %v702 = vmax.f32 %v684, 0.0
    %v703 = vmax.f32 %v687, 0.0
    %v704 = vmax.f32 %v689, 0.0
    %v705 = vmax.f32 %v692, 0.0
    %v706 = vmax.f32 %v694, 0.0
    %v707 = vmax.f32 %v697, 0.0
    %v708 = vmax.f32 %v699, 0.0
    %v709 = vadd.f32 %v701, %v702
    %v710 = vadd.f32 %v709, %v703
    %v711 = vadd.f32 %v710, %v704
    %v712 = vadd.f32 %v711, %v705
    %v713 = vadd.f32 %v712, %v706
    %v714 = vadd.f32 %v713, %v707
    %v715 = vadd.f32 %v714, %v708
    %v716 = vrot.slane %v715, 4
    %v717 = vadd.f32 %v715, %v716
    %v718 = vrot.slane %v717, 2
    %v719 = vadd.f32 %v717, %v718
    %v720 = vrot.slane %v719, 1
    %v721 = vadd.f32 %v719, %v720
    %v722 = vadd.f32 %v639, %v721
    %v723 = vld [vmem:[%s492 + $0x40] sm:$0xf]
    %v724 = vld [vmem:[%s492 + $0x44] sm:$0xf]
    %v725 = vld [vmem:[%s492 + $0x48] sm:$0xf]
    %v726 = vld [vmem:[%s492 + $0x4c] sm:$0xf]
    %v727 = vld [vmem:[%s492 + $0x50] sm:$0xf]
    %v728 = vld [vmem:[%s492 + $0x54] sm:$0xf]
    %v729 = vld [vmem:[%s492 + $0x58] sm:$0xf]
    %v730 = vld [vmem:[%s492 + $0x5c] sm:$0xf]
    %v739 = vunpack.c.l.b16 %v723
    %v740 = vunpack.c.l.b16 %v724
    %v741 = vunpack.c.l.b16 %v725
    %v742 = vunpack.c.l.b16 %v726
    %v743 = vunpack.c.l.b16 %v727
    %v744 = vunpack.c.l.b16 %v728
    %v745 = vunpack.c.l.b16 %v729
    %v746 = vunpack.c.l.b16 %v730
    %v747 = vpack.c.b16 %v740, %v739
    %v748 = vpack.c.b16 %v742, %v741
    %v749 = vpack.c.b16 %v744, %v743
    %v750 = vpack.c.b16 %v746, %v745
    %755 = vmatpush.bf16.msra.mxu0 %v580
    %756 = vmatpush.bf16.msra.mxu0 %v579
    %757 = vmatpush.bf16.msra.mxu0 %v578
    %758 = vmatpush.bf16.msra.mxu0 %v577
    %759 = vmatpush.bf16.msra.mxu0 %v576
    %760 = vmatpush.bf16.msra.mxu0 %v575
    %761 = vmatpush.bf16.msra.mxu0 %v574
    %762 = vmatpush.bf16.msra.mxu0 %v573
    %763 = vmatmul.bf16.gmra.mxu0 %v747
    %v764 = vpop.f32.mrf.mxu0
    %v765 = vadd.f32 %v116, %v764
    %v766 = vpop.f32.mrf.mxu0
    %v767 = vadd.f32 %v116, %v766
    %768 = vmatmul.bf16.gmra.mxu0 %v748
    %v769 = vpop.f32.mrf.mxu0
    %v770 = vadd.f32 %v116, %v769
    %v771 = vpop.f32.mrf.mxu0
    %v772 = vadd.f32 %v116, %v771
    %773 = vmatmul.bf16.gmra.mxu0 %v749
    %v774 = vpop.f32.mrf.mxu0
    %v775 = vadd.f32 %v116, %v774
    %v776 = vpop.f32.mrf.mxu0
    %v777 = vadd.f32 %v116, %v776
    %778 = vmatmul.bf16.gmra.mxu0 %v750
    %v779 = vpop.f32.mrf.mxu0
    %v780 = vadd.f32 %v116, %v779
    %v781 = vpop.f32.mrf.mxu0
    %v782 = vadd.f32 %v116, %v781
    %783 = vdwg.mxu0
    %v784 = vmax.f32 %v765, 0.0
    %v785 = vmax.f32 %v767, 0.0
    %v786 = vmax.f32 %v770, 0.0
    %v787 = vmax.f32 %v772, 0.0
    %v788 = vmax.f32 %v775, 0.0
    %v789 = vmax.f32 %v777, 0.0
    %v790 = vmax.f32 %v780, 0.0
    %v791 = vmax.f32 %v782, 0.0
    %v792 = vadd.f32 %v784, %v785
    %v793 = vadd.f32 %v792, %v786
    %v794 = vadd.f32 %v793, %v787
    %v795 = vadd.f32 %v794, %v788
    %v796 = vadd.f32 %v795, %v789
    %v797 = vadd.f32 %v796, %v790
    %v798 = vadd.f32 %v797, %v791
    %v799 = vrot.slane %v798, 4
    %v800 = vadd.f32 %v798, %v799
    %v801 = vrot.slane %v800, 2
    %v802 = vadd.f32 %v800, %v801
    %v803 = vrot.slane %v802, 1
    %v804 = vadd.f32 %v802, %v803
    %v805 = vadd.f32 %v722, %v804
    %v806 = vld [vmem:[%s492 + $0x60] sm:$0xf]
    %v807 = vld [vmem:[%s492 + $0x64] sm:$0xf]
    %v808 = vld [vmem:[%s492 + $0x68] sm:$0xf]
    %v809 = vld [vmem:[%s492 + $0x6c] sm:$0xf]
    %v810 = vld [vmem:[%s492 + $0x70] sm:$0xf]
    %v811 = vld [vmem:[%s492 + $0x74] sm:$0xf]
    %v812 = vld [vmem:[%s492 + $0x78] sm:$0xf]
    %v813 = vld [vmem:[%s492 + $0x7c] sm:$0xf]
    %v822 = vunpack.c.l.b16 %v806
    %v823 = vunpack.c.l.b16 %v807
    %v824 = vunpack.c.l.b16 %v808
    %v825 = vunpack.c.l.b16 %v809
    %v826 = vunpack.c.l.b16 %v810
    %v827 = vunpack.c.l.b16 %v811
    %v828 = vunpack.c.l.b16 %v812
    %v829 = vunpack.c.l.b16 %v813
    %v830 = vpack.c.b16 %v823, %v822
    %v831 = vpack.c.b16 %v825, %v824
    %v832 = vpack.c.b16 %v827, %v826
    %v833 = vpack.c.b16 %v829, %v828
    %838 = vmatpush.bf16.msra.mxu0 %v580
    %839 = vmatpush.bf16.msra.mxu0 %v579
    %840 = vmatpush.bf16.msra.mxu0 %v578
    %841 = vmatpush.bf16.msra.mxu0 %v577
    %842 = vmatpush.bf16.msra.mxu0 %v576
    %843 = vmatpush.bf16.msra.mxu0 %v575
    %844 = vmatpush.bf16.msra.mxu0 %v574
    %845 = vmatpush.bf16.msra.mxu0 %v573
    %846 = vmatmul.bf16.gmra.mxu0 %v830
    %v847 = vpop.f32.mrf.mxu0
    %v848 = vadd.f32 %v116, %v847
    %v849 = vpop.f32.mrf.mxu0
    %v850 = vadd.f32 %v116, %v849
    %851 = vmatmul.bf16.gmra.mxu0 %v831
    %v852 = vpop.f32.mrf.mxu0
    %v853 = vadd.f32 %v116, %v852
    %v854 = vpop.f32.mrf.mxu0
    %v855 = vadd.f32 %v116, %v854
    %856 = vmatmul.bf16.gmra.mxu0 %v832
    %v857 = vpop.f32.mrf.mxu0
    %v858 = vadd.f32 %v116, %v857
    %v859 = vpop.f32.mrf.mxu0
    %v860 = vadd.f32 %v116, %v859
    %861 = vmatmul.bf16.gmra.mxu0 %v833
    %v862 = vpop.f32.mrf.mxu0
    %v863 = vadd.f32 %v116, %v862
    %v864 = vpop.f32.mrf.mxu0
    %v865 = vadd.f32 %v116, %v864
    %866 = vdwg.mxu0
    %v867 = vmax.f32 %v848, 0.0
    %v868 = vmax.f32 %v850, 0.0
    %v869 = vmax.f32 %v853, 0.0
    %v870 = vmax.f32 %v855, 0.0
    %v871 = vmax.f32 %v858, 0.0
    %v872 = vmax.f32 %v860, 0.0
    %v873 = vmax.f32 %v863, 0.0
    %v874 = vmax.f32 %v865, 0.0
    %v875 = vadd.f32 %v867, %v868
    %v876 = vadd.f32 %v875, %v869
    %v877 = vadd.f32 %v876, %v870
    %v878 = vadd.f32 %v877, %v871
    %v879 = vadd.f32 %v878, %v872
    %v880 = vadd.f32 %v879, %v873
    %v881 = vadd.f32 %v880, %v874
    %v882 = vrot.slane %v881, 4
    %v883 = vadd.f32 %v881, %v882
    %v884 = vrot.slane %v883, 2
    %v885 = vadd.f32 %v883, %v884
    %v886 = vrot.slane %v885, 1
    %v887 = vadd.f32 %v885, %v886
    %v888 = vadd.f32 %v805, %v887
    %v889 = vmul.f32 %v888, 0.00390625
    %890 = vst [vmem:[#allocation2 + $0x1] sm:$0x1] %v889
    %s891 = scalar_lea.vmem [#allocation3], 256
    %v892 = vld [vmem:[%s891] sm:$0xf]
    %v893 = vld [vmem:[%s891 + $0x4] sm:$0xf]
    %v894 = vld [vmem:[%s891 + $0x8] sm:$0xf]
    %v895 = vld [vmem:[%s891 + $0xc] sm:$0xf]
    %v896 = vld [vmem:[%s891 + $0x10] sm:$0xf]
    %v897 = vld [vmem:[%s891 + $0x14] sm:$0xf]
    %v898 = vld [vmem:[%s891 + $0x18] sm:$0xf]
    %v899 = vld [vmem:[%s891 + $0x1c] sm:$0xf]
    %v900 = vld [vmem:[#allocation6] sm:$0xf]
    %v901 = vld [vmem:[#allocation6 + $0x4] sm:$0xf]
    %v902 = vld [vmem:[#allocation6 + $0x8] sm:$0xf]
    %v903 = vld [vmem:[#allocation6 + $0xc] sm:$0xf]
    %v904 = vld [vmem:[#allocation6 + $0x10] sm:$0xf]
    %v905 = vld [vmem:[#allocation6 + $0x14] sm:$0xf]
    %v906 = vld [vmem:[#allocation6 + $0x18] sm:$0xf]
    %v907 = vld [vmem:[#allocation6 + $0x1c] sm:$0xf]
    %v908 = vld [vmem:[#allocation6 + $0x20] sm:$0xf]
    %v909 = vld [vmem:[#allocation6 + $0x24] sm:$0xf]
    %v910 = vld [vmem:[#allocation6 + $0x28] sm:$0xf]
    %v911 = vld [vmem:[#allocation6 + $0x2c] sm:$0xf]
    %v912 = vld [vmem:[#allocation6 + $0x30] sm:$0xf]
    %v913 = vld [vmem:[#allocation6 + $0x34] sm:$0xf]
    %v914 = vld [vmem:[#allocation6 + $0x38] sm:$0xf]
    %v915 = vld [vmem:[#allocation6 + $0x3c] sm:$0xf]
    %v924 = vunpack.c.l.b16 %v892
    %v925 = vunpack.c.l.b16 %v893
    %v926 = vunpack.c.l.b16 %v894
    %v927 = vunpack.c.l.b16 %v895
    %v928 = vunpack.c.l.b16 %v896
    %v929 = vunpack.c.l.b16 %v897
    %v930 = vunpack.c.l.b16 %v898
    %v931 = vunpack.c.l.b16 %v899
    %v932 = vpack.c.b16 %v925, %v924
    %v933 = vpack.c.b16 %v927, %v926
    %v934 = vpack.c.b16 %v929, %v928
    %v935 = vpack.c.b16 %v931, %v930
    %v956 = vunpack.c.l.b16 %v900
    %v957 = vunpack.c.l.b16 %v901
    %v958 = vunpack.c.l.b16 %v902
    %v959 = vunpack.c.l.b16 %v903
    %v960 = vunpack.c.l.b16 %v904
    %v961 = vunpack.c.l.b16 %v905
    %v962 = vunpack.c.l.b16 %v906
    %v963 = vunpack.c.l.b16 %v907
    %v964 = vunpack.c.l.b16 %v908
    %v965 = vunpack.c.l.b16 %v909
    %v966 = vunpack.c.l.b16 %v910
    %v967 = vunpack.c.l.b16 %v911
    %v968 = vunpack.c.l.b16 %v912
    %v969 = vunpack.c.l.b16 %v913
    %v970 = vunpack.c.l.b16 %v914
    %v971 = vunpack.c.l.b16 %v915
    %v972 = vpack.c.b16 %v957, %v956
    %v973 = vpack.c.b16 %v959, %v958
    %v974 = vpack.c.b16 %v961, %v960
    %v975 = vpack.c.b16 %v963, %v962
    %v976 = vpack.c.b16 %v965, %v964
    %v977 = vpack.c.b16 %v967, %v966
    %v978 = vpack.c.b16 %v969, %v968
    %v979 = vpack.c.b16 %v971, %v970
    %988 = vmatpush.bf16.msra.mxu0 %v979
    %989 = vmatpush.bf16.msra.mxu0 %v978
    %990 = vmatpush.bf16.msra.mxu0 %v977
    %991 = vmatpush.bf16.msra.mxu0 %v976
    %992 = vmatpush.bf16.msra.mxu0 %v975
    %993 = vmatpush.bf16.msra.mxu0 %v974
    %994 = vmatpush.bf16.msra.mxu0 %v973
    %995 = vmatpush.bf16.msra.mxu0 %v972
    %996 = vmatmul.bf16.gmra.mxu0 %v932
    %v997 = vpop.f32.mrf.mxu0
    %v998 = vadd.f32 %v116, %v997
    %v999 = vpop.f32.mrf.mxu0
    %v1000 = vadd.f32 %v116, %v999
    %1001 = vmatmul.bf16.gmra.mxu0 %v933
    %v1002 = vpop.f32.mrf.mxu0
    %v1003 = vadd.f32 %v116, %v1002
    %v1004 = vpop.f32.mrf.mxu0
    %v1005 = vadd.f32 %v116, %v1004
    %1006 = vmatmul.bf16.gmra.mxu0 %v934
    %v1007 = vpop.f32.mrf.mxu0
    %v1008 = vadd.f32 %v116, %v1007
    %v1009 = vpop.f32.mrf.mxu0
    %v1010 = vadd.f32 %v116, %v1009
    %1011 = vmatmul.bf16.gmra.mxu0 %v935
    %v1012 = vpop.f32.mrf.mxu0
    %v1013 = vadd.f32 %v116, %v1012
    %v1014 = vpop.f32.mrf.mxu0
    %v1015 = vadd.f32 %v116, %v1014
    %1016 = vdwg.mxu0
    %v1017 = vmax.f32 %v998, 0.0
    %v1018 = vmax.f32 %v1000, 0.0
    %v1019 = vmax.f32 %v1003, 0.0
    %v1020 = vmax.f32 %v1005, 0.0
    %v1021 = vmax.f32 %v1008, 0.0
    %v1022 = vmax.f32 %v1010, 0.0
    %v1023 = vmax.f32 %v1013, 0.0
    %v1024 = vmax.f32 %v1015, 0.0
    %v1025 = vadd.f32 %v1017, %v1018
    %v1026 = vadd.f32 %v1025, %v1019
    %v1027 = vadd.f32 %v1026, %v1020
    %v1028 = vadd.f32 %v1027, %v1021
    %v1029 = vadd.f32 %v1028, %v1022
    %v1030 = vadd.f32 %v1029, %v1023
    %v1031 = vadd.f32 %v1030, %v1024
    %v1032 = vrot.slane %v1031, 4
    %v1033 = vadd.f32 %v1031, %v1032
    %v1034 = vrot.slane %v1033, 2
    %v1035 = vadd.f32 %v1033, %v1034
    %v1036 = vrot.slane %v1035, 1
    %v1037 = vadd.f32 %v1035, %v1036
    %v1038 = vadd.f32 %v1037, 0.0
    %v1039 = vld [vmem:[%s891 + $0x20] sm:$0xf]
    %v1040 = vld [vmem:[%s891 + $0x24] sm:$0xf]
    %v1041 = vld [vmem:[%s891 + $0x28] sm:$0xf]
    %v1042 = vld [vmem:[%s891 + $0x2c] sm:$0xf]
    %v1043 = vld [vmem:[%s891 + $0x30] sm:$0xf]
    %v1044 = vld [vmem:[%s891 + $0x34] sm:$0xf]
    %v1045 = vld [vmem:[%s891 + $0x38] sm:$0xf]
    %v1046 = vld [vmem:[%s891 + $0x3c] sm:$0xf]
    %v1055 = vunpack.c.l.b16 %v1039
    %v1056 = vunpack.c.l.b16 %v1040
    %v1057 = vunpack.c.l.b16 %v1041
    %v1058 = vunpack.c.l.b16 %v1042
    %v1059 = vunpack.c.l.b16 %v1043
    %v1060 = vunpack.c.l.b16 %v1044
    %v1061 = vunpack.c.l.b16 %v1045
    %v1062 = vunpack.c.l.b16 %v1046
    %v1063 = vpack.c.b16 %v1056, %v1055
    %v1064 = vpack.c.b16 %v1058, %v1057
    %v1065 = vpack.c.b16 %v1060, %v1059
    %v1066 = vpack.c.b16 %v1062, %v1061
    %1071 = vmatpush.bf16.msra.mxu0 %v979
    %1072 = vmatpush.bf16.msra.mxu0 %v978
    %1073 = vmatpush.bf16.msra.mxu0 %v977
    %1074 = vmatpush.bf16.msra.mxu0 %v976
    %1075 = vmatpush.bf16.msra.mxu0 %v975
    %1076 = vmatpush.bf16.msra.mxu0 %v974
    %1077 = vmatpush.bf16.msra.mxu0 %v973
    %1078 = vmatpush.bf16.msra.mxu0 %v972
    %1079 = vmatmul.bf16.gmra.mxu0 %v1063
    %v1080 = vpop.f32.mrf.mxu0
    %v1081 = vadd.f32 %v116, %v1080
    %v1082 = vpop.f32.mrf.mxu0
    %v1083 = vadd.f32 %v116, %v1082
    %1084 = vmatmul.bf16.gmra.mxu0 %v1064
    %v1085 = vpop.f32.mrf.mxu0
    %v1086 = vadd.f32 %v116, %v1085
    %v1087 = vpop.f32.mrf.mxu0
    %v1088 = vadd.f32 %v116, %v1087
    %1089 = vmatmul.bf16.gmra.mxu0 %v1065
    %v1090 = vpop.f32.mrf.mxu0
    %v1091 = vadd.f32 %v116, %v1090
    %v1092 = vpop.f32.mrf.mxu0
    %v1093 = vadd.f32 %v116, %v1092
    %1094 = vmatmul.bf16.gmra.mxu0 %v1066
    %v1095 = vpop.f32.mrf.mxu0
    %v1096 = vadd.f32 %v116, %v1095
    %v1097 = vpop.f32.mrf.mxu0
    %v1098 = vadd.f32 %v116, %v1097
    %1099 = vdwg.mxu0
    %v1100 = vmax.f32 %v1081, 0.0
    %v1101 = vmax.f32 %v1083, 0.0
    %v1102 = vmax.f32 %v1086, 0.0
    %v1103 = vmax.f32 %v1088, 0.0
    %v1104 = vmax.f32 %v1091, 0.0
    %v1105 = vmax.f32 %v1093, 0.0
    %v1106 = vmax.f32 %v1096, 0.0
    %v1107 = vmax.f32 %v1098, 0.0
    %v1108 = vadd.f32 %v1100, %v1101
    %v1109 = vadd.f32 %v1108, %v1102
    %v1110 = vadd.f32 %v1109, %v1103
    %v1111 = vadd.f32 %v1110, %v1104
    %v1112 = vadd.f32 %v1111, %v1105
    %v1113 = vadd.f32 %v1112, %v1106
    %v1114 = vadd.f32 %v1113, %v1107
    %v1115 = vrot.slane %v1114, 4
    %v1116 = vadd.f32 %v1114, %v1115
    %v1117 = vrot.slane %v1116, 2
    %v1118 = vadd.f32 %v1116, %v1117
    %v1119 = vrot.slane %v1118, 1
    %v1120 = vadd.f32 %v1118, %v1119
    %v1121 = vadd.f32 %v1038, %v1120
    %v1122 = vld [vmem:[%s891 + $0x40] sm:$0xf]
    %v1123 = vld [vmem:[%s891 + $0x44] sm:$0xf]
    %v1124 = vld [vmem:[%s891 + $0x48] sm:$0xf]
    %v1125 = vld [vmem:[%s891 + $0x4c] sm:$0xf]
    %v1126 = vld [vmem:[%s891 + $0x50] sm:$0xf]
    %v1127 = vld [vmem:[%s891 + $0x54] sm:$0xf]
    %v1128 = vld [vmem:[%s891 + $0x58] sm:$0xf]
    %v1129 = vld [vmem:[%s891 + $0x5c] sm:$0xf]
    %v1138 = vunpack.c.l.b16 %v1122
    %v1139 = vunpack.c.l.b16 %v1123
    %v1140 = vunpack.c.l.b16 %v1124
    %v1141 = vunpack.c.l.b16 %v1125
    %v1142 = vunpack.c.l.b16 %v1126
    %v1143 = vunpack.c.l.b16 %v1127
    %v1144 = vunpack.c.l.b16 %v1128
    %v1145 = vunpack.c.l.b16 %v1129
    %v1146 = vpack.c.b16 %v1139, %v1138
    %v1147 = vpack.c.b16 %v1141, %v1140
    %v1148 = vpack.c.b16 %v1143, %v1142
    %v1149 = vpack.c.b16 %v1145, %v1144
    %1154 = vmatpush.bf16.msra.mxu0 %v979
    %1155 = vmatpush.bf16.msra.mxu0 %v978
    %1156 = vmatpush.bf16.msra.mxu0 %v977
    %1157 = vmatpush.bf16.msra.mxu0 %v976
    %1158 = vmatpush.bf16.msra.mxu0 %v975
    %1159 = vmatpush.bf16.msra.mxu0 %v974
    %1160 = vmatpush.bf16.msra.mxu0 %v973
    %1161 = vmatpush.bf16.msra.mxu0 %v972
    %1162 = vmatmul.bf16.gmra.mxu0 %v1146
    %v1163 = vpop.f32.mrf.mxu0
    %v1164 = vadd.f32 %v116, %v1163
    %v1165 = vpop.f32.mrf.mxu0
    %v1166 = vadd.f32 %v116, %v1165
    %1167 = vmatmul.bf16.gmra.mxu0 %v1147
    %v1168 = vpop.f32.mrf.mxu0
    %v1169 = vadd.f32 %v116, %v1168
    %v1170 = vpop.f32.mrf.mxu0
    %v1171 = vadd.f32 %v116, %v1170
    %1172 = vmatmul.bf16.gmra.mxu0 %v1148
    %v1173 = vpop.f32.mrf.mxu0
    %v1174 = vadd.f32 %v116, %v1173
    %v1175 = vpop.f32.mrf.mxu0
    %v1176 = vadd.f32 %v116, %v1175
    %1177 = vmatmul.bf16.gmra.mxu0 %v1149
    %v1178 = vpop.f32.mrf.mxu0
    %v1179 = vadd.f32 %v116, %v1178
    %v1180 = vpop.f32.mrf.mxu0
    %v1181 = vadd.f32 %v116, %v1180
    %1182 = vdwg.mxu0
    %v1183 = vmax.f32 %v1164, 0.0
    %v1184 = vmax.f32 %v1166, 0.0
    %v1185 = vmax.f32 %v1169, 0.0
    %v1186 = vmax.f32 %v1171, 0.0
    %v1187 = vmax.f32 %v1174, 0.0
    %v1188 = vmax.f32 %v1176, 0.0
    %v1189 = vmax.f32 %v1179, 0.0
    %v1190 = vmax.f32 %v1181, 0.0
    %v1191 = vadd.f32 %v1183, %v1184
    %v1192 = vadd.f32 %v1191, %v1185
    %v1193 = vadd.f32 %v1192, %v1186
    %v1194 = vadd.f32 %v1193, %v1187
    %v1195 = vadd.f32 %v1194, %v1188
    %v1196 = vadd.f32 %v1195, %v1189
    %v1197 = vadd.f32 %v1196, %v1190
    %v1198 = vrot.slane %v1197, 4
    %v1199 = vadd.f32 %v1197, %v1198
    %v1200 = vrot.slane %v1199, 2
    %v1201 = vadd.f32 %v1199, %v1200
    %v1202 = vrot.slane %v1201, 1
    %v1203 = vadd.f32 %v1201, %v1202
    %v1204 = vadd.f32 %v1121, %v1203
    %v1205 = vld [vmem:[%s891 + $0x60] sm:$0xf]
    %v1206 = vld [vmem:[%s891 + $0x64] sm:$0xf]
    %v1207 = vld [vmem:[%s891 + $0x68] sm:$0xf]
    %v1208 = vld [vmem:[%s891 + $0x6c] sm:$0xf]
    %v1209 = vld [vmem:[%s891 + $0x70] sm:$0xf]
    %v1210 = vld [vmem:[%s891 + $0x74] sm:$0xf]
    %v1211 = vld [vmem:[%s891 + $0x78] sm:$0xf]
    %v1212 = vld [vmem:[%s891 + $0x7c] sm:$0xf]
    %v1221 = vunpack.c.l.b16 %v1205
    %v1222 = vunpack.c.l.b16 %v1206
    %v1223 = vunpack.c.l.b16 %v1207
    %v1224 = vunpack.c.l.b16 %v1208
    %v1225 = vunpack.c.l.b16 %v1209
    %v1226 = vunpack.c.l.b16 %v1210
    %v1227 = vunpack.c.l.b16 %v1211
    %v1228 = vunpack.c.l.b16 %v1212
    %v1229 = vpack.c.b16 %v1222, %v1221
    %v1230 = vpack.c.b16 %v1224, %v1223
    %v1231 = vpack.c.b16 %v1226, %v1225
    %v1232 = vpack.c.b16 %v1228, %v1227
    %1237 = vmatpush.bf16.msra.mxu0 %v979
    %1238 = vmatpush.bf16.msra.mxu0 %v978
    %1239 = vmatpush.bf16.msra.mxu0 %v977
    %1240 = vmatpush.bf16.msra.mxu0 %v976
    %1241 = vmatpush.bf16.msra.mxu0 %v975
    %1242 = vmatpush.bf16.msra.mxu0 %v974
    %1243 = vmatpush.bf16.msra.mxu0 %v973
    %1244 = vmatpush.bf16.msra.mxu0 %v972
    %1245 = vmatmul.bf16.gmra.mxu0 %v1229
    %v1246 = vpop.f32.mrf.mxu0
    %v1247 = vadd.f32 %v116, %v1246
    %v1248 = vpop.f32.mrf.mxu0
    %v1249 = vadd.f32 %v116, %v1248
    %1250 = vmatmul.bf16.gmra.mxu0 %v1230
    %v1251 = vpop.f32.mrf.mxu0
    %v1252 = vadd.f32 %v116, %v1251
    %v1253 = vpop.f32.mrf.mxu0
    %v1254 = vadd.f32 %v116, %v1253
    %1255 = vmatmul.bf16.gmra.mxu0 %v1231
    %v1256 = vpop.f32.mrf.mxu0
    %v1257 = vadd.f32 %v116, %v1256
    %v1258 = vpop.f32.mrf.mxu0
    %v1259 = vadd.f32 %v116, %v1258
    %1260 = vmatmul.bf16.gmra.mxu0 %v1232
    %v1261 = vpop.f32.mrf.mxu0
    %v1262 = vadd.f32 %v116, %v1261
    %v1263 = vpop.f32.mrf.mxu0
    %v1264 = vadd.f32 %v116, %v1263
    %1265 = vdwg.mxu0
    %v1266 = vmax.f32 %v1247, 0.0
    %v1267 = vmax.f32 %v1249, 0.0
    %v1268 = vmax.f32 %v1252, 0.0
    %v1269 = vmax.f32 %v1254, 0.0
    %v1270 = vmax.f32 %v1257, 0.0
    %v1271 = vmax.f32 %v1259, 0.0
    %v1272 = vmax.f32 %v1262, 0.0
    %v1273 = vmax.f32 %v1264, 0.0
    %v1274 = vadd.f32 %v1266, %v1267
    %v1275 = vadd.f32 %v1274, %v1268
    %v1276 = vadd.f32 %v1275, %v1269
    %v1277 = vadd.f32 %v1276, %v1270
    %v1278 = vadd.f32 %v1277, %v1271
    %v1279 = vadd.f32 %v1278, %v1272
    %v1280 = vadd.f32 %v1279, %v1273
    %v1281 = vrot.slane %v1280, 4
    %v1282 = vadd.f32 %v1280, %v1281
    %v1283 = vrot.slane %v1282, 2
    %v1284 = vadd.f32 %v1282, %v1283
    %v1285 = vrot.slane %v1284, 1
    %v1286 = vadd.f32 %v1284, %v1285
    %v1287 = vadd.f32 %v1204, %v1286
    %v1288 = vmul.f32 %v1287, 0.00390625
    %1289 = vst [vmem:[#allocation2 + $0x2] sm:$0x1] %v1288
    %s1290 = scalar_lea.vmem [#allocation3], 384
    %v1291 = vld [vmem:[%s1290] sm:$0xf]
    %v1292 = vld [vmem:[%s1290 + $0x4] sm:$0xf]
    %v1293 = vld [vmem:[%s1290 + $0x8] sm:$0xf]
    %v1294 = vld [vmem:[%s1290 + $0xc] sm:$0xf]
    %v1295 = vld [vmem:[%s1290 + $0x10] sm:$0xf]
    %v1296 = vld [vmem:[%s1290 + $0x14] sm:$0xf]
    %v1297 = vld [vmem:[%s1290 + $0x18] sm:$0xf]
    %v1298 = vld [vmem:[%s1290 + $0x1c] sm:$0xf]
    %v1299 = vld [vmem:[#allocation6] sm:$0xf]
    %v1300 = vld [vmem:[#allocation6 + $0x4] sm:$0xf]
    %v1301 = vld [vmem:[#allocation6 + $0x8] sm:$0xf]
    %v1302 = vld [vmem:[#allocation6 + $0xc] sm:$0xf]
    %v1303 = vld [vmem:[#allocation6 + $0x10] sm:$0xf]
    %v1304 = vld [vmem:[#allocation6 + $0x14] sm:$0xf]
    %v1305 = vld [vmem:[#allocation6 + $0x18] sm:$0xf]
    %v1306 = vld [vmem:[#allocation6 + $0x1c] sm:$0xf]
    %v1307 = vld [vmem:[#allocation6 + $0x20] sm:$0xf]
    %v1308 = vld [vmem:[#allocation6 + $0x24] sm:$0xf]
    %v1309 = vld [vmem:[#allocation6 + $0x28] sm:$0xf]
    %v1310 = vld [vmem:[#allocation6 + $0x2c] sm:$0xf]
    %v1311 = vld [vmem:[#allocation6 + $0x30] sm:$0xf]
    %v1312 = vld [vmem:[#allocation6 + $0x34] sm:$0xf]
    %v1313 = vld [vmem:[#allocation6 + $0x38] sm:$0xf]
    %v1314 = vld [vmem:[#allocation6 + $0x3c] sm:$0xf]
    %v1323 = vunpack.c.l.b16 %v1291
    %v1324 = vunpack.c.l.b16 %v1292
    %v1325 = vunpack.c.l.b16 %v1293
    %v1326 = vunpack.c.l.b16 %v1294
    %v1327 = vunpack.c.l.b16 %v1295
    %v1328 = vunpack.c.l.b16 %v1296
    %v1329 = vunpack.c.l.b16 %v1297
    %v1330 = vunpack.c.l.b16 %v1298
    %v1331 = vpack.c.b16 %v1324, %v1323
    %v1332 = vpack.c.b16 %v1326, %v1325
    %v1333 = vpack.c.b16 %v1328, %v1327
    %v1334 = vpack.c.b16 %v1330, %v1329
    %v1355 = vunpack.c.l.b16 %v1299
    %v1356 = vunpack.c.l.b16 %v1300
    %v1357 = vunpack.c.l.b16 %v1301
    %v1358 = vunpack.c.l.b16 %v1302
    %v1359 = vunpack.c.l.b16 %v1303
    %v1360 = vunpack.c.l.b16 %v1304
    %v1361 = vunpack.c.l.b16 %v1305
    %v1362 = vunpack.c.l.b16 %v1306
    %v1363 = vunpack.c.l.b16 %v1307
    %v1364 = vunpack.c.l.b16 %v1308
    %v1365 = vunpack.c.l.b16 %v1309
    %v1366 = vunpack.c.l.b16 %v1310
    %v1367 = vunpack.c.l.b16 %v1311
    %v1368 = vunpack.c.l.b16 %v1312
    %v1369 = vunpack.c.l.b16 %v1313
    %v1370 = vunpack.c.l.b16 %v1314
    %v1371 = vpack.c.b16 %v1356, %v1355
    %v1372 = vpack.c.b16 %v1358, %v1357
    %v1373 = vpack.c.b16 %v1360, %v1359
    %v1374 = vpack.c.b16 %v1362, %v1361
    %v1375 = vpack.c.b16 %v1364, %v1363
    %v1376 = vpack.c.b16 %v1366, %v1365
    %v1377 = vpack.c.b16 %v1368, %v1367
    %v1378 = vpack.c.b16 %v1370, %v1369
    %1387 = vmatpush.bf16.msra.mxu0 %v1378
    %1388 = vmatpush.bf16.msra.mxu0 %v1377
    %1389 = vmatpush.bf16.msra.mxu0 %v1376
    %1390 = vmatpush.bf16.msra.mxu0 %v1375
    %1391 = vmatpush.bf16.msra.mxu0 %v1374
    %1392 = vmatpush.bf16.msra.mxu0 %v1373
    %1393 = vmatpush.bf16.msra.mxu0 %v1372
    %1394 = vmatpush.bf16.msra.mxu0 %v1371
    %1395 = vmatmul.bf16.gmra.mxu0 %v1331
    %v1396 = vpop.f32.mrf.mxu0
    %v1397 = vadd.f32 %v116, %v1396
    %v1398 = vpop.f32.mrf.mxu0
    %v1399 = vadd.f32 %v116, %v1398
    %1400 = vmatmul.bf16.gmra.mxu0 %v1332
    %v1401 = vpop.f32.mrf.mxu0
    %v1402 = vadd.f32 %v116, %v1401
    %v1403 = vpop.f32.mrf.mxu0
    %v1404 = vadd.f32 %v116, %v1403
    %1405 = vmatmul.bf16.gmra.mxu0 %v1333
    %v1406 = vpop.f32.mrf.mxu0
    %v1407 = vadd.f32 %v116, %v1406
    %v1408 = vpop.f32.mrf.mxu0
    %v1409 = vadd.f32 %v116, %v1408
    %1410 = vmatmul.bf16.gmra.mxu0 %v1334
    %v1411 = vpop.f32.mrf.mxu0
    %v1412 = vadd.f32 %v116, %v1411
    %v1413 = vpop.f32.mrf.mxu0
    %v1414 = vadd.f32 %v116, %v1413
    %1415 = vdwg.mxu0
    %v1416 = vmax.f32 %v1397, 0.0
    %v1417 = vmax.f32 %v1399, 0.0
    %v1418 = vmax.f32 %v1402, 0.0
    %v1419 = vmax.f32 %v1404, 0.0
    %v1420 = vmax.f32 %v1407, 0.0
    %v1421 = vmax.f32 %v1409, 0.0
    %v1422 = vmax.f32 %v1412, 0.0
    %v1423 = vmax.f32 %v1414, 0.0
    %v1424 = vadd.f32 %v1416, %v1417
    %v1425 = vadd.f32 %v1424, %v1418
    %v1426 = vadd.f32 %v1425, %v1419
    %v1427 = vadd.f32 %v1426, %v1420
    %v1428 = vadd.f32 %v1427, %v1421
    %v1429 = vadd.f32 %v1428, %v1422
    %v1430 = vadd.f32 %v1429, %v1423
    %v1431 = vrot.slane %v1430, 4
    %v1432 = vadd.f32 %v1430, %v1431
    %v1433 = vrot.slane %v1432, 2
    %v1434 = vadd.f32 %v1432, %v1433
    %v1435 = vrot.slane %v1434, 1
    %v1436 = vadd.f32 %v1434, %v1435
    %v1437 = vadd.f32 %v1436, 0.0
    %v1438 = vld [vmem:[%s1290 + $0x20] sm:$0xf]
    %v1439 = vld [vmem:[%s1290 + $0x24] sm:$0xf]
    %v1440 = vld [vmem:[%s1290 + $0x28] sm:$0xf]
    %v1441 = vld [vmem:[%s1290 + $0x2c] sm:$0xf]
    %v1442 = vld [vmem:[%s1290 + $0x30] sm:$0xf]
    %v1443 = vld [vmem:[%s1290 + $0x34] sm:$0xf]
    %v1444 = vld [vmem:[%s1290 + $0x38] sm:$0xf]
    %v1445 = vld [vmem:[%s1290 + $0x3c] sm:$0xf]
    %v1454 = vunpack.c.l.b16 %v1438
    %v1455 = vunpack.c.l.b16 %v1439
    %v1456 = vunpack.c.l.b16 %v1440
    %v1457 = vunpack.c.l.b16 %v1441
    %v1458 = vunpack.c.l.b16 %v1442
    %v1459 = vunpack.c.l.b16 %v1443
    %v1460 = vunpack.c.l.b16 %v1444
    %v1461 = vunpack.c.l.b16 %v1445
    %v1462 = vpack.c.b16 %v1455, %v1454
    %v1463 = vpack.c.b16 %v1457, %v1456
    %v1464 = vpack.c.b16 %v1459, %v1458
    %v1465 = vpack.c.b16 %v1461, %v1460
    %1470 = vmatpush.bf16.msra.mxu0 %v1378
    %1471 = vmatpush.bf16.msra.mxu0 %v1377
    %1472 = vmatpush.bf16.msra.mxu0 %v1376
    %1473 = vmatpush.bf16.msra.mxu0 %v1375
    %1474 = vmatpush.bf16.msra.mxu0 %v1374
    %1475 = vmatpush.bf16.msra.mxu0 %v1373
    %1476 = vmatpush.bf16.msra.mxu0 %v1372
    %1477 = vmatpush.bf16.msra.mxu0 %v1371
    %1478 = vmatmul.bf16.gmra.mxu0 %v1462
    %v1479 = vpop.f32.mrf.mxu0
    %v1480 = vadd.f32 %v116, %v1479
    %v1481 = vpop.f32.mrf.mxu0
    %v1482 = vadd.f32 %v116, %v1481
    %1483 = vmatmul.bf16.gmra.mxu0 %v1463
    %v1484 = vpop.f32.mrf.mxu0
    %v1485 = vadd.f32 %v116, %v1484
    %v1486 = vpop.f32.mrf.mxu0
    %v1487 = vadd.f32 %v116, %v1486
    %1488 = vmatmul.bf16.gmra.mxu0 %v1464
    %v1489 = vpop.f32.mrf.mxu0
    %v1490 = vadd.f32 %v116, %v1489
    %v1491 = vpop.f32.mrf.mxu0
    %v1492 = vadd.f32 %v116, %v1491
    %1493 = vmatmul.bf16.gmra.mxu0 %v1465
    %v1494 = vpop.f32.mrf.mxu0
    %v1495 = vadd.f32 %v116, %v1494
    %v1496 = vpop.f32.mrf.mxu0
    %v1497 = vadd.f32 %v116, %v1496
    %1498 = vdwg.mxu0
    %v1499 = vmax.f32 %v1480, 0.0
    %v1500 = vmax.f32 %v1482, 0.0
    %v1501 = vmax.f32 %v1485, 0.0
    %v1502 = vmax.f32 %v1487, 0.0
    %v1503 = vmax.f32 %v1490, 0.0
    %v1504 = vmax.f32 %v1492, 0.0
    %v1505 = vmax.f32 %v1495, 0.0
    %v1506 = vmax.f32 %v1497, 0.0
    %v1507 = vadd.f32 %v1499, %v1500
    %v1508 = vadd.f32 %v1507, %v1501
    %v1509 = vadd.f32 %v1508, %v1502
    %v1510 = vadd.f32 %v1509, %v1503
    %v1511 = vadd.f32 %v1510, %v1504
    %v1512 = vadd.f32 %v1511, %v1505
    %v1513 = vadd.f32 %v1512, %v1506
    %v1514 = vrot.slane %v1513, 4
    %v1515 = vadd.f32 %v1513, %v1514
    %v1516 = vrot.slane %v1515, 2
    %v1517 = vadd.f32 %v1515, %v1516
    %v1518 = vrot.slane %v1517, 1
    %v1519 = vadd.f32 %v1517, %v1518
    %v1520 = vadd.f32 %v1437, %v1519
    %v1521 = vld [vmem:[%s1290 + $0x40] sm:$0xf]
    %v1522 = vld [vmem:[%s1290 + $0x44] sm:$0xf]
    %v1523 = vld [vmem:[%s1290 + $0x48] sm:$0xf]
    %v1524 = vld [vmem:[%s1290 + $0x4c] sm:$0xf]
    %v1525 = vld [vmem:[%s1290 + $0x50] sm:$0xf]
    %v1526 = vld [vmem:[%s1290 + $0x54] sm:$0xf]
    %v1527 = vld [vmem:[%s1290 + $0x58] sm:$0xf]
    %v1528 = vld [vmem:[%s1290 + $0x5c] sm:$0xf]
    %v1537 = vunpack.c.l.b16 %v1521
    %v1538 = vunpack.c.l.b16 %v1522
    %v1539 = vunpack.c.l.b16 %v1523
    %v1540 = vunpack.c.l.b16 %v1524
    %v1541 = vunpack.c.l.b16 %v1525
    %v1542 = vunpack.c.l.b16 %v1526
    %v1543 = vunpack.c.l.b16 %v1527
    %v1544 = vunpack.c.l.b16 %v1528
    %v1545 = vpack.c.b16 %v1538, %v1537
    %v1546 = vpack.c.b16 %v1540, %v1539
    %v1547 = vpack.c.b16 %v1542, %v1541
    %v1548 = vpack.c.b16 %v1544, %v1543
    %1553 = vmatpush.bf16.msra.mxu0 %v1378
    %1554 = vmatpush.bf16.msra.mxu0 %v1377
    %1555 = vmatpush.bf16.msra.mxu0 %v1376
    %1556 = vmatpush.bf16.msra.mxu0 %v1375
    %1557 = vmatpush.bf16.msra.mxu0 %v1374
    %1558 = vmatpush.bf16.msra.mxu0 %v1373
    %1559 = vmatpush.bf16.msra.mxu0 %v1372
    %1560 = vmatpush.bf16.msra.mxu0 %v1371
    %1561 = vmatmul.bf16.gmra.mxu0 %v1545
    %v1562 = vpop.f32.mrf.mxu0
    %v1563 = vadd.f32 %v116, %v1562
    %v1564 = vpop.f32.mrf.mxu0
    %v1565 = vadd.f32 %v116, %v1564
    %1566 = vmatmul.bf16.gmra.mxu0 %v1546
    %v1567 = vpop.f32.mrf.mxu0
    %v1568 = vadd.f32 %v116, %v1567
    %v1569 = vpop.f32.mrf.mxu0
    %v1570 = vadd.f32 %v116, %v1569
    %1571 = vmatmul.bf16.gmra.mxu0 %v1547
    %v1572 = vpop.f32.mrf.mxu0
    %v1573 = vadd.f32 %v116, %v1572
    %v1574 = vpop.f32.mrf.mxu0
    %v1575 = vadd.f32 %v116, %v1574
    %1576 = vmatmul.bf16.gmra.mxu0 %v1548
    %v1577 = vpop.f32.mrf.mxu0
    %v1578 = vadd.f32 %v116, %v1577
    %v1579 = vpop.f32.mrf.mxu0
    %v1580 = vadd.f32 %v116, %v1579
    %1581 = vdwg.mxu0
    %v1582 = vmax.f32 %v1563, 0.0
    %v1583 = vmax.f32 %v1565, 0.0
    %v1584 = vmax.f32 %v1568, 0.0
    %v1585 = vmax.f32 %v1570, 0.0
    %v1586 = vmax.f32 %v1573, 0.0
    %v1587 = vmax.f32 %v1575, 0.0
    %v1588 = vmax.f32 %v1578, 0.0
    %v1589 = vmax.f32 %v1580, 0.0
    %v1590 = vadd.f32 %v1582, %v1583
    %v1591 = vadd.f32 %v1590, %v1584
    %v1592 = vadd.f32 %v1591, %v1585
    %v1593 = vadd.f32 %v1592, %v1586
    %v1594 = vadd.f32 %v1593, %v1587
    %v1595 = vadd.f32 %v1594, %v1588
    %v1596 = vadd.f32 %v1595, %v1589
    %v1597 = vrot.slane %v1596, 4
    %v1598 = vadd.f32 %v1596, %v1597
    %v1599 = vrot.slane %v1598, 2
    %v1600 = vadd.f32 %v1598, %v1599
    %v1601 = vrot.slane %v1600, 1
    %v1602 = vadd.f32 %v1600, %v1601
    %v1603 = vadd.f32 %v1520, %v1602
    %v1604 = vld [vmem:[%s1290 + $0x60] sm:$0xf]
    %v1605 = vld [vmem:[%s1290 + $0x64] sm:$0xf]
    %v1606 = vld [vmem:[%s1290 + $0x68] sm:$0xf]
    %v1607 = vld [vmem:[%s1290 + $0x6c] sm:$0xf]
    %v1608 = vld [vmem:[%s1290 + $0x70] sm:$0xf]
    %v1609 = vld [vmem:[%s1290 + $0x74] sm:$0xf]
    %v1610 = vld [vmem:[%s1290 + $0x78] sm:$0xf]
    %v1611 = vld [vmem:[%s1290 + $0x7c] sm:$0xf]
    %v1620 = vunpack.c.l.b16 %v1604
    %v1621 = vunpack.c.l.b16 %v1605
    %v1622 = vunpack.c.l.b16 %v1606
    %v1623 = vunpack.c.l.b16 %v1607
    %v1624 = vunpack.c.l.b16 %v1608
    %v1625 = vunpack.c.l.b16 %v1609
    %v1626 = vunpack.c.l.b16 %v1610
    %v1627 = vunpack.c.l.b16 %v1611
    %v1628 = vpack.c.b16 %v1621, %v1620
    %v1629 = vpack.c.b16 %v1623, %v1622
    %v1630 = vpack.c.b16 %v1625, %v1624
    %v1631 = vpack.c.b16 %v1627, %v1626
    %1636 = vmatpush.bf16.msra.mxu0 %v1378
    %1637 = vmatpush.bf16.msra.mxu0 %v1377
    %1638 = vmatpush.bf16.msra.mxu0 %v1376
    %1639 = vmatpush.bf16.msra.mxu0 %v1375
    %1640 = vmatpush.bf16.msra.mxu0 %v1374
    %1641 = vmatpush.bf16.msra.mxu0 %v1373
    %1642 = vmatpush.bf16.msra.mxu0 %v1372
    %1643 = vmatpush.bf16.msra.mxu0 %v1371
    %1644 = vmatmul.bf16.gmra.mxu0 %v1628
    %v1645 = vpop.f32.mrf.mxu0
    %v1646 = vadd.f32 %v116, %v1645
    %v1647 = vpop.f32.mrf.mxu0
    %v1648 = vadd.f32 %v116, %v1647
    %1649 = vmatmul.bf16.gmra.mxu0 %v1629
    %v1650 = vpop.f32.mrf.mxu0
    %v1651 = vadd.f32 %v116, %v1650
    %v1652 = vpop.f32.mrf.mxu0
    %v1653 = vadd.f32 %v116, %v1652
    %1654 = vmatmul.bf16.gmra.mxu0 %v1630
    %v1655 = vpop.f32.mrf.mxu0
    %v1656 = vadd.f32 %v116, %v1655
    %v1657 = vpop.f32.mrf.mxu0
    %v1658 = vadd.f32 %v116, %v1657
    %1659 = vmatmul.bf16.gmra.mxu0 %v1631
    %v1660 = vpop.f32.mrf.mxu0
    %v1661 = vadd.f32 %v116, %v1660
    %v1662 = vpop.f32.mrf.mxu0
    %v1663 = vadd.f32 %v116, %v1662
    %1664 = vdwg.mxu0
    %v1665 = vmax.f32 %v1646, 0.0
    %v1666 = vmax.f32 %v1648, 0.0
    %v1667 = vmax.f32 %v1651, 0.0
    %v1668 = vmax.f32 %v1653, 0.0
    %v1669 = vmax.f32 %v1656, 0.0
    %v1670 = vmax.f32 %v1658, 0.0
    %v1671 = vmax.f32 %v1661, 0.0
    %v1672 = vmax.f32 %v1663, 0.0
    %v1673 = vadd.f32 %v1665, %v1666
    %v1674 = vadd.f32 %v1673, %v1667
    %v1675 = vadd.f32 %v1674, %v1668
    %v1676 = vadd.f32 %v1675, %v1669
    %v1677 = vadd.f32 %v1676, %v1670
    %v1678 = vadd.f32 %v1677, %v1671
    %v1679 = vadd.f32 %v1678, %v1672
    %v1680 = vrot.slane %v1679, 4
    %v1681 = vadd.f32 %v1679, %v1680
    %v1682 = vrot.slane %v1681, 2
    %v1683 = vadd.f32 %v1681, %v1682
    %v1684 = vrot.slane %v1683, 1
    %v1685 = vadd.f32 %v1683, %v1684
    %v1686 = vadd.f32 %v1603, %v1685
    %v1687 = vmul.f32 %v1686, 0.00390625
    %1688 = vst [vmem:[#allocation2 + $0x3] sm:$0x1] %v1687
    %s1689 = scalar_lea.vmem [#allocation3], 512
    %v1690 = vld [vmem:[%s1689] sm:$0xf]
    %v1691 = vld [vmem:[%s1689 + $0x4] sm:$0xf]
    %v1692 = vld [vmem:[%s1689 + $0x8] sm:$0xf]
    %v1693 = vld [vmem:[%s1689 + $0xc] sm:$0xf]
    %v1694 = vld [vmem:[%s1689 + $0x10] sm:$0xf]
    %v1695 = vld [vmem:[%s1689 + $0x14] sm:$0xf]
    %v1696 = vld [vmem:[%s1689 + $0x18] sm:$0xf]
    %v1697 = vld [vmem:[%s1689 + $0x1c] sm:$0xf]
    %v1698 = vld [vmem:[#allocation6] sm:$0xf]
    %v1699 = vld [vmem:[#allocation6 + $0x4] sm:$0xf]
    %v1700 = vld [vmem:[#allocation6 + $0x8] sm:$0xf]
    %v1701 = vld [vmem:[#allocation6 + $0xc] sm:$0xf]
    %v1702 = vld [vmem:[#allocation6 + $0x10] sm:$0xf]
    %v1703 = vld [vmem:[#allocation6 + $0x14] sm:$0xf]
    %v1704 = vld [vmem:[#allocation6 + $0x18] sm:$0xf]
    %v1705 = vld [vmem:[#allocation6 + $0x1c] sm:$0xf]
    %v1706 = vld [vmem:[#allocation6 + $0x20] sm:$0xf]
    %v1707 = vld [vmem:[#allocation6 + $0x24] sm:$0xf]
    %v1708 = vld [vmem:[#allocation6 + $0x28] sm:$0xf]
    %v1709 = vld [vmem:[#allocation6 + $0x2c] sm:$0xf]
    %v1710 = vld [vmem:[#allocation6 + $0x30] sm:$0xf]
    %v1711 = vld [vmem:[#allocation6 + $0x34] sm:$0xf]
    %v1712 = vld [vmem:[#allocation6 + $0x38] sm:$0xf]
    %v1713 = vld [vmem:[#allocation6 + $0x3c] sm:$0xf]
    %v1722 = vunpack.c.l.b16 %v1690
    %v1723 = vunpack.c.l.b16 %v1691
    %v1724 = vunpack.c.l.b16 %v1692
    %v1725 = vunpack.c.l.b16 %v1693
    %v1726 = vunpack.c.l.b16 %v1694
    %v1727 = vunpack.c.l.b16 %v1695
    %v1728 = vunpack.c.l.b16 %v1696
    %v1729 = vunpack.c.l.b16 %v1697
    %v1730 = vpack.c.b16 %v1723, %v1722
    %v1731 = vpack.c.b16 %v1725, %v1724
    %v1732 = vpack.c.b16 %v1727, %v1726
    %v1733 = vpack.c.b16 %v1729, %v1728
    %v1754 = vunpack.c.l.b16 %v1698
    %v1755 = vunpack.c.l.b16 %v1699
    %v1756 = vunpack.c.l.b16 %v1700
    %v1757 = vunpack.c.l.b16 %v1701
    %v1758 = vunpack.c.l.b16 %v1702
    %v1759 = vunpack.c.l.b16 %v1703
    %v1760 = vunpack.c.l.b16 %v1704
    %v1761 = vunpack.c.l.b16 %v1705
    %v1762 = vunpack.c.l.b16 %v1706
    %v1763 = vunpack.c.l.b16 %v1707
    %v1764 = vunpack.c.l.b16 %v1708
    %v1765 = vunpack.c.l.b16 %v1709
    %v1766 = vunpack.c.l.b16 %v1710
    %v1767 = vunpack.c.l.b16 %v1711
    %v1768 = vunpack.c.l.b16 %v1712
    %v1769 = vunpack.c.l.b16 %v1713
    %v1770 = vpack.c.b16 %v1755, %v1754
    %v1771 = vpack.c.b16 %v1757, %v1756
    %v1772 = vpack.c.b16 %v1759, %v1758
    %v1773 = vpack.c.b16 %v1761, %v1760
    %v1774 = vpack.c.b16 %v1763, %v1762
    %v1775 = vpack.c.b16 %v1765, %v1764
    %v1776 = vpack.c.b16 %v1767, %v1766
    %v1777 = vpack.c.b16 %v1769, %v1768
    %1786 = vmatpush.bf16.msra.mxu0 %v1777
    %1787 = vmatpush.bf16.msra.mxu0 %v1776
    %1788 = vmatpush.bf16.msra.mxu0 %v1775
    %1789 = vmatpush.bf16.msra.mxu0 %v1774
    %1790 = vmatpush.bf16.msra.mxu0 %v1773
    %1791 = vmatpush.bf16.msra.mxu0 %v1772
    %1792 = vmatpush.bf16.msra.mxu0 %v1771
    %1793 = vmatpush.bf16.msra.mxu0 %v1770
    %1794 = vmatmul.bf16.gmra.mxu0 %v1730
    %v1795 = vpop.f32.mrf.mxu0
    %v1796 = vadd.f32 %v116, %v1795
    %v1797 = vpop.f32.mrf.mxu0
    %v1798 = vadd.f32 %v116, %v1797
    %1799 = vmatmul.bf16.gmra.mxu0 %v1731
    %v1800 = vpop.f32.mrf.mxu0
    %v1801 = vadd.f32 %v116, %v1800
    %v1802 = vpop.f32.mrf.mxu0
    %v1803 = vadd.f32 %v116, %v1802
    %1804 = vmatmul.bf16.gmra.mxu0 %v1732
    %v1805 = vpop.f32.mrf.mxu0
    %v1806 = vadd.f32 %v116, %v1805
    %v1807 = vpop.f32.mrf.mxu0
    %v1808 = vadd.f32 %v116, %v1807
    %1809 = vmatmul.bf16.gmra.mxu0 %v1733
    %v1810 = vpop.f32.mrf.mxu0
    %v1811 = vadd.f32 %v116, %v1810
    %v1812 = vpop.f32.mrf.mxu0
    %v1813 = vadd.f32 %v116, %v1812
    %1814 = vdwg.mxu0
    %v1815 = vmax.f32 %v1796, 0.0
    %v1816 = vmax.f32 %v1798, 0.0
    %v1817 = vmax.f32 %v1801, 0.0
    %v1818 = vmax.f32 %v1803, 0.0
    %v1819 = vmax.f32 %v1806, 0.0
    %v1820 = vmax.f32 %v1808, 0.0
    %v1821 = vmax.f32 %v1811, 0.0
    %v1822 = vmax.f32 %v1813, 0.0
    %v1823 = vadd.f32 %v1815, %v1816
    %v1824 = vadd.f32 %v1823, %v1817
    %v1825 = vadd.f32 %v1824, %v1818
    %v1826 = vadd.f32 %v1825, %v1819
    %v1827 = vadd.f32 %v1826, %v1820
    %v1828 = vadd.f32 %v1827, %v1821
    %v1829 = vadd.f32 %v1828, %v1822
    %v1830 = vrot.slane %v1829, 4
    %v1831 = vadd.f32 %v1829, %v1830
    %v1832 = vrot.slane %v1831, 2
    %v1833 = vadd.f32 %v1831, %v1832
    %v1834 = vrot.slane %v1833, 1
    %v1835 = vadd.f32 %v1833, %v1834
    %v1836 = vadd.f32 %v1835, 0.0
    %v1837 = vld [vmem:[%s1689 + $0x20] sm:$0xf]
    %v1838 = vld [vmem:[%s1689 + $0x24] sm:$0xf]
    %v1839 = vld [vmem:[%s1689 + $0x28] sm:$0xf]
    %v1840 = vld [vmem:[%s1689 + $0x2c] sm:$0xf]
    %v1841 = vld [vmem:[%s1689 + $0x30] sm:$0xf]
    %v1842 = vld [vmem:[%s1689 + $0x34] sm:$0xf]
    %v1843 = vld [vmem:[%s1689 + $0x38] sm:$0xf]
    %v1844 = vld [vmem:[%s1689 + $0x3c] sm:$0xf]
    %v1853 = vunpack.c.l.b16 %v1837
    %v1854 = vunpack.c.l.b16 %v1838
    %v1855 = vunpack.c.l.b16 %v1839
    %v1856 = vunpack.c.l.b16 %v1840
    %v1857 = vunpack.c.l.b16 %v1841
    %v1858 = vunpack.c.l.b16 %v1842
    %v1859 = vunpack.c.l.b16 %v1843
    %v1860 = vunpack.c.l.b16 %v1844
    %v1861 = vpack.c.b16 %v1854, %v1853
    %v1862 = vpack.c.b16 %v1856, %v1855
    %v1863 = vpack.c.b16 %v1858, %v1857
    %v1864 = vpack.c.b16 %v1860, %v1859
    %1869 = vmatpush.bf16.msra.mxu0 %v1777
    %1870 = vmatpush.bf16.msra.mxu0 %v1776
    %1871 = vmatpush.bf16.msra.mxu0 %v1775
    %1872 = vmatpush.bf16.msra.mxu0 %v1774
    %1873 = vmatpush.bf16.msra.mxu0 %v1773
    %1874 = vmatpush.bf16.msra.mxu0 %v1772
    %1875 = vmatpush.bf16.msra.mxu0 %v1771
    %1876 = vmatpush.bf16.msra.mxu0 %v1770
    %1877 = vmatmul.bf16.gmra.mxu0 %v1861
    %v1878 = vpop.f32.mrf.mxu0
    %v1879 = vadd.f32 %v116, %v1878
    %v1880 = vpop.f32.mrf.mxu0
    %v1881 = vadd.f32 %v116, %v1880
    %1882 = vmatmul.bf16.gmra.mxu0 %v1862
    %v1883 = vpop.f32.mrf.mxu0
    %v1884 = vadd.f32 %v116, %v1883
    %v1885 = vpop.f32.mrf.mxu0
    %v1886 = vadd.f32 %v116, %v1885
    %1887 = vmatmul.bf16.gmra.mxu0 %v1863
    %v1888 = vpop.f32.mrf.mxu0
    %v1889 = vadd.f32 %v116, %v1888
    %v1890 = vpop.f32.mrf.mxu0
    %v1891 = vadd.f32 %v116, %v1890
    %1892 = vmatmul.bf16.gmra.mxu0 %v1864
    %v1893 = vpop.f32.mrf.mxu0
    %v1894 = vadd.f32 %v116, %v1893
    %v1895 = vpop.f32.mrf.mxu0
    %v1896 = vadd.f32 %v116, %v1895
    %1897 = vdwg.mxu0
    %v1898 = vmax.f32 %v1879, 0.0
    %v1899 = vmax.f32 %v1881, 0.0
    %v1900 = vmax.f32 %v1884, 0.0
    %v1901 = vmax.f32 %v1886, 0.0
    %v1902 = vmax.f32 %v1889, 0.0
    %v1903 = vmax.f32 %v1891, 0.0
    %v1904 = vmax.f32 %v1894, 0.0
    %v1905 = vmax.f32 %v1896, 0.0
    %v1906 = vadd.f32 %v1898, %v1899
    %v1907 = vadd.f32 %v1906, %v1900
    %v1908 = vadd.f32 %v1907, %v1901
    %v1909 = vadd.f32 %v1908, %v1902
    %v1910 = vadd.f32 %v1909, %v1903
    %v1911 = vadd.f32 %v1910, %v1904
    %v1912 = vadd.f32 %v1911, %v1905
    %v1913 = vrot.slane %v1912, 4
    %v1914 = vadd.f32 %v1912, %v1913
    %v1915 = vrot.slane %v1914, 2
    %v1916 = vadd.f32 %v1914, %v1915
    %v1917 = vrot.slane %v1916, 1
    %v1918 = vadd.f32 %v1916, %v1917
    %v1919 = vadd.f32 %v1836, %v1918
    %v1920 = vld [vmem:[%s1689 + $0x40] sm:$0xf]
    %v1921 = vld [vmem:[%s1689 + $0x44] sm:$0xf]
    %v1922 = vld [vmem:[%s1689 + $0x48] sm:$0xf]
    %v1923 = vld [vmem:[%s1689 + $0x4c] sm:$0xf]
    %v1924 = vld [vmem:[%s1689 + $0x50] sm:$0xf]
    %v1925 = vld [vmem:[%s1689 + $0x54] sm:$0xf]
    %v1926 = vld [vmem:[%s1689 + $0x58] sm:$0xf]
    %v1927 = vld [vmem:[%s1689 + $0x5c] sm:$0xf]
    %v1936 = vunpack.c.l.b16 %v1920
    %v1937 = vunpack.c.l.b16 %v1921
    %v1938 = vunpack.c.l.b16 %v1922
    %v1939 = vunpack.c.l.b16 %v1923
    %v1940 = vunpack.c.l.b16 %v1924
    %v1941 = vunpack.c.l.b16 %v1925
    %v1942 = vunpack.c.l.b16 %v1926
    %v1943 = vunpack.c.l.b16 %v1927
    %v1944 = vpack.c.b16 %v1937, %v1936
    %v1945 = vpack.c.b16 %v1939, %v1938
    %v1946 = vpack.c.b16 %v1941, %v1940
    %v1947 = vpack.c.b16 %v1943, %v1942
    %1952 = vmatpush.bf16.msra.mxu0 %v1777
    %1953 = vmatpush.bf16.msra.mxu0 %v1776
    %1954 = vmatpush.bf16.msra.mxu0 %v1775
    %1955 = vmatpush.bf16.msra.mxu0 %v1774
    %1956 = vmatpush.bf16.msra.mxu0 %v1773
    %1957 = vmatpush.bf16.msra.mxu0 %v1772
    %1958 = vmatpush.bf16.msra.mxu0 %v1771
    %1959 = vmatpush.bf16.msra.mxu0 %v1770
    %1960 = vmatmul.bf16.gmra.mxu0 %v1944
    %v1961 = vpop.f32.mrf.mxu0
    %v1962 = vadd.f32 %v116, %v1961
    %v1963 = vpop.f32.mrf.mxu0
    %v1964 = vadd.f32 %v116, %v1963
    %1965 = vmatmul.bf16.gmra.mxu0 %v1945
    %v1966 = vpop.f32.mrf.mxu0
    %v1967 = vadd.f32 %v116, %v1966
    %v1968 = vpop.f32.mrf.mxu0
    %v1969 = vadd.f32 %v116, %v1968
    %1970 = vmatmul.bf16.gmra.mxu0 %v1946
    %v1971 = vpop.f32.mrf.mxu0
    %v1972 = vadd.f32 %v116, %v1971
    %v1973 = vpop.f32.mrf.mxu0
    %v1974 = vadd.f32 %v116, %v1973
    %1975 = vmatmul.bf16.gmra.mxu0 %v1947
    %v1976 = vpop.f32.mrf.mxu0
    %v1977 = vadd.f32 %v116, %v1976
    %v1978 = vpop.f32.mrf.mxu0
    %v1979 = vadd.f32 %v116, %v1978
    %1980 = vdwg.mxu0
    %v1981 = vmax.f32 %v1962, 0.0
    %v1982 = vmax.f32 %v1964, 0.0
    %v1983 = vmax.f32 %v1967, 0.0
    %v1984 = vmax.f32 %v1969, 0.0
    %v1985 = vmax.f32 %v1972, 0.0
    %v1986 = vmax.f32 %v1974, 0.0
    %v1987 = vmax.f32 %v1977, 0.0
    %v1988 = vmax.f32 %v1979, 0.0
    %v1989 = vadd.f32 %v1981, %v1982
    %v1990 = vadd.f32 %v1989, %v1983
    %v1991 = vadd.f32 %v1990, %v1984
    %v1992 = vadd.f32 %v1991, %v1985
    %v1993 = vadd.f32 %v1992, %v1986
    %v1994 = vadd.f32 %v1993, %v1987
    %v1995 = vadd.f32 %v1994, %v1988
    %v1996 = vrot.slane %v1995, 4
    %v1997 = vadd.f32 %v1995, %v1996
    %v1998 = vrot.slane %v1997, 2
    %v1999 = vadd.f32 %v1997, %v1998
    %v2000 = vrot.slane %v1999, 1
    %v2001 = vadd.f32 %v1999, %v2000
    %v2002 = vadd.f32 %v1919, %v2001
    %v2003 = vld [vmem:[%s1689 + $0x60] sm:$0xf]
    %v2004 = vld [vmem:[%s1689 + $0x64] sm:$0xf]
    %v2005 = vld [vmem:[%s1689 + $0x68] sm:$0xf]
    %v2006 = vld [vmem:[%s1689 + $0x6c] sm:$0xf]
    %v2007 = vld [vmem:[%s1689 + $0x70] sm:$0xf]
    %v2008 = vld [vmem:[%s1689 + $0x74] sm:$0xf]
    %v2009 = vld [vmem:[%s1689 + $0x78] sm:$0xf]
    %v2010 = vld [vmem:[%s1689 + $0x7c] sm:$0xf]
    %v2019 = vunpack.c.l.b16 %v2003
    %v2020 = vunpack.c.l.b16 %v2004
    %v2021 = vunpack.c.l.b16 %v2005
    %v2022 = vunpack.c.l.b16 %v2006
    %v2023 = vunpack.c.l.b16 %v2007
    %v2024 = vunpack.c.l.b16 %v2008
    %v2025 = vunpack.c.l.b16 %v2009
    %v2026 = vunpack.c.l.b16 %v2010
    %v2027 = vpack.c.b16 %v2020, %v2019
    %v2028 = vpack.c.b16 %v2022, %v2021
    %v2029 = vpack.c.b16 %v2024, %v2023
    %v2030 = vpack.c.b16 %v2026, %v2025
    %2035 = vmatpush.bf16.msra.mxu0 %v1777
    %2036 = vmatpush.bf16.msra.mxu0 %v1776
    %2037 = vmatpush.bf16.msra.mxu0 %v1775
    %2038 = vmatpush.bf16.msra.mxu0 %v1774
    %2039 = vmatpush.bf16.msra.mxu0 %v1773
    %2040 = vmatpush.bf16.msra.mxu0 %v1772
    %2041 = vmatpush.bf16.msra.mxu0 %v1771
    %2042 = vmatpush.bf16.msra.mxu0 %v1770
    %2043 = vmatmul.bf16.gmra.mxu0 %v2027
    %v2044 = vpop.f32.mrf.mxu0
    %v2045 = vadd.f32 %v116, %v2044
    %v2046 = vpop.f32.mrf.mxu0
    %v2047 = vadd.f32 %v116, %v2046
    %2048 = vmatmul.bf16.gmra.mxu0 %v2028
    %v2049 = vpop.f32.mrf.mxu0
    %v2050 = vadd.f32 %v116, %v2049
    %v2051 = vpop.f32.mrf.mxu0
    %v2052 = vadd.f32 %v116, %v2051
    %2053 = vmatmul.bf16.gmra.mxu0 %v2029
    %v2054 = vpop.f32.mrf.mxu0
    %v2055 = vadd.f32 %v116, %v2054
    %v2056 = vpop.f32.mrf.mxu0
    %v2057 = vadd.f32 %v116, %v2056
    %2058 = vmatmul.bf16.gmra.mxu0 %v2030
    %v2059 = vpop.f32.mrf.mxu0
    %v2060 = vadd.f32 %v116, %v2059
    %v2061 = vpop.f32.mrf.mxu0
    %v2062 = vadd.f32 %v116, %v2061
    %2063 = vdwg.mxu0
    %v2064 = vmax.f32 %v2045, 0.0
    %v2065 = vmax.f32 %v2047, 0.0
    %v2066 = vmax.f32 %v2050, 0.0
    %v2067 = vmax.f32 %v2052, 0.0
    %v2068 = vmax.f32 %v2055, 0.0
    %v2069 = vmax.f32 %v2057, 0.0
    %v2070 = vmax.f32 %v2060, 0.0
    %v2071 = vmax.f32 %v2062, 0.0
    %v2072 = vadd.f32 %v2064, %v2065
    %v2073 = vadd.f32 %v2072, %v2066
    %v2074 = vadd.f32 %v2073, %v2067
    %v2075 = vadd.f32 %v2074, %v2068
    %v2076 = vadd.f32 %v2075, %v2069
    %v2077 = vadd.f32 %v2076, %v2070
    %v2078 = vadd.f32 %v2077, %v2071
    %v2079 = vrot.slane %v2078, 4
    %v2080 = vadd.f32 %v2078, %v2079
    %v2081 = vrot.slane %v2080, 2
    %v2082 = vadd.f32 %v2080, %v2081
    %v2083 = vrot.slane %v2082, 1
    %v2084 = vadd.f32 %v2082, %v2083
    %v2085 = vadd.f32 %v2002, %v2084
    %v2086 = vmul.f32 %v2085, 0.00390625
    %2087 = vst [vmem:[#allocation2 + $0x4] sm:$0x1] %v2086
    %s2088 = scalar_lea.vmem [#allocation3], 640
    %v2089 = vld [vmem:[%s2088] sm:$0xf]
    %v2090 = vld [vmem:[%s2088 + $0x4] sm:$0xf]
    %v2091 = vld [vmem:[%s2088 + $0x8] sm:$0xf]
    %v2092 = vld [vmem:[%s2088 + $0xc] sm:$0xf]
    %v2093 = vld [vmem:[%s2088 + $0x10] sm:$0xf]
    %v2094 = vld [vmem:[%s2088 + $0x14] sm:$0xf]
    %v2095 = vld [vmem:[%s2088 + $0x18] sm:$0xf]
    %v2096 = vld [vmem:[%s2088 + $0x1c] sm:$0xf]
    %v2097 = vld [vmem:[#allocation6] sm:$0xf]
    %v2098 = vld [vmem:[#allocation6 + $0x4] sm:$0xf]
    %v2099 = vld [vmem:[#allocation6 + $0x8] sm:$0xf]
    %v2100 = vld [vmem:[#allocation6 + $0xc] sm:$0xf]
    %v2101 = vld [vmem:[#allocation6 + $0x10] sm:$0xf]
    %v2102 = vld [vmem:[#allocation6 + $0x14] sm:$0xf]
    %v2103 = vld [vmem:[#allocation6 + $0x18] sm:$0xf]
    %v2104 = vld [vmem:[#allocation6 + $0x1c] sm:$0xf]
    %v2105 = vld [vmem:[#allocation6 + $0x20] sm:$0xf]
    %v2106 = vld [vmem:[#allocation6 + $0x24] sm:$0xf]
    %v2107 = vld [vmem:[#allocation6 + $0x28] sm:$0xf]
    %v2108 = vld [vmem:[#allocation6 + $0x2c] sm:$0xf]
    %v2109 = vld [vmem:[#allocation6 + $0x30] sm:$0xf]
    %v2110 = vld [vmem:[#allocation6 + $0x34] sm:$0xf]
    %v2111 = vld [vmem:[#allocation6 + $0x38] sm:$0xf]
    %v2112 = vld [vmem:[#allocation6 + $0x3c] sm:$0xf]
    %v2121 = vunpack.c.l.b16 %v2089
    %v2122 = vunpack.c.l.b16 %v2090
    %v2123 = vunpack.c.l.b16 %v2091
    %v2124 = vunpack.c.l.b16 %v2092
    %v2125 = vunpack.c.l.b16 %v2093
    %v2126 = vunpack.c.l.b16 %v2094
    %v2127 = vunpack.c.l.b16 %v2095
    %v2128 = vunpack.c.l.b16 %v2096
    %v2129 = vpack.c.b16 %v2122, %v2121
    %v2130 = vpack.c.b16 %v2124, %v2123
    %v2131 = vpack.c.b16 %v2126, %v2125
    %v2132 = vpack.c.b16 %v2128, %v2127
    %v2153 = vunpack.c.l.b16 %v2097
    %v2154 = vunpack.c.l.b16 %v2098
    %v2155 = vunpack.c.l.b16 %v2099
    %v2156 = vunpack.c.l.b16 %v2100
    %v2157 = vunpack.c.l.b16 %v2101
    %v2158 = vunpack.c.l.b16 %v2102
    %v2159 = vunpack.c.l.b16 %v2103
    %v2160 = vunpack.c.l.b16 %v2104
    %v2161 = vunpack.c.l.b16 %v2105
    %v2162 = vunpack.c.l.b16 %v2106
    %v2163 = vunpack.c.l.b16 %v2107
    %v2164 = vunpack.c.l.b16 %v2108
    %v2165 = vunpack.c.l.b16 %v2109
    %v2166 = vunpack.c.l.b16 %v2110
    %v2167 = vunpack.c.l.b16 %v2111
    %v2168 = vunpack.c.l.b16 %v2112
    %v2169 = vpack.c.b16 %v2154, %v2153
    %v2170 = vpack.c.b16 %v2156, %v2155
    %v2171 = vpack.c.b16 %v2158, %v2157
    %v2172 = vpack.c.b16 %v2160, %v2159
    %v2173 = vpack.c.b16 %v2162, %v2161
    %v2174 = vpack.c.b16 %v2164, %v2163
    %v2175 = vpack.c.b16 %v2166, %v2165
    %v2176 = vpack.c.b16 %v2168, %v2167
    %2185 = vmatpush.bf16.msra.mxu0 %v2176
    %2186 = vmatpush.bf16.msra.mxu0 %v2175
    %2187 = vmatpush.bf16.msra.mxu0 %v2174
    %2188 = vmatpush.bf16.msra.mxu0 %v2173
    %2189 = vmatpush.bf16.msra.mxu0 %v2172
    %2190 = vmatpush.bf16.msra.mxu0 %v2171
    %2191 = vmatpush.bf16.msra.mxu0 %v2170
    %2192 = vmatpush.bf16.msra.mxu0 %v2169
    %2193 = vmatmul.bf16.gmra.mxu0 %v2129
    %v2194 = vpop.f32.mrf.mxu0
    %v2195 = vadd.f32 %v116, %v2194
    %v2196 = vpop.f32.mrf.mxu0
    %v2197 = vadd.f32 %v116, %v2196
    %2198 = vmatmul.bf16.gmra.mxu0 %v2130
    %v2199 = vpop.f32.mrf.mxu0
    %v2200 = vadd.f32 %v116, %v2199
    %v2201 = vpop.f32.mrf.mxu0
    %v2202 = vadd.f32 %v116, %v2201
    %2203 = vmatmul.bf16.gmra.mxu0 %v2131
    %v2204 = vpop.f32.mrf.mxu0
    %v2205 = vadd.f32 %v116, %v2204
    %v2206 = vpop.f32.mrf.mxu0
    %v2207 = vadd.f32 %v116, %v2206
    %2208 = vmatmul.bf16.gmra.mxu0 %v2132
    %v2209 = vpop.f32.mrf.mxu0
    %v2210 = vadd.f32 %v116, %v2209
    %v2211 = vpop.f32.mrf.mxu0
    %v2212 = vadd.f32 %v116, %v2211
    %2213 = vdwg.mxu0
    %v2214 = vmax.f32 %v2195, 0.0
    %v2215 = vmax.f32 %v2197, 0.0
    %v2216 = vmax.f32 %v2200, 0.0
    %v2217 = vmax.f32 %v2202, 0.0
    %v2218 = vmax.f32 %v2205, 0.0
    %v2219 = vmax.f32 %v2207, 0.0
    %v2220 = vmax.f32 %v2210, 0.0
    %v2221 = vmax.f32 %v2212, 0.0
    %v2222 = vadd.f32 %v2214, %v2215
    %v2223 = vadd.f32 %v2222, %v2216
    %v2224 = vadd.f32 %v2223, %v2217
    %v2225 = vadd.f32 %v2224, %v2218
    %v2226 = vadd.f32 %v2225, %v2219
    %v2227 = vadd.f32 %v2226, %v2220
    %v2228 = vadd.f32 %v2227, %v2221
    %v2229 = vrot.slane %v2228, 4
    %v2230 = vadd.f32 %v2228, %v2229
    %v2231 = vrot.slane %v2230, 2
    %v2232 = vadd.f32 %v2230, %v2231
    %v2233 = vrot.slane %v2232, 1
    %v2234 = vadd.f32 %v2232, %v2233
    %v2235 = vadd.f32 %v2234, 0.0
    %v2236 = vld [vmem:[%s2088 + $0x20] sm:$0xf]
    %v2237 = vld [vmem:[%s2088 + $0x24] sm:$0xf]
    %v2238 = vld [vmem:[%s2088 + $0x28] sm:$0xf]
    %v2239 = vld [vmem:[%s2088 + $0x2c] sm:$0xf]
    %v2240 = vld [vmem:[%s2088 + $0x30] sm:$0xf]
    %v2241 = vld [vmem:[%s2088 + $0x34] sm:$0xf]
    %v2242 = vld [vmem:[%s2088 + $0x38] sm:$0xf]
    %v2243 = vld [vmem:[%s2088 + $0x3c] sm:$0xf]
    %v2252 = vunpack.c.l.b16 %v2236
    %v2253 = vunpack.c.l.b16 %v2237
    %v2254 = vunpack.c.l.b16 %v2238
    %v2255 = vunpack.c.l.b16 %v2239
    %v2256 = vunpack.c.l.b16 %v2240
    %v2257 = vunpack.c.l.b16 %v2241
    %v2258 = vunpack.c.l.b16 %v2242
    %v2259 = vunpack.c.l.b16 %v2243
    %v2260 = vpack.c.b16 %v2253, %v2252
    %v2261 = vpack.c.b16 %v2255, %v2254
    %v2262 = vpack.c.b16 %v2257, %v2256
    %v2263 = vpack.c.b16 %v2259, %v2258
    %2268 = vmatpush.bf16.msra.mxu0 %v2176
    %2269 = vmatpush.bf16.msra.mxu0 %v2175
    %2270 = vmatpush.bf16.msra.mxu0 %v2174
    %2271 = vmatpush.bf16.msra.mxu0 %v2173
    %2272 = vmatpush.bf16.msra.mxu0 %v2172
    %2273 = vmatpush.bf16.msra.mxu0 %v2171
    %2274 = vmatpush.bf16.msra.mxu0 %v2170
    %2275 = vmatpush.bf16.msra.mxu0 %v2169
    %2276 = vmatmul.bf16.gmra.mxu0 %v2260
    %v2277 = vpop.f32.mrf.mxu0
    %v2278 = vadd.f32 %v116, %v2277
    %v2279 = vpop.f32.mrf.mxu0
    %v2280 = vadd.f32 %v116, %v2279
    %2281 = vmatmul.bf16.gmra.mxu0 %v2261
    %v2282 = vpop.f32.mrf.mxu0
    %v2283 = vadd.f32 %v116, %v2282
    %v2284 = vpop.f32.mrf.mxu0
    %v2285 = vadd.f32 %v116, %v2284
    %2286 = vmatmul.bf16.gmra.mxu0 %v2262
    %v2287 = vpop.f32.mrf.mxu0
    %v2288 = vadd.f32 %v116, %v2287
    %v2289 = vpop.f32.mrf.mxu0
    %v2290 = vadd.f32 %v116, %v2289
    %2291 = vmatmul.bf16.gmra.mxu0 %v2263
    %v2292 = vpop.f32.mrf.mxu0
    %v2293 = vadd.f32 %v116, %v2292
    %v2294 = vpop.f32.mrf.mxu0
    %v2295 = vadd.f32 %v116, %v2294
    %2296 = vdwg.mxu0
    %v2297 = vmax.f32 %v2278, 0.0
    %v2298 = vmax.f32 %v2280, 0.0
    %v2299 = vmax.f32 %v2283, 0.0
    %v2300 = vmax.f32 %v2285, 0.0
    %v2301 = vmax.f32 %v2288, 0.0
    %v2302 = vmax.f32 %v2290, 0.0
    %v2303 = vmax.f32 %v2293, 0.0
    %v2304 = vmax.f32 %v2295, 0.0
    %v2305 = vadd.f32 %v2297, %v2298
    %v2306 = vadd.f32 %v2305, %v2299
    %v2307 = vadd.f32 %v2306, %v2300
    %v2308 = vadd.f32 %v2307, %v2301
    %v2309 = vadd.f32 %v2308, %v2302
    %v2310 = vadd.f32 %v2309, %v2303
    %v2311 = vadd.f32 %v2310, %v2304
    %v2312 = vrot.slane %v2311, 4
    %v2313 = vadd.f32 %v2311, %v2312
    %v2314 = vrot.slane %v2313, 2
    %v2315 = vadd.f32 %v2313, %v2314
    %v2316 = vrot.slane %v2315, 1
    %v2317 = vadd.f32 %v2315, %v2316
    %v2318 = vadd.f32 %v2235, %v2317
    %v2319 = vld [vmem:[%s2088 + $0x40] sm:$0xf]
    %v2320 = vld [vmem:[%s2088 + $0x44] sm:$0xf]
    %v2321 = vld [vmem:[%s2088 + $0x48] sm:$0xf]
    %v2322 = vld [vmem:[%s2088 + $0x4c] sm:$0xf]
    %v2323 = vld [vmem:[%s2088 + $0x50] sm:$0xf]
    %v2324 = vld [vmem:[%s2088 + $0x54] sm:$0xf]
    %v2325 = vld [vmem:[%s2088 + $0x58] sm:$0xf]
    %v2326 = vld [vmem:[%s2088 + $0x5c] sm:$0xf]
    %v2335 = vunpack.c.l.b16 %v2319
    %v2336 = vunpack.c.l.b16 %v2320
    %v2337 = vunpack.c.l.b16 %v2321
    %v2338 = vunpack.c.l.b16 %v2322
    %v2339 = vunpack.c.l.b16 %v2323
    %v2340 = vunpack.c.l.b16 %v2324
    %v2341 = vunpack.c.l.b16 %v2325
    %v2342 = vunpack.c.l.b16 %v2326
    %v2343 = vpack.c.b16 %v2336, %v2335
    %v2344 = vpack.c.b16 %v2338, %v2337
    %v2345 = vpack.c.b16 %v2340, %v2339
    %v2346 = vpack.c.b16 %v2342, %v2341
    %2351 = vmatpush.bf16.msra.mxu0 %v2176
    %2352 = vmatpush.bf16.msra.mxu0 %v2175
    %2353 = vmatpush.bf16.msra.mxu0 %v2174
    %2354 = vmatpush.bf16.msra.mxu0 %v2173
    %2355 = vmatpush.bf16.msra.mxu0 %v2172
    %2356 = vmatpush.bf16.msra.mxu0 %v2171
    %2357 = vmatpush.bf16.msra.mxu0 %v2170
    %2358 = vmatpush.bf16.msra.mxu0 %v2169
    %2359 = vmatmul.bf16.gmra.mxu0 %v2343
    %v2360 = vpop.f32.mrf.mxu0
    %v2361 = vadd.f32 %v116, %v2360
    %v2362 = vpop.f32.mrf.mxu0
    %v2363 = vadd.f32 %v116, %v2362
    %2364 = vmatmul.bf16.gmra.mxu0 %v2344
    %v2365 = vpop.f32.mrf.mxu0
    %v2366 = vadd.f32 %v116, %v2365
    %v2367 = vpop.f32.mrf.mxu0
    %v2368 = vadd.f32 %v116, %v2367
    %2369 = vmatmul.bf16.gmra.mxu0 %v2345
    %v2370 = vpop.f32.mrf.mxu0
    %v2371 = vadd.f32 %v116, %v2370
    %v2372 = vpop.f32.mrf.mxu0
    %v2373 = vadd.f32 %v116, %v2372
    %2374 = vmatmul.bf16.gmra.mxu0 %v2346
    %v2375 = vpop.f32.mrf.mxu0
    %v2376 = vadd.f32 %v116, %v2375
    %v2377 = vpop.f32.mrf.mxu0
    %v2378 = vadd.f32 %v116, %v2377
    %2379 = vdwg.mxu0
    %v2380 = vmax.f32 %v2361, 0.0
    %v2381 = vmax.f32 %v2363, 0.0
    %v2382 = vmax.f32 %v2366, 0.0
    %v2383 = vmax.f32 %v2368, 0.0
    %v2384 = vmax.f32 %v2371, 0.0
    %v2385 = vmax.f32 %v2373, 0.0
    %v2386 = vmax.f32 %v2376, 0.0
    %v2387 = vmax.f32 %v2378, 0.0
    %v2388 = vadd.f32 %v2380, %v2381
    %v2389 = vadd.f32 %v2388, %v2382
    %v2390 = vadd.f32 %v2389, %v2383
    %v2391 = vadd.f32 %v2390, %v2384
    %v2392 = vadd.f32 %v2391, %v2385
    %v2393 = vadd.f32 %v2392, %v2386
    %v2394 = vadd.f32 %v2393, %v2387
    %v2395 = vrot.slane %v2394, 4
    %v2396 = vadd.f32 %v2394, %v2395
    %v2397 = vrot.slane %v2396, 2
    %v2398 = vadd.f32 %v2396, %v2397
    %v2399 = vrot.slane %v2398, 1
    %v2400 = vadd.f32 %v2398, %v2399
    %v2401 = vadd.f32 %v2318, %v2400
    %v2402 = vld [vmem:[%s2088 + $0x60] sm:$0xf]
    %v2403 = vld [vmem:[%s2088 + $0x64] sm:$0xf]
    %v2404 = vld [vmem:[%s2088 + $0x68] sm:$0xf]
    %v2405 = vld [vmem:[%s2088 + $0x6c] sm:$0xf]
    %v2406 = vld [vmem:[%s2088 + $0x70] sm:$0xf]
    %v2407 = vld [vmem:[%s2088 + $0x74] sm:$0xf]
    %v2408 = vld [vmem:[%s2088 + $0x78] sm:$0xf]
    %v2409 = vld [vmem:[%s2088 + $0x7c] sm:$0xf]
    %v2418 = vunpack.c.l.b16 %v2402
    %v2419 = vunpack.c.l.b16 %v2403
    %v2420 = vunpack.c.l.b16 %v2404
    %v2421 = vunpack.c.l.b16 %v2405
    %v2422 = vunpack.c.l.b16 %v2406
    %v2423 = vunpack.c.l.b16 %v2407
    %v2424 = vunpack.c.l.b16 %v2408
    %v2425 = vunpack.c.l.b16 %v2409
    %v2426 = vpack.c.b16 %v2419, %v2418
    %v2427 = vpack.c.b16 %v2421, %v2420
    %v2428 = vpack.c.b16 %v2423, %v2422
    %v2429 = vpack.c.b16 %v2425, %v2424
    %2434 = vmatpush.bf16.msra.mxu0 %v2176
    %2435 = vmatpush.bf16.msra.mxu0 %v2175
    %2436 = vmatpush.bf16.msra.mxu0 %v2174
    %2437 = vmatpush.bf16.msra.mxu0 %v2173
    %2438 = vmatpush.bf16.msra.mxu0 %v2172
    %2439 = vmatpush.bf16.msra.mxu0 %v2171
    %2440 = vmatpush.bf16.msra.mxu0 %v2170
    %2441 = vmatpush.bf16.msra.mxu0 %v2169
    %2442 = vmatmul.bf16.gmra.mxu0 %v2426
    %v2443 = vpop.f32.mrf.mxu0
    %v2444 = vadd.f32 %v116, %v2443
    %v2445 = vpop.f32.mrf.mxu0
    %v2446 = vadd.f32 %v116, %v2445
    %2447 = vmatmul.bf16.gmra.mxu0 %v2427
    %v2448 = vpop.f32.mrf.mxu0
    %v2449 = vadd.f32 %v116, %v2448
    %v2450 = vpop.f32.mrf.mxu0
    %v2451 = vadd.f32 %v116, %v2450
    %2452 = vmatmul.bf16.gmra.mxu0 %v2428
    %v2453 = vpop.f32.mrf.mxu0
    %v2454 = vadd.f32 %v116, %v2453
    %v2455 = vpop.f32.mrf.mxu0
    %v2456 = vadd.f32 %v116, %v2455
    %2457 = vmatmul.bf16.gmra.mxu0 %v2429
    %v2458 = vpop.f32.mrf.mxu0
    %v2459 = vadd.f32 %v116, %v2458
    %v2460 = vpop.f32.mrf.mxu0
    %v2461 = vadd.f32 %v116, %v2460
    %2462 = vdwg.mxu0
    %v2463 = vmax.f32 %v2444, 0.0
    %v2464 = vmax.f32 %v2446, 0.0
    %v2465 = vmax.f32 %v2449, 0.0
    %v2466 = vmax.f32 %v2451, 0.0
    %v2467 = vmax.f32 %v2454, 0.0
    %v2468 = vmax.f32 %v2456, 0.0
    %v2469 = vmax.f32 %v2459, 0.0
    %v2470 = vmax.f32 %v2461, 0.0
    %v2471 = vadd.f32 %v2463, %v2464
    %v2472 = vadd.f32 %v2471, %v2465
    %v2473 = vadd.f32 %v2472, %v2466
    %v2474 = vadd.f32 %v2473, %v2467
    %v2475 = vadd.f32 %v2474, %v2468
    %v2476 = vadd.f32 %v2475, %v2469
    %v2477 = vadd.f32 %v2476, %v2470
    %v2478 = vrot.slane %v2477, 4
    %v2479 = vadd.f32 %v2477, %v2478
    %v2480 = vrot.slane %v2479, 2
    %v2481 = vadd.f32 %v2479, %v2480
    %v2482 = vrot.slane %v2481, 1
    %v2483 = vadd.f32 %v2481, %v2482
    %v2484 = vadd.f32 %v2401, %v2483
    %v2485 = vmul.f32 %v2484, 0.00390625
    %2486 = vst [vmem:[#allocation2 + $0x5] sm:$0x1] %v2485
    %s2487 = scalar_lea.vmem [#allocation3], 768
    %v2488 = vld [vmem:[%s2487] sm:$0xf]
    %v2489 = vld [vmem:[%s2487 + $0x4] sm:$0xf]
    %v2490 = vld [vmem:[%s2487 + $0x8] sm:$0xf]
    %v2491 = vld [vmem:[%s2487 + $0xc] sm:$0xf]
    %v2492 = vld [vmem:[%s2487 + $0x10] sm:$0xf]
    %v2493 = vld [vmem:[%s2487 + $0x14] sm:$0xf]
    %v2494 = vld [vmem:[%s2487 + $0x18] sm:$0xf]
    %v2495 = vld [vmem:[%s2487 + $0x1c] sm:$0xf]
    %v2496 = vld [vmem:[#allocation6] sm:$0xf]
    %v2497 = vld [vmem:[#allocation6 + $0x4] sm:$0xf]
    %v2498 = vld [vmem:[#allocation6 + $0x8] sm:$0xf]
    %v2499 = vld [vmem:[#allocation6 + $0xc] sm:$0xf]
    %v2500 = vld [vmem:[#allocation6 + $0x10] sm:$0xf]
    %v2501 = vld [vmem:[#allocation6 + $0x14] sm:$0xf]
    %v2502 = vld [vmem:[#allocation6 + $0x18] sm:$0xf]
    %v2503 = vld [vmem:[#allocation6 + $0x1c] sm:$0xf]
    %v2504 = vld [vmem:[#allocation6 + $0x20] sm:$0xf]
    %v2505 = vld [vmem:[#allocation6 + $0x24] sm:$0xf]
    %v2506 = vld [vmem:[#allocation6 + $0x28] sm:$0xf]
    %v2507 = vld [vmem:[#allocation6 + $0x2c] sm:$0xf]
    %v2508 = vld [vmem:[#allocation6 + $0x30] sm:$0xf]
    %v2509 = vld [vmem:[#allocation6 + $0x34] sm:$0xf]
    %v2510 = vld [vmem:[#allocation6 + $0x38] sm:$0xf]
    %v2511 = vld [vmem:[#allocation6 + $0x3c] sm:$0xf]
    %v2520 = vunpack.c.l.b16 %v2488
    %v2521 = vunpack.c.l.b16 %v2489
    %v2522 = vunpack.c.l.b16 %v2490
    %v2523 = vunpack.c.l.b16 %v2491
    %v2524 = vunpack.c.l.b16 %v2492
    %v2525 = vunpack.c.l.b16 %v2493
    %v2526 = vunpack.c.l.b16 %v2494
    %v2527 = vunpack.c.l.b16 %v2495
    %v2528 = vpack.c.b16 %v2521, %v2520
    %v2529 = vpack.c.b16 %v2523, %v2522
    %v2530 = vpack.c.b16 %v2525, %v2524
    %v2531 = vpack.c.b16 %v2527, %v2526
    %v2552 = vunpack.c.l.b16 %v2496
    %v2553 = vunpack.c.l.b16 %v2497
    %v2554 = vunpack.c.l.b16 %v2498
    %v2555 = vunpack.c.l.b16 %v2499
    %v2556 = vunpack.c.l.b16 %v2500
    %v2557 = vunpack.c.l.b16 %v2501
    %v2558 = vunpack.c.l.b16 %v2502
    %v2559 = vunpack.c.l.b16 %v2503
    %v2560 = vunpack.c.l.b16 %v2504
    %v2561 = vunpack.c.l.b16 %v2505
    %v2562 = vunpack.c.l.b16 %v2506
    %v2563 = vunpack.c.l.b16 %v2507
    %v2564 = vunpack.c.l.b16 %v2508
    %v2565 = vunpack.c.l.b16 %v2509
    %v2566 = vunpack.c.l.b16 %v2510
    %v2567 = vunpack.c.l.b16 %v2511
    %v2568 = vpack.c.b16 %v2553, %v2552
    %v2569 = vpack.c.b16 %v2555, %v2554
    %v2570 = vpack.c.b16 %v2557, %v2556
    %v2571 = vpack.c.b16 %v2559, %v2558
    %v2572 = vpack.c.b16 %v2561, %v2560
    %v2573 = vpack.c.b16 %v2563, %v2562
    %v2574 = vpack.c.b16 %v2565, %v2564
    %v2575 = vpack.c.b16 %v2567, %v2566
    %2584 = vmatpush.bf16.msra.mxu0 %v2575
    %2585 = vmatpush.bf16.msra.mxu0 %v2574
    %2586 = vmatpush.bf16.msra.mxu0 %v2573
    %2587 = vmatpush.bf16.msra.mxu0 %v2572
    %2588 = vmatpush.bf16.msra.mxu0 %v2571
    %2589 = vmatpush.bf16.msra.mxu0 %v2570
    %2590 = vmatpush.bf16.msra.mxu0 %v2569
    %2591 = vmatpush.bf16.msra.mxu0 %v2568
    %2592 = vmatmul.bf16.gmra.mxu0 %v2528
    %v2593 = vpop.f32.mrf.mxu0
    %v2594 = vadd.f32 %v116, %v2593
    %v2595 = vpop.f32.mrf.mxu0
    %v2596 = vadd.f32 %v116, %v2595
    %2597 = vmatmul.bf16.gmra.mxu0 %v2529
    %v2598 = vpop.f32.mrf.mxu0
    %v2599 = vadd.f32 %v116, %v2598
    %v2600 = vpop.f32.mrf.mxu0
    %v2601 = vadd.f32 %v116, %v2600
    %2602 = vmatmul.bf16.gmra.mxu0 %v2530
    %v2603 = vpop.f32.mrf.mxu0
    %v2604 = vadd.f32 %v116, %v2603
    %v2605 = vpop.f32.mrf.mxu0
    %v2606 = vadd.f32 %v116, %v2605
    %2607 = vmatmul.bf16.gmra.mxu0 %v2531
    %v2608 = vpop.f32.mrf.mxu0
    %v2609 = vadd.f32 %v116, %v2608
    %v2610 = vpop.f32.mrf.mxu0
    %v2611 = vadd.f32 %v116, %v2610
    %2612 = vdwg.mxu0
    %v2613 = vmax.f32 %v2594, 0.0
    %v2614 = vmax.f32 %v2596, 0.0
    %v2615 = vmax.f32 %v2599, 0.0
    %v2616 = vmax.f32 %v2601, 0.0
    %v2617 = vmax.f32 %v2604, 0.0
    %v2618 = vmax.f32 %v2606, 0.0
    %v2619 = vmax.f32 %v2609, 0.0
    %v2620 = vmax.f32 %v2611, 0.0
    %v2621 = vadd.f32 %v2613, %v2614
    %v2622 = vadd.f32 %v2621, %v2615
    %v2623 = vadd.f32 %v2622, %v2616
    %v2624 = vadd.f32 %v2623, %v2617
    %v2625 = vadd.f32 %v2624, %v2618
    %v2626 = vadd.f32 %v2625, %v2619
    %v2627 = vadd.f32 %v2626, %v2620
    %v2628 = vrot.slane %v2627, 4
    %v2629 = vadd.f32 %v2627, %v2628
    %v2630 = vrot.slane %v2629, 2
    %v2631 = vadd.f32 %v2629, %v2630
    %v2632 = vrot.slane %v2631, 1
    %v2633 = vadd.f32 %v2631, %v2632
    %v2634 = vadd.f32 %v2633, 0.0
    %v2635 = vld [vmem:[%s2487 + $0x20] sm:$0xf]
    %v2636 = vld [vmem:[%s2487 + $0x24] sm:$0xf]
    %v2637 = vld [vmem:[%s2487 + $0x28] sm:$0xf]
    %v2638 = vld [vmem:[%s2487 + $0x2c] sm:$0xf]
    %v2639 = vld [vmem:[%s2487 + $0x30] sm:$0xf]
    %v2640 = vld [vmem:[%s2487 + $0x34] sm:$0xf]
    %v2641 = vld [vmem:[%s2487 + $0x38] sm:$0xf]
    %v2642 = vld [vmem:[%s2487 + $0x3c] sm:$0xf]
    %v2651 = vunpack.c.l.b16 %v2635
    %v2652 = vunpack.c.l.b16 %v2636
    %v2653 = vunpack.c.l.b16 %v2637
    %v2654 = vunpack.c.l.b16 %v2638
    %v2655 = vunpack.c.l.b16 %v2639
    %v2656 = vunpack.c.l.b16 %v2640
    %v2657 = vunpack.c.l.b16 %v2641
    %v2658 = vunpack.c.l.b16 %v2642
    %v2659 = vpack.c.b16 %v2652, %v2651
    %v2660 = vpack.c.b16 %v2654, %v2653
    %v2661 = vpack.c.b16 %v2656, %v2655
    %v2662 = vpack.c.b16 %v2658, %v2657
    %2667 = vmatpush.bf16.msra.mxu0 %v2575
    %2668 = vmatpush.bf16.msra.mxu0 %v2574
    %2669 = vmatpush.bf16.msra.mxu0 %v2573
    %2670 = vmatpush.bf16.msra.mxu0 %v2572
    %2671 = vmatpush.bf16.msra.mxu0 %v2571
    %2672 = vmatpush.bf16.msra.mxu0 %v2570
    %2673 = vmatpush.bf16.msra.mxu0 %v2569
    %2674 = vmatpush.bf16.msra.mxu0 %v2568
    %2675 = vmatmul.bf16.gmra.mxu0 %v2659
    %v2676 = vpop.f32.mrf.mxu0
    %v2677 = vadd.f32 %v116, %v2676
    %v2678 = vpop.f32.mrf.mxu0
    %v2679 = vadd.f32 %v116, %v2678
    %2680 = vmatmul.bf16.gmra.mxu0 %v2660
    %v2681 = vpop.f32.mrf.mxu0
    %v2682 = vadd.f32 %v116, %v2681
    %v2683 = vpop.f32.mrf.mxu0
    %v2684 = vadd.f32 %v116, %v2683
    %2685 = vmatmul.bf16.gmra.mxu0 %v2661
    %v2686 = vpop.f32.mrf.mxu0
    %v2687 = vadd.f32 %v116, %v2686
    %v2688 = vpop.f32.mrf.mxu0
    %v2689 = vadd.f32 %v116, %v2688
    %2690 = vmatmul.bf16.gmra.mxu0 %v2662
    %v2691 = vpop.f32.mrf.mxu0
    %v2692 = vadd.f32 %v116, %v2691
    %v2693 = vpop.f32.mrf.mxu0
    %v2694 = vadd.f32 %v116, %v2693
    %2695 = vdwg.mxu0
    %v2696 = vmax.f32 %v2677, 0.0
    %v2697 = vmax.f32 %v2679, 0.0
    %v2698 = vmax.f32 %v2682, 0.0
    %v2699 = vmax.f32 %v2684, 0.0
    %v2700 = vmax.f32 %v2687, 0.0
    %v2701 = vmax.f32 %v2689, 0.0
    %v2702 = vmax.f32 %v2692, 0.0
    %v2703 = vmax.f32 %v2694, 0.0
    %v2704 = vadd.f32 %v2696, %v2697
    %v2705 = vadd.f32 %v2704, %v2698
    %v2706 = vadd.f32 %v2705, %v2699
    %v2707 = vadd.f32 %v2706, %v2700
    %v2708 = vadd.f32 %v2707, %v2701
    %v2709 = vadd.f32 %v2708, %v2702
    %v2710 = vadd.f32 %v2709, %v2703
    %v2711 = vrot.slane %v2710, 4
    %v2712 = vadd.f32 %v2710, %v2711
    %v2713 = vrot.slane %v2712, 2
    %v2714 = vadd.f32 %v2712, %v2713
    %v2715 = vrot.slane %v2714, 1
    %v2716 = vadd.f32 %v2714, %v2715
    %v2717 = vadd.f32 %v2634, %v2716
    %v2718 = vld [vmem:[%s2487 + $0x40] sm:$0xf]
    %v2719 = vld [vmem:[%s2487 + $0x44] sm:$0xf]
    %v2720 = vld [vmem:[%s2487 + $0x48] sm:$0xf]
    %v2721 = vld [vmem:[%s2487 + $0x4c] sm:$0xf]
    %v2722 = vld [vmem:[%s2487 + $0x50] sm:$0xf]
    %v2723 = vld [vmem:[%s2487 + $0x54] sm:$0xf]
    %v2724 = vld [vmem:[%s2487 + $0x58] sm:$0xf]
    %v2725 = vld [vmem:[%s2487 + $0x5c] sm:$0xf]
    %v2734 = vunpack.c.l.b16 %v2718
    %v2735 = vunpack.c.l.b16 %v2719
    %v2736 = vunpack.c.l.b16 %v2720
    %v2737 = vunpack.c.l.b16 %v2721
    %v2738 = vunpack.c.l.b16 %v2722
    %v2739 = vunpack.c.l.b16 %v2723
    %v2740 = vunpack.c.l.b16 %v2724
    %v2741 = vunpack.c.l.b16 %v2725
    %v2742 = vpack.c.b16 %v2735, %v2734
    %v2743 = vpack.c.b16 %v2737, %v2736
    %v2744 = vpack.c.b16 %v2739, %v2738
    %v2745 = vpack.c.b16 %v2741, %v2740
    %2750 = vmatpush.bf16.msra.mxu0 %v2575
    %2751 = vmatpush.bf16.msra.mxu0 %v2574
    %2752 = vmatpush.bf16.msra.mxu0 %v2573
    %2753 = vmatpush.bf16.msra.mxu0 %v2572
    %2754 = vmatpush.bf16.msra.mxu0 %v2571
    %2755 = vmatpush.bf16.msra.mxu0 %v2570
    %2756 = vmatpush.bf16.msra.mxu0 %v2569
    %2757 = vmatpush.bf16.msra.mxu0 %v2568
    %2758 = vmatmul.bf16.gmra.mxu0 %v2742
    %v2759 = vpop.f32.mrf.mxu0
    %v2760 = vadd.f32 %v116, %v2759
    %v2761 = vpop.f32.mrf.mxu0
    %v2762 = vadd.f32 %v116, %v2761
    %2763 = vmatmul.bf16.gmra.mxu0 %v2743
    %v2764 = vpop.f32.mrf.mxu0
    %v2765 = vadd.f32 %v116, %v2764
    %v2766 = vpop.f32.mrf.mxu0
    %v2767 = vadd.f32 %v116, %v2766
    %2768 = vmatmul.bf16.gmra.mxu0 %v2744
    %v2769 = vpop.f32.mrf.mxu0
    %v2770 = vadd.f32 %v116, %v2769
    %v2771 = vpop.f32.mrf.mxu0
    %v2772 = vadd.f32 %v116, %v2771
    %2773 = vmatmul.bf16.gmra.mxu0 %v2745
    %v2774 = vpop.f32.mrf.mxu0
    %v2775 = vadd.f32 %v116, %v2774
    %v2776 = vpop.f32.mrf.mxu0
    %v2777 = vadd.f32 %v116, %v2776
    %2778 = vdwg.mxu0
    %v2779 = vmax.f32 %v2760, 0.0
    %v2780 = vmax.f32 %v2762, 0.0
    %v2781 = vmax.f32 %v2765, 0.0
    %v2782 = vmax.f32 %v2767, 0.0
    %v2783 = vmax.f32 %v2770, 0.0
    %v2784 = vmax.f32 %v2772, 0.0
    %v2785 = vmax.f32 %v2775, 0.0
    %v2786 = vmax.f32 %v2777, 0.0
    %v2787 = vadd.f32 %v2779, %v2780
    %v2788 = vadd.f32 %v2787, %v2781
    %v2789 = vadd.f32 %v2788, %v2782
    %v2790 = vadd.f32 %v2789, %v2783
    %v2791 = vadd.f32 %v2790, %v2784
    %v2792 = vadd.f32 %v2791, %v2785
    %v2793 = vadd.f32 %v2792, %v2786
    %v2794 = vrot.slane %v2793, 4
    %v2795 = vadd.f32 %v2793, %v2794
    %v2796 = vrot.slane %v2795, 2
    %v2797 = vadd.f32 %v2795, %v2796
    %v2798 = vrot.slane %v2797, 1
    %v2799 = vadd.f32 %v2797, %v2798
    %v2800 = vadd.f32 %v2717, %v2799
    %v2801 = vld [vmem:[%s2487 + $0x60] sm:$0xf]
    %v2802 = vld [vmem:[%s2487 + $0x64] sm:$0xf]
    %v2803 = vld [vmem:[%s2487 + $0x68] sm:$0xf]
    %v2804 = vld [vmem:[%s2487 + $0x6c] sm:$0xf]
    %v2805 = vld [vmem:[%s2487 + $0x70] sm:$0xf]
    %v2806 = vld [vmem:[%s2487 + $0x74] sm:$0xf]
    %v2807 = vld [vmem:[%s2487 + $0x78] sm:$0xf]
    %v2808 = vld [vmem:[%s2487 + $0x7c] sm:$0xf]
    %v2817 = vunpack.c.l.b16 %v2801
    %v2818 = vunpack.c.l.b16 %v2802
    %v2819 = vunpack.c.l.b16 %v2803
    %v2820 = vunpack.c.l.b16 %v2804
    %v2821 = vunpack.c.l.b16 %v2805
    %v2822 = vunpack.c.l.b16 %v2806
    %v2823 = vunpack.c.l.b16 %v2807
    %v2824 = vunpack.c.l.b16 %v2808
    %v2825 = vpack.c.b16 %v2818, %v2817
    %v2826 = vpack.c.b16 %v2820, %v2819
    %v2827 = vpack.c.b16 %v2822, %v2821
    %v2828 = vpack.c.b16 %v2824, %v2823
    %2833 = vmatpush.bf16.msra.mxu0 %v2575
    %2834 = vmatpush.bf16.msra.mxu0 %v2574
    %2835 = vmatpush.bf16.msra.mxu0 %v2573
    %2836 = vmatpush.bf16.msra.mxu0 %v2572
    %2837 = vmatpush.bf16.msra.mxu0 %v2571
    %2838 = vmatpush.bf16.msra.mxu0 %v2570
    %2839 = vmatpush.bf16.msra.mxu0 %v2569
    %2840 = vmatpush.bf16.msra.mxu0 %v2568
    %2841 = vmatmul.bf16.gmra.mxu0 %v2825
    %v2842 = vpop.f32.mrf.mxu0
    %v2843 = vadd.f32 %v116, %v2842
    %v2844 = vpop.f32.mrf.mxu0
    %v2845 = vadd.f32 %v116, %v2844
    %2846 = vmatmul.bf16.gmra.mxu0 %v2826
    %v2847 = vpop.f32.mrf.mxu0
    %v2848 = vadd.f32 %v116, %v2847
    %v2849 = vpop.f32.mrf.mxu0
    %v2850 = vadd.f32 %v116, %v2849
    %2851 = vmatmul.bf16.gmra.mxu0 %v2827
    %v2852 = vpop.f32.mrf.mxu0
    %v2853 = vadd.f32 %v116, %v2852
    %v2854 = vpop.f32.mrf.mxu0
    %v2855 = vadd.f32 %v116, %v2854
    %2856 = vmatmul.bf16.gmra.mxu0 %v2828
    %v2857 = vpop.f32.mrf.mxu0
    %v2858 = vadd.f32 %v116, %v2857
    %v2859 = vpop.f32.mrf.mxu0
    %v2860 = vadd.f32 %v116, %v2859
    %2861 = vdwg.mxu0
    %v2862 = vmax.f32 %v2843, 0.0
    %v2863 = vmax.f32 %v2845, 0.0
    %v2864 = vmax.f32 %v2848, 0.0
    %v2865 = vmax.f32 %v2850, 0.0
    %v2866 = vmax.f32 %v2853, 0.0
    %v2867 = vmax.f32 %v2855, 0.0
    %v2868 = vmax.f32 %v2858, 0.0
    %v2869 = vmax.f32 %v2860, 0.0
    %v2870 = vadd.f32 %v2862, %v2863
    %v2871 = vadd.f32 %v2870, %v2864
    %v2872 = vadd.f32 %v2871, %v2865
    %v2873 = vadd.f32 %v2872, %v2866
    %v2874 = vadd.f32 %v2873, %v2867
    %v2875 = vadd.f32 %v2874, %v2868
    %v2876 = vadd.f32 %v2875, %v2869
    %v2877 = vrot.slane %v2876, 4
    %v2878 = vadd.f32 %v2876, %v2877
    %v2879 = vrot.slane %v2878, 2
    %v2880 = vadd.f32 %v2878, %v2879
    %v2881 = vrot.slane %v2880, 1
    %v2882 = vadd.f32 %v2880, %v2881
    %v2883 = vadd.f32 %v2800, %v2882
    %v2884 = vmul.f32 %v2883, 0.00390625
    %2885 = vst [vmem:[#allocation2 + $0x6] sm:$0x1] %v2884
    %s2886 = scalar_lea.vmem [#allocation3], 896
    %v2887 = vld [vmem:[%s2886] sm:$0xf]
    %v2888 = vld [vmem:[%s2886 + $0x4] sm:$0xf]
    %v2889 = vld [vmem:[%s2886 + $0x8] sm:$0xf]
    %v2890 = vld [vmem:[%s2886 + $0xc] sm:$0xf]
    %v2891 = vld [vmem:[%s2886 + $0x10] sm:$0xf]
    %v2892 = vld [vmem:[%s2886 + $0x14] sm:$0xf]
    %v2893 = vld [vmem:[%s2886 + $0x18] sm:$0xf]
    %v2894 = vld [vmem:[%s2886 + $0x1c] sm:$0xf]
    %v2895 = vld [vmem:[#allocation6] sm:$0xf]
    %v2896 = vld [vmem:[#allocation6 + $0x4] sm:$0xf]
    %v2897 = vld [vmem:[#allocation6 + $0x8] sm:$0xf]
    %v2898 = vld [vmem:[#allocation6 + $0xc] sm:$0xf]
    %v2899 = vld [vmem:[#allocation6 + $0x10] sm:$0xf]
    %v2900 = vld [vmem:[#allocation6 + $0x14] sm:$0xf]
    %v2901 = vld [vmem:[#allocation6 + $0x18] sm:$0xf]
    %v2902 = vld [vmem:[#allocation6 + $0x1c] sm:$0xf]
    %v2903 = vld [vmem:[#allocation6 + $0x20] sm:$0xf]
    %v2904 = vld [vmem:[#allocation6 + $0x24] sm:$0xf]
    %v2905 = vld [vmem:[#allocation6 + $0x28] sm:$0xf]
    %v2906 = vld [vmem:[#allocation6 + $0x2c] sm:$0xf]
    %v2907 = vld [vmem:[#allocation6 + $0x30] sm:$0xf]
    %v2908 = vld [vmem:[#allocation6 + $0x34] sm:$0xf]
    %v2909 = vld [vmem:[#allocation6 + $0x38] sm:$0xf]
    %v2910 = vld [vmem:[#allocation6 + $0x3c] sm:$0xf]
    %v2919 = vunpack.c.l.b16 %v2887
    %v2920 = vunpack.c.l.b16 %v2888
    %v2921 = vunpack.c.l.b16 %v2889
    %v2922 = vunpack.c.l.b16 %v2890
    %v2923 = vunpack.c.l.b16 %v2891
    %v2924 = vunpack.c.l.b16 %v2892
    %v2925 = vunpack.c.l.b16 %v2893
    %v2926 = vunpack.c.l.b16 %v2894
    %v2927 = vpack.c.b16 %v2920, %v2919
    %v2928 = vpack.c.b16 %v2922, %v2921
    %v2929 = vpack.c.b16 %v2924, %v2923
    %v2930 = vpack.c.b16 %v2926, %v2925
    %v2951 = vunpack.c.l.b16 %v2895
    %v2952 = vunpack.c.l.b16 %v2896
    %v2953 = vunpack.c.l.b16 %v2897
    %v2954 = vunpack.c.l.b16 %v2898
    %v2955 = vunpack.c.l.b16 %v2899
    %v2956 = vunpack.c.l.b16 %v2900
    %v2957 = vunpack.c.l.b16 %v2901
    %v2958 = vunpack.c.l.b16 %v2902
    %v2959 = vunpack.c.l.b16 %v2903
    %v2960 = vunpack.c.l.b16 %v2904
    %v2961 = vunpack.c.l.b16 %v2905
    %v2962 = vunpack.c.l.b16 %v2906
    %v2963 = vunpack.c.l.b16 %v2907
    %v2964 = vunpack.c.l.b16 %v2908
    %v2965 = vunpack.c.l.b16 %v2909
    %v2966 = vunpack.c.l.b16 %v2910
    %v2967 = vpack.c.b16 %v2952, %v2951
    %v2968 = vpack.c.b16 %v2954, %v2953
    %v2969 = vpack.c.b16 %v2956, %v2955
    %v2970 = vpack.c.b16 %v2958, %v2957
    %v2971 = vpack.c.b16 %v2960, %v2959
    %v2972 = vpack.c.b16 %v2962, %v2961
    %v2973 = vpack.c.b16 %v2964, %v2963
    %v2974 = vpack.c.b16 %v2966, %v2965
    %2983 = vmatpush.bf16.msra.mxu0 %v2974
    %2984 = vmatpush.bf16.msra.mxu0 %v2973
    %2985 = vmatpush.bf16.msra.mxu0 %v2972
    %2986 = vmatpush.bf16.msra.mxu0 %v2971
    %2987 = vmatpush.bf16.msra.mxu0 %v2970
    %2988 = vmatpush.bf16.msra.mxu0 %v2969
    %2989 = vmatpush.bf16.msra.mxu0 %v2968
    %2990 = vmatpush.bf16.msra.mxu0 %v2967
    %2991 = vmatmul.bf16.gmra.mxu0 %v2927
    %v2992 = vpop.f32.mrf.mxu0
    %v2993 = vadd.f32 %v116, %v2992
    %v2994 = vpop.f32.mrf.mxu0
    %v2995 = vadd.f32 %v116, %v2994
    %2996 = vmatmul.bf16.gmra.mxu0 %v2928
    %v2997 = vpop.f32.mrf.mxu0
    %v2998 = vadd.f32 %v116, %v2997
    %v2999 = vpop.f32.mrf.mxu0
    %v3000 = vadd.f32 %v116, %v2999
    %3001 = vmatmul.bf16.gmra.mxu0 %v2929
    %v3002 = vpop.f32.mrf.mxu0
    %v3003 = vadd.f32 %v116, %v3002
    %v3004 = vpop.f32.mrf.mxu0
    %v3005 = vadd.f32 %v116, %v3004
    %3006 = vmatmul.bf16.gmra.mxu0 %v2930
    %v3007 = vpop.f32.mrf.mxu0
    %v3008 = vadd.f32 %v116, %v3007
    %v3009 = vpop.f32.mrf.mxu0
    %v3010 = vadd.f32 %v116, %v3009
    %3011 = vdwg.mxu0
    %v3012 = vmax.f32 %v2993, 0.0
    %v3013 = vmax.f32 %v2995, 0.0
    %v3014 = vmax.f32 %v2998, 0.0
    %v3015 = vmax.f32 %v3000, 0.0
    %v3016 = vmax.f32 %v3003, 0.0
    %v3017 = vmax.f32 %v3005, 0.0
    %v3018 = vmax.f32 %v3008, 0.0
    %v3019 = vmax.f32 %v3010, 0.0
    %v3020 = vadd.f32 %v3012, %v3013
    %v3021 = vadd.f32 %v3020, %v3014
    %v3022 = vadd.f32 %v3021, %v3015
    %v3023 = vadd.f32 %v3022, %v3016
    %v3024 = vadd.f32 %v3023, %v3017
    %v3025 = vadd.f32 %v3024, %v3018
    %v3026 = vadd.f32 %v3025, %v3019
    %v3027 = vrot.slane %v3026, 4
    %v3028 = vadd.f32 %v3026, %v3027
    %v3029 = vrot.slane %v3028, 2
    %v3030 = vadd.f32 %v3028, %v3029
    %v3031 = vrot.slane %v3030, 1
    %v3032 = vadd.f32 %v3030, %v3031
    %v3033 = vadd.f32 %v3032, 0.0
    %v3034 = vld [vmem:[%s2886 + $0x20] sm:$0xf]
    %v3035 = vld [vmem:[%s2886 + $0x24] sm:$0xf]
    %v3036 = vld [vmem:[%s2886 + $0x28] sm:$0xf]
    %v3037 = vld [vmem:[%s2886 + $0x2c] sm:$0xf]
    %v3038 = vld [vmem:[%s2886 + $0x30] sm:$0xf]
    %v3039 = vld [vmem:[%s2886 + $0x34] sm:$0xf]
    %v3040 = vld [vmem:[%s2886 + $0x38] sm:$0xf]
    %v3041 = vld [vmem:[%s2886 + $0x3c] sm:$0xf]
    %v3050 = vunpack.c.l.b16 %v3034
    %v3051 = vunpack.c.l.b16 %v3035
    %v3052 = vunpack.c.l.b16 %v3036
    %v3053 = vunpack.c.l.b16 %v3037
    %v3054 = vunpack.c.l.b16 %v3038
    %v3055 = vunpack.c.l.b16 %v3039
    %v3056 = vunpack.c.l.b16 %v3040
    %v3057 = vunpack.c.l.b16 %v3041
    %v3058 = vpack.c.b16 %v3051, %v3050
    %v3059 = vpack.c.b16 %v3053, %v3052
    %v3060 = vpack.c.b16 %v3055, %v3054
    %v3061 = vpack.c.b16 %v3057, %v3056
    %3066 = vmatpush.bf16.msra.mxu0 %v2974
    %3067 = vmatpush.bf16.msra.mxu0 %v2973
    %3068 = vmatpush.bf16.msra.mxu0 %v2972
    %3069 = vmatpush.bf16.msra.mxu0 %v2971
    %3070 = vmatpush.bf16.msra.mxu0 %v2970
    %3071 = vmatpush.bf16.msra.mxu0 %v2969
    %3072 = vmatpush.bf16.msra.mxu0 %v2968
    %3073 = vmatpush.bf16.msra.mxu0 %v2967
    %3074 = vmatmul.bf16.gmra.mxu0 %v3058
    %v3075 = vpop.f32.mrf.mxu0
    %v3076 = vadd.f32 %v116, %v3075
    %v3077 = vpop.f32.mrf.mxu0
    %v3078 = vadd.f32 %v116, %v3077
    %3079 = vmatmul.bf16.gmra.mxu0 %v3059
    %v3080 = vpop.f32.mrf.mxu0
    %v3081 = vadd.f32 %v116, %v3080
    %v3082 = vpop.f32.mrf.mxu0
    %v3083 = vadd.f32 %v116, %v3082
    %3084 = vmatmul.bf16.gmra.mxu0 %v3060
    %v3085 = vpop.f32.mrf.mxu0
    %v3086 = vadd.f32 %v116, %v3085
    %v3087 = vpop.f32.mrf.mxu0
    %v3088 = vadd.f32 %v116, %v3087
    %3089 = vmatmul.bf16.gmra.mxu0 %v3061
    %v3090 = vpop.f32.mrf.mxu0
    %v3091 = vadd.f32 %v116, %v3090
    %v3092 = vpop.f32.mrf.mxu0
    %v3093 = vadd.f32 %v116, %v3092
    %3094 = vdwg.mxu0
    %v3095 = vmax.f32 %v3076, 0.0
    %v3096 = vmax.f32 %v3078, 0.0
    %v3097 = vmax.f32 %v3081, 0.0
    %v3098 = vmax.f32 %v3083, 0.0
    %v3099 = vmax.f32 %v3086, 0.0
    %v3100 = vmax.f32 %v3088, 0.0
    %v3101 = vmax.f32 %v3091, 0.0
    %v3102 = vmax.f32 %v3093, 0.0
    %v3103 = vadd.f32 %v3095, %v3096
    %v3104 = vadd.f32 %v3103, %v3097
    %v3105 = vadd.f32 %v3104, %v3098
    %v3106 = vadd.f32 %v3105, %v3099
    %v3107 = vadd.f32 %v3106, %v3100
    %v3108 = vadd.f32 %v3107, %v3101
    %v3109 = vadd.f32 %v3108, %v3102
    %v3110 = vrot.slane %v3109, 4
    %v3111 = vadd.f32 %v3109, %v3110
    %v3112 = vrot.slane %v3111, 2
    %v3113 = vadd.f32 %v3111, %v3112
    %v3114 = vrot.slane %v3113, 1
    %v3115 = vadd.f32 %v3113, %v3114
    %v3116 = vadd.f32 %v3033, %v3115
    %v3117 = vld [vmem:[%s2886 + $0x40] sm:$0xf]
    %v3118 = vld [vmem:[%s2886 + $0x44] sm:$0xf]
    %v3119 = vld [vmem:[%s2886 + $0x48] sm:$0xf]
    %v3120 = vld [vmem:[%s2886 + $0x4c] sm:$0xf]
    %v3121 = vld [vmem:[%s2886 + $0x50] sm:$0xf]
    %v3122 = vld [vmem:[%s2886 + $0x54] sm:$0xf]
    %v3123 = vld [vmem:[%s2886 + $0x58] sm:$0xf]
    %v3124 = vld [vmem:[%s2886 + $0x5c] sm:$0xf]
    %v3133 = vunpack.c.l.b16 %v3117
    %v3134 = vunpack.c.l.b16 %v3118
    %v3135 = vunpack.c.l.b16 %v3119
    %v3136 = vunpack.c.l.b16 %v3120
    %v3137 = vunpack.c.l.b16 %v3121
    %v3138 = vunpack.c.l.b16 %v3122
    %v3139 = vunpack.c.l.b16 %v3123
    %v3140 = vunpack.c.l.b16 %v3124
    %v3141 = vpack.c.b16 %v3134, %v3133
    %v3142 = vpack.c.b16 %v3136, %v3135
    %v3143 = vpack.c.b16 %v3138, %v3137
    %v3144 = vpack.c.b16 %v3140, %v3139
    %3149 = vmatpush.bf16.msra.mxu0 %v2974
    %3150 = vmatpush.bf16.msra.mxu0 %v2973
    %3151 = vmatpush.bf16.msra.mxu0 %v2972
    %3152 = vmatpush.bf16.msra.mxu0 %v2971
    %3153 = vmatpush.bf16.msra.mxu0 %v2970
    %3154 = vmatpush.bf16.msra.mxu0 %v2969
    %3155 = vmatpush.bf16.msra.mxu0 %v2968
    %3156 = vmatpush.bf16.msra.mxu0 %v2967
    %3157 = vmatmul.bf16.gmra.mxu0 %v3141
    %v3158 = vpop.f32.mrf.mxu0
    %v3159 = vadd.f32 %v116, %v3158
    %v3160 = vpop.f32.mrf.mxu0
    %v3161 = vadd.f32 %v116, %v3160
    %3162 = vmatmul.bf16.gmra.mxu0 %v3142
    %v3163 = vpop.f32.mrf.mxu0
    %v3164 = vadd.f32 %v116, %v3163
    %v3165 = vpop.f32.mrf.mxu0
    %v3166 = vadd.f32 %v116, %v3165
    %3167 = vmatmul.bf16.gmra.mxu0 %v3143
    %v3168 = vpop.f32.mrf.mxu0
    %v3169 = vadd.f32 %v116, %v3168
    %v3170 = vpop.f32.mrf.mxu0
    %v3171 = vadd.f32 %v116, %v3170
    %3172 = vmatmul.bf16.gmra.mxu0 %v3144
    %v3173 = vpop.f32.mrf.mxu0
    %v3174 = vadd.f32 %v116, %v3173
    %v3175 = vpop.f32.mrf.mxu0
    %v3176 = vadd.f32 %v116, %v3175
    %3177 = vdwg.mxu0
    %v3178 = vmax.f32 %v3159, 0.0
    %v3179 = vmax.f32 %v3161, 0.0
    %v3180 = vmax.f32 %v3164, 0.0
    %v3181 = vmax.f32 %v3166, 0.0
    %v3182 = vmax.f32 %v3169, 0.0
    %v3183 = vmax.f32 %v3171, 0.0
    %v3184 = vmax.f32 %v3174, 0.0
    %v3185 = vmax.f32 %v3176, 0.0
    %v3186 = vadd.f32 %v3178, %v3179
    %v3187 = vadd.f32 %v3186, %v3180
    %v3188 = vadd.f32 %v3187, %v3181
    %v3189 = vadd.f32 %v3188, %v3182
    %v3190 = vadd.f32 %v3189, %v3183
    %v3191 = vadd.f32 %v3190, %v3184
    %v3192 = vadd.f32 %v3191, %v3185
    %v3193 = vrot.slane %v3192, 4
    %v3194 = vadd.f32 %v3192, %v3193
    %v3195 = vrot.slane %v3194, 2
    %v3196 = vadd.f32 %v3194, %v3195
    %v3197 = vrot.slane %v3196, 1
    %v3198 = vadd.f32 %v3196, %v3197
    %v3199 = vadd.f32 %v3116, %v3198
    %v3200 = vld [vmem:[%s2886 + $0x60] sm:$0xf]
    %v3201 = vld [vmem:[%s2886 + $0x64] sm:$0xf]
    %v3202 = vld [vmem:[%s2886 + $0x68] sm:$0xf]
    %v3203 = vld [vmem:[%s2886 + $0x6c] sm:$0xf]
    %v3204 = vld [vmem:[%s2886 + $0x70] sm:$0xf]
    %v3205 = vld [vmem:[%s2886 + $0x74] sm:$0xf]
    %v3206 = vld [vmem:[%s2886 + $0x78] sm:$0xf]
    %v3207 = vld [vmem:[%s2886 + $0x7c] sm:$0xf]
    %v3216 = vunpack.c.l.b16 %v3200
    %v3217 = vunpack.c.l.b16 %v3201
    %v3218 = vunpack.c.l.b16 %v3202
    %v3219 = vunpack.c.l.b16 %v3203
    %v3220 = vunpack.c.l.b16 %v3204
    %v3221 = vunpack.c.l.b16 %v3205
    %v3222 = vunpack.c.l.b16 %v3206
    %v3223 = vunpack.c.l.b16 %v3207
    %v3224 = vpack.c.b16 %v3217, %v3216
    %v3225 = vpack.c.b16 %v3219, %v3218
    %v3226 = vpack.c.b16 %v3221, %v3220
    %v3227 = vpack.c.b16 %v3223, %v3222
    %3232 = vmatpush.bf16.msra.mxu0 %v2974
    %3233 = vmatpush.bf16.msra.mxu0 %v2973
    %3234 = vmatpush.bf16.msra.mxu0 %v2972
    %3235 = vmatpush.bf16.msra.mxu0 %v2971
    %3236 = vmatpush.bf16.msra.mxu0 %v2970
    %3237 = vmatpush.bf16.msra.mxu0 %v2969
    %3238 = vmatpush.bf16.msra.mxu0 %v2968
    %3239 = vmatpush.bf16.msra.mxu0 %v2967
    %3240 = vmatmul.bf16.gmra.mxu0 %v3224
    %v3241 = vpop.f32.mrf.mxu0
    %v3242 = vadd.f32 %v116, %v3241
    %v3243 = vpop.f32.mrf.mxu0
    %v3244 = vadd.f32 %v116, %v3243
    %3245 = vmatmul.bf16.gmra.mxu0 %v3225
    %v3246 = vpop.f32.mrf.mxu0
    %v3247 = vadd.f32 %v116, %v3246
    %v3248 = vpop.f32.mrf.mxu0
    %v3249 = vadd.f32 %v116, %v3248
    %3250 = vmatmul.bf16.gmra.mxu0 %v3226
    %v3251 = vpop.f32.mrf.mxu0
    %v3252 = vadd.f32 %v116, %v3251
    %v3253 = vpop.f32.mrf.mxu0
    %v3254 = vadd.f32 %v116, %v3253
    %3255 = vmatmul.bf16.gmra.mxu0 %v3227
    %v3256 = vpop.f32.mrf.mxu0
    %v3257 = vadd.f32 %v116, %v3256
    %v3258 = vpop.f32.mrf.mxu0
    %v3259 = vadd.f32 %v116, %v3258
    %3260 = vdwg.mxu0
    %v3261 = vmax.f32 %v3242, 0.0
    %v3262 = vmax.f32 %v3244, 0.0
    %v3263 = vmax.f32 %v3247, 0.0
    %v3264 = vmax.f32 %v3249, 0.0
    %v3265 = vmax.f32 %v3252, 0.0
    %v3266 = vmax.f32 %v3254, 0.0
    %v3267 = vmax.f32 %v3257, 0.0
    %v3268 = vmax.f32 %v3259, 0.0
    %v3269 = vadd.f32 %v3261, %v3262
    %v3270 = vadd.f32 %v3269, %v3263
    %v3271 = vadd.f32 %v3270, %v3264
    %v3272 = vadd.f32 %v3271, %v3265
    %v3273 = vadd.f32 %v3272, %v3266
    %v3274 = vadd.f32 %v3273, %v3267
    %v3275 = vadd.f32 %v3274, %v3268
    %v3276 = vrot.slane %v3275, 4
    %v3277 = vadd.f32 %v3275, %v3276
    %v3278 = vrot.slane %v3277, 2
    %v3279 = vadd.f32 %v3277, %v3278
    %v3280 = vrot.slane %v3279, 1
    %v3281 = vadd.f32 %v3279, %v3280
    %v3282 = vadd.f32 %v3199, %v3281
    %v3283 = vmul.f32 %v3282, 0.00390625
    %3284 = vst [vmem:[#allocation2 + $0x7] sm:$0x1] %v3283
    %v3285 = vld [vmem:[#allocation2] sm:$0xff]
    %v3286 = vpack.c.bf16 %v3285, %v3285
    %v3287 = vld [vmem:[#allocation8] sm:$0xf]
    %v3288 = vld [vmem:[#allocation8 + $0x4] sm:$0xf]
    %v3289 = vld [vmem:[#allocation8 + $0x8] sm:$0xf]
    %v3290 = vld [vmem:[#allocation8 + $0xc] sm:$0xf]
    %v3291 = vld [vmem:[#allocation8 + $0x10] sm:$0xf]
    %v3292 = vld [vmem:[#allocation8 + $0x14] sm:$0xf]
    %v3293 = vld [vmem:[#allocation8 + $0x18] sm:$0xf]
    %v3294 = vld [vmem:[#allocation8 + $0x1c] sm:$0xf]
    %v3295 = vld [vmem:[#allocation8 + $0x20] sm:$0xf]
    %v3296 = vld [vmem:[#allocation8 + $0x24] sm:$0xf]
    %v3297 = vld [vmem:[#allocation8 + $0x28] sm:$0xf]
    %v3298 = vld [vmem:[#allocation8 + $0x2c] sm:$0xf]
    %v3299 = vld [vmem:[#allocation8 + $0x30] sm:$0xf]
    %v3300 = vld [vmem:[#allocation8 + $0x34] sm:$0xf]
    %v3301 = vld [vmem:[#allocation8 + $0x38] sm:$0xf]
    %v3302 = vld [vmem:[#allocation8 + $0x3c] sm:$0xf]
    %v3303 = vld [vmem:[%s5] sm:$0x1]
    %v3305 = vperm.slane %v3303, 0
    %v3323 = vunpack.c.l.b16 %v3287
    %v3324 = vunpack.c.l.b16 %v3288
    %v3325 = vunpack.c.l.b16 %v3289
    %v3326 = vunpack.c.l.b16 %v3290
    %v3327 = vunpack.c.l.b16 %v3291
    %v3328 = vunpack.c.l.b16 %v3292
    %v3329 = vunpack.c.l.b16 %v3293
    %v3330 = vunpack.c.l.b16 %v3294
    %v3331 = vunpack.c.l.b16 %v3295
    %v3332 = vunpack.c.l.b16 %v3296
    %v3333 = vunpack.c.l.b16 %v3297
    %v3334 = vunpack.c.l.b16 %v3298
    %v3335 = vunpack.c.l.b16 %v3299
    %v3336 = vunpack.c.l.b16 %v3300
    %v3337 = vunpack.c.l.b16 %v3301
    %v3338 = vunpack.c.l.b16 %v3302
    %v3339 = vpack.c.b16 %v3324, %v3323
    %v3340 = vpack.c.b16 %v3326, %v3325
    %v3341 = vpack.c.b16 %v3328, %v3327
    %v3342 = vpack.c.b16 %v3330, %v3329
    %v3343 = vpack.c.b16 %v3332, %v3331
    %v3344 = vpack.c.b16 %v3334, %v3333
    %v3345 = vpack.c.b16 %v3336, %v3335
    %v3346 = vpack.c.b16 %v3338, %v3337
    %3355 = vmatpush.bf16.msra.mxu0 %v3346
    %3356 = vmatpush.bf16.msra.mxu0 %v3345
    %3357 = vmatpush.bf16.msra.mxu0 %v3344
    %3358 = vmatpush.bf16.msra.mxu0 %v3343
    %3359 = vmatpush.bf16.msra.mxu0 %v3342
    %3360 = vmatpush.bf16.msra.mxu0 %v3341
    %3361 = vmatpush.bf16.msra.mxu0 %v3340
    %3362 = vmatpush.bf16.msra.mxu0 %v3339
    %3363 = vmatmul.bf16.gmra.mxu0 %v3286
    %v3364 = vpop.f32.mrf.mxu0
    %v3365 = vadd.f32 %v3305, %v3364
    %v3366 = vpop.f32.mrf.mxu0
    %3367 = vdwg.mxu0
    %v3368 = vmul.f32 %v3365, %v3365
    %3369 = vadd.xlane.f32.xlu0 %v3368
    %v3370 = vpop.xlane.xlu0 %3369
    %v3371 = vmax.f32 %v3370, 1e-24
    %v3372 = vrsqrt.pop %v3371
    %v3373 = vmul.f32 %v3372, %v3371
    %v3374 = vmul.f32 %v3373, %v3372
    %v3375 = vmul.f32 0.5, %v3374
    %v3376 = vsub.f32 1.5, %v3375
    %v3377 = vmul.f32 %v3372, %v3376
    %vm3378 = vweird.f32 %v3371
    %vm3379 = vweird.f32 %v3372
    %vm3380 = vmor %vm3378, %vm3379
    %v3381 = vsel %vm3380, %v3372, %v3377
    %v3382 = vmul.f32 %v3365, %v3381
    %v3383 = vpack.c.bf16 %v3382, %v3382
    %v3384 = vld [vmem:[#allocation9] sm:$0xf]
    %v3385 = vld [vmem:[#allocation9 + $0x4] sm:$0xf]
    %v3386 = vld [vmem:[#allocation9 + $0x8] sm:$0xf]
    %v3387 = vld [vmem:[#allocation9 + $0xc] sm:$0xf]
    %v3388 = vld [vmem:[#allocation9 + $0x10] sm:$0xf]
    %v3389 = vld [vmem:[#allocation9 + $0x14] sm:$0xf]
    %v3390 = vld [vmem:[#allocation9 + $0x18] sm:$0xf]
    %v3391 = vld [vmem:[#allocation9 + $0x1c] sm:$0xf]
    %v3392 = vld [vmem:[#allocation9 + $0x20] sm:$0xf]
    %v3393 = vld [vmem:[#allocation9 + $0x24] sm:$0xf]
    %v3394 = vld [vmem:[#allocation9 + $0x28] sm:$0xf]
    %v3395 = vld [vmem:[#allocation9 + $0x2c] sm:$0xf]
    %v3396 = vld [vmem:[#allocation9 + $0x30] sm:$0xf]
    %v3397 = vld [vmem:[#allocation9 + $0x34] sm:$0xf]
    %v3398 = vld [vmem:[#allocation9 + $0x38] sm:$0xf]
    %v3399 = vld [vmem:[#allocation9 + $0x3c] sm:$0xf]
    %v3416 = vunpack.c.l.b16 %v3384
    %v3417 = vunpack.c.l.b16 %v3385
    %v3418 = vunpack.c.l.b16 %v3386
    %v3419 = vunpack.c.l.b16 %v3387
    %v3420 = vunpack.c.l.b16 %v3388
    %v3421 = vunpack.c.l.b16 %v3389
    %v3422 = vunpack.c.l.b16 %v3390
    %v3423 = vunpack.c.l.b16 %v3391
    %v3424 = vunpack.c.l.b16 %v3392
    %v3425 = vunpack.c.l.b16 %v3393
    %v3426 = vunpack.c.l.b16 %v3394
    %v3427 = vunpack.c.l.b16 %v3395
    %v3428 = vunpack.c.l.b16 %v3396
    %v3429 = vunpack.c.l.b16 %v3397
    %v3430 = vunpack.c.l.b16 %v3398
    %v3431 = vunpack.c.l.b16 %v3399
    %v3432 = vpack.c.b16 %v3417, %v3416
    %v3433 = vpack.c.b16 %v3419, %v3418
    %v3434 = vpack.c.b16 %v3421, %v3420
    %v3435 = vpack.c.b16 %v3423, %v3422
    %v3436 = vpack.c.b16 %v3425, %v3424
    %v3437 = vpack.c.b16 %v3427, %v3426
    %v3438 = vpack.c.b16 %v3429, %v3428
    %v3439 = vpack.c.b16 %v3431, %v3430
    %3448 = vmatpush.bf16.msra.mxu0 %v3439
    %3449 = vmatpush.bf16.msra.mxu0 %v3438
    %3450 = vmatpush.bf16.msra.mxu0 %v3437
    %3451 = vmatpush.bf16.msra.mxu0 %v3436
    %3452 = vmatpush.bf16.msra.mxu0 %v3435
    %3453 = vmatpush.bf16.msra.mxu0 %v3434
    %3454 = vmatpush.bf16.msra.mxu0 %v3433
    %3455 = vmatpush.bf16.msra.mxu0 %v3432
    %3456 = vmatmul.bf16.gmra.mxu0 %v3383
    %v3457 = vpop.f32.mrf.mxu0
    %v3458 = vadd.f32 0.0, %v3457
    %v3459 = vpop.f32.mrf.mxu0
    %3460 = vdwg.mxu0
    %v3461 = vmul.f32 %v3458, %v3458
    %v3462 = vsub.f32 1.0, %v3461
    %v3463 = vmax.f32 %v3462, 0.0
    %v3464 = vmin.f32 %v3463, 1.0
    %v3465 = vrsqrt.pop %v3464
    %v3466 = vmul.f32 %v3465, %v3464
    %v3467 = vmul.f32 %v3466, %v3465
    %v3468 = vmul.f32 0.5, %v3467
    %v3469 = vsub.f32 1.5, %v3468
    %v3470 = vmul.f32 %v3465, %v3469
    %v3471 = vmul.f32 %v3464, %v3470
    %vm3472 = vcmp.eq.f32.partialorder %v3464, inf
    %v3473 = vsel %vm3472, %v3464, %v3471
    %vm3474 = vcmp.eq.f32.partialorder %v3464, 0.0
    %v3475 = vand.u32 %v3464, 2147483648
    %v3476 = vsel %vm3474, %v3475, %v3473
    %v3477 = vmul.f32 %v3458, 0.87758255
    %v3478 = vmul.f32 %v3476, 0.47942555
    %v3479 = vsub.f32 %v3477, %v3478
    %vm3480 = vcmp.gt.f32.partialorder %v3458, -0.87758255
    %v3481 = vsub.f32 %v3458, 0.23971277
    %v3482 = vsel %vm3480, %v3479, %v3481
    %v3483 = vld [vmem:[%s0] sm:$0xff]
    %v3484 = vlaneseq
    %v3485 = vand.u32 %v3484, 127
    %3486 = vset.pattern.permute.xlu0 0
    %3487 = vperm.xlu0 %3486, %v3483
    %v3488 = vpop.permute.xlu0 %3487
    %vm3489 = vcmp.eq.s32.totalorder %v3485, %v3488
    %v3490 = vsel %vm3489, 1, 0
    %v3491 = vcvt.s32.f32 %v3490
    %v3492 = vmul.f32 %v3491, %v3482
    %v3493 = vsub.f32 1.0, %v3491
    %v3494 = vmul.f32 %v3493, %v3458
    %v3495 = vadd.f32 %v3492, %v3494
    %v3496 = vmul.f32 %v3495, 30.0
    %3497 = vst [vmem:[#allocation11] sm:$0xff] %v3496
    // Predicated region
    $region46: #{tpu_custom_call.1} parent=1 // pred_check
      _
    $region47: #{tpu_custom_call.1} parent=1 // pred_check_branch
      %3499 = sbr.rel (0) target = $region49
    $region48: #{tpu_custom_call.1} parent=1 // pred_region
      %3501 = vsyncadd [#allocation5], 0
      %s3503 = sshll.u32 [#allocation11], 4
      %s3504 = int_to_ptr.vmem [resolvable:$true] %s3503
      %s3505 = sshll.u32 %s7, 4
      %s3506 = int_to_ptr.hbm [resolvable:$true] %s3505
      %3508 = dma.vmem_to_hbm [thread:$0]  %s3504, 128, %s3506, [#allocation5]
    $region49: #{tpu_custom_call.1} parent=1 // pred_fallthru
      _
    // Predicated region
    $region50: #{tpu_custom_call.1} parent=1 // pred_check
      _
    $region51: #{tpu_custom_call.1} parent=1 // pred_check_branch
      %3510 = sbr.rel (0) target = $region53
    $region52: #{tpu_custom_call.1} parent=1 // pred_region
      %3512 = dma.done [#allocation5], 128
    $region53: #{tpu_custom_call.1} parent=1 // pred_fallthru
      _
    %3513 = vsyncpa [#allocation4], 1
    %3514 = vsyncpa [#allocation7], 1
    %3515 = vsyncpa [#allocation10], 1
    %3516 = vsyncpa [#allocation5], 1

</llo_original>
